<compile_context>
chip_gen: v6e
topology: v6e:2x2x1
jax: 0.10.0
libtpu: 0.0.40
codegen_flags: <defaults>
</compile_context>

<pallas_src>
import jax
import jax.numpy as jnp
from jax.experimental import pallas as pl
from jax.experimental.pallas import tpu as pltpu  # noqa: F401  (TPU backend)

SEQ = 8
BATCH = 1            # domain branch squeezes dim 1, so batch must be 1
INPUT_SIZE = 32
HIDDEN = 240         # Linear(240, 2) => feature_extractor.hidden_size == 240
H_PAD = 256          # lane-aligned internal hidden size


# --------------------------- fused forward kernel ---------------------------

def _fused_kernel(x_ref, wih_t_ref, whh_t_ref, b_ref, h0_ref, c0_ref,
                  wlin_t_ref, blin_ref,
                  feat_ref, cN_ref, dom_ref):
    seq = x_ref.shape[0]
    hp = h0_ref.shape[-1]

    # Input projection hoisted off the serial chain:
    # one (seq, in) x (in, 4*hp) bf16 matmul with f32 accumulation + bias.
    xw = jnp.dot(x_ref[...], wih_t_ref[...],
                 preferred_element_type=jnp.float32) + b_ref[...]   # (seq, 4*hp)

    whh_t = whh_t_ref[...]                       # (hp, 4*hp) bf16, loaded once
    h = h0_ref[...]                              # (1, hp) f32
    c = c0_ref[...]                              # (1, hp) f32
    h_sum = jnp.zeros((1, hp), jnp.float32)

    # seq is tiny (8): fully unroll the recurrence; gate slices are
    # lane-aligned at multiples of 256.
    for t in range(seq):
        gates = xw[t:t + 1, :] + jnp.dot(
            h.astype(jnp.bfloat16), whh_t,
            preferred_element_type=jnp.float32)                    # (1, 4*hp)
        i_g = jax.nn.sigmoid(gates[:, 0 * hp:1 * hp])
        f_g = jax.nn.sigmoid(gates[:, 1 * hp:2 * hp])
        g_g = jnp.tanh(gates[:, 2 * hp:3 * hp])
        o_g = jax.nn.sigmoid(gates[:, 3 * hp:4 * hp])
        c = f_g * c + i_g * g_g
        h = o_g * jnp.tanh(c)
        h_sum = h_sum + h
        # VMEM store into the output slab; slab goes to HBM once at the end.
        feat_ref[pl.ds(t, 1), :] = h

    cN_ref[...] = c

    # Fused domain head (GradientReversal.forward == identity):
    # mean over seq  ->  Linear(240->2)  ->  softmax(dim=1).
    pooled = h_sum * (1.0 / seq)                                    # (1, hp)
    logits = jnp.dot(pooled, wlin_t_ref[...],
                     preferred_element_type=jnp.float32) + blin_ref[...]  # (1, 2)
    m = jnp.max(logits, axis=-1, keepdims=True)
    e = jnp.exp(logits - m)
    dom_ref[...] = e / jnp.sum(e, axis=-1, keepdims=True)


# ----------------------------- weight packing --------------------------------

def _pad_gate_cols(w, h, hp):
    """Pad the trailing gate-concatenated axis (4*h) to (4*hp), per gate."""
    lead = w.shape[:-1]
    w4 = w.reshape(*lead, 4, h)
    w4 = jnp.pad(w4, [(0, 0)] * len(lead) + [(0, 0), (0, hp - h)])
    return w4.reshape(*lead, 4 * hp)


def pack_params(params, hidden=HIDDEN, h_pad=H_PAD):
    """One-time weight prep: transpose, per-gate zero pad 240->256, bf16 cast."""
    pad_h = h_pad - hidden
    wih_t = _pad_gate_cols(params["w_ih"].T, hidden, h_pad).astype(jnp.bfloat16)
    whh_t = _pad_gate_cols(
        jnp.pad(params["w_hh"].T, ((0, pad_h), (0, 0))), hidden, h_pad
    ).astype(jnp.bfloat16)                                          # (HP, 4*HP)
    bias = _pad_gate_cols(
        (params["b_ih"] + params["b_hh"]).reshape(1, 4 * hidden), hidden, h_pad
    ).astype(jnp.float32)                                           # (1, 4*HP)
    wlin_t = jnp.pad(params["w_lin"].T, ((0, pad_h), (0, 0))
                     ).astype(jnp.float32)                          # (HP, 2)
    blin = params["b_lin"].reshape(1, 2).astype(jnp.float32)
    return {"wih_t": wih_t, "whh_t": whh_t, "bias": bias,
            "wlin_t": wlin_t, "blin": blin}


# ------------------------------ forward wrappers ------------------------------

def lstm_domain_transfer_forward(x, state, packed):
    """Fused forward given pre-packed weights.

    x:     (seq, 1, input_size) float32
    state: (h0, c0), each (1, 1, HIDDEN)   (PyTorch LSTM state convention)
    Returns (features (seq, 1, HIDDEN), (hN, cN), domain_probs (1, 2)).
    """
    seq, batch, insz = x.shape
    assert batch == 1, "domain branch squeezes dim 1; batch must be 1"
    h0, c0 = state

    H, HP = HIDDEN, H_PAD
    pad_h = HP - H

    x2 = x.reshape(seq, insz).astype(jnp.bfloat16)                  # (seq, in)
    h0p = jnp.pad(h0.reshape(1, H), ((0, 0), (0, pad_h))).astype(jnp.float32)
    c0p = jnp.pad(c0.reshape(1, H), ((0, 0), (0, pad_h))).astype(jnp.float32)

    out_shapes = (
        jax.ShapeDtypeStruct((seq, HP), jnp.float32),   # feature slab (padded)
        jax.ShapeDtypeStruct((1, HP), jnp.float32),     # c_N (padded)
        jax.ShapeDtypeStruct((1, 2), jnp.float32),      # domain softmax
    )

    feat_p, cN_p, dom = pl.pallas_call(
        _fused_kernel,
        out_shape=out_shapes,
    )(x2, packed["wih_t"], packed["whh_t"], packed["bias"],
      h0p, c0p, packed["wlin_t"], packed["blin"])

    # nn.Dropout(p=0.05) in eval mode: identity.
    feats = feat_p[:, :H].reshape(seq, 1, H).astype(x.dtype)
    hN = feat_p[seq - 1:seq, :H].reshape(1, 1, H).astype(x.dtype)   # last h == h_N
    cN = cN_p[:, :H].reshape(1, 1, H).astype(x.dtype)
    return feats, (hN, cN), dom


def lstm_domain_transfer_net(x, state, params):
    """Convenience wrapper: packs raw (PyTorch-layout) params every call."""
    return lstm_domain_transfer_forward(x, state, pack_params(params))


# --------------------------------- main --------------------------------------

def _init_params(key):
    k = 1.0 / jnp.sqrt(jnp.float32(HIDDEN))
    keys = jax.random.split(key, 6)
    u = lambda kk, shape: jax.random.uniform(kk, shape, jnp.float32, -k, k)
    return {
        "w_ih": u(keys[0], (4 * HIDDEN, INPUT_SIZE)),   # PyTorch weight_ih_l0
        "w_hh": u(keys[1], (4 * HIDDEN, HIDDEN)),       # PyTorch weight_hh_l0
        "b_ih": u(keys[2], (4 * HIDDEN,)),
        "b_hh": u(keys[3], (4 * HIDDEN,)),
        "w_lin": u(keys[4], (2, HIDDEN)),               # Linear(240, 2)
        "b_lin": u(keys[5], (2,)),
    }


if __name__ == "__main__":
    root = jax.random.PRNGKey(0)
    k_param, k_x, k_h, k_c = jax.random.split(root, 4)

    params = _init_params(k_param)
    x = jax.random.normal(k_x, (SEQ, BATCH, INPUT_SIZE), jnp.float32)
    h0 = jax.random.normal(k_h, (1, BATCH, HIDDEN), jnp.float32) * 0.1
    c0 = jax.random.normal(k_c, (1, BATCH, HIDDEN), jnp.float32) * 0.1
    state = (h0, c0)

    # Pack weights once (outside the jitted forward), then run the fused kernel.
    packed = jax.tree_util.tree_map(jnp.asarray, pack_params(params))
    fwd = jax.jit(lstm_domain_transfer_forward)
    feats, new_state, domain_probs = fwd(x, state, packed)
    jax.block_until_ready((feats, new_state, domain_probs))

    assert feats.shape == (SEQ, BATCH, HIDDEN)
    assert new_state[0].shape == (1, BATCH, HIDDEN)
    assert new_state[1].shape == (1, BATCH, HIDDEN)
    assert domain_probs.shape == (1, 2)
    # softmax sanity
    assert abs(float(jnp.sum(domain_probs)) - 1.0) < 1e-3
    # h_N must equal the last feature row (eval-mode dropout is identity)
    assert bool(jnp.allclose(new_state[0][0, 0], feats[-1, 0]))

    print("KERNEL_OK")
</pallas_src>

<mosaic_0001>
module attributes {stable_mosaic.version = 11 : i64} {
  func.func @_fused_kernel(%arg0: memref<8x32xbf16, #tpu.memory_space<vmem>>, %arg1: memref<32x1024xbf16, #tpu.memory_space<vmem>>, %arg2: memref<256x1024xbf16, #tpu.memory_space<vmem>>, %arg3: memref<1x1024xf32, #tpu.memory_space<vmem>>, %arg4: memref<1x256xf32, #tpu.memory_space<vmem>>, %arg5: memref<1x256xf32, #tpu.memory_space<vmem>>, %arg6: memref<256x2xf32, #tpu.memory_space<vmem>>, %arg7: memref<1x2xf32, #tpu.memory_space<vmem>>, %arg8: memref<8x256xf32, #tpu.memory_space<vmem>>, %arg9: memref<1x256xf32, #tpu.memory_space<vmem>>, %arg10: memref<1x2xf32, #tpu.memory_space<vmem>>) attributes {dimension_semantics = [], scalar_prefetch = 0 : i64, scratch_operands = 0 : i64, tpu.core_type = #tpu.core_type<tc>} {
    %c0 = arith.constant 0 : index
    %c0_0 = arith.constant 0 : index
    %0 = vector.load %arg0[%c0, %c0_0] : memref<8x32xbf16, #tpu.memory_space<vmem>>, vector<8x32xbf16>
    %c0_1 = arith.constant 0 : index
    %c0_2 = arith.constant 0 : index
    %1 = vector.load %arg1[%c0_1, %c0_2] : memref<32x1024xbf16, #tpu.memory_space<vmem>>, vector<32x1024xbf16>
    %cst = arith.constant dense<0.000000e+00> : vector<8x1024xf32>
    %2 = tpu.matmul %0, %1, %cst {dimension_numbers = #tpu.dot_dimension_numbers<[1], [0], [0], [1], [0, 0, 1, 1], [], []>} : vector<8x32xbf16>, vector<32x1024xbf16>, vector<8x1024xf32> -> vector<8x1024xf32>
    %c0_3 = arith.constant 0 : index
    %c0_4 = arith.constant 0 : index
    %3 = vector.load %arg3[%c0_3, %c0_4] : memref<1x1024xf32, #tpu.memory_space<vmem>>, vector<1x1024xf32>
    %4 = vector.broadcast %3 : vector<1x1024xf32> to vector<8x1024xf32>
    %5 = arith.addf %2, %4 : vector<8x1024xf32>
    %c0_5 = arith.constant 0 : index
    %c0_6 = arith.constant 0 : index
    %6 = vector.load %arg2[%c0_5, %c0_6] : memref<256x1024xbf16, #tpu.memory_space<vmem>>, vector<256x1024xbf16>
    %c0_7 = arith.constant 0 : index
    %c0_8 = arith.constant 0 : index
    %7 = vector.load %arg4[%c0_7, %c0_8] : memref<1x256xf32, #tpu.memory_space<vmem>>, vector<1x256xf32>
    %c0_9 = arith.constant 0 : index
    %c0_10 = arith.constant 0 : index
    %8 = vector.load %arg5[%c0_9, %c0_10] : memref<1x256xf32, #tpu.memory_space<vmem>>, vector<1x256xf32>
    %cst_11 = arith.constant 0.000000e+00 : f32
    %9 = vector.broadcast %cst_11 : f32 to vector<1x256xf32>
    %10 = vector.extract_strided_slice %5 {offsets = [0, 0], sizes = [1, 1024], strides = [1, 1]} : vector<8x1024xf32> to vector<1x1024xf32>
    %11 = arith.truncf %7 : vector<1x256xf32> to vector<1x256xbf16>
    %cst_12 = arith.constant dense<0.000000e+00> : vector<1x1024xf32>
    %12 = tpu.matmul %11, %6, %cst_12 {dimension_numbers = #tpu.dot_dimension_numbers<[1], [0], [0], [1], [0, 0, 1, 1], [], []>} : vector<1x256xbf16>, vector<256x1024xbf16>, vector<1x1024xf32> -> vector<1x1024xf32>
    %13 = arith.addf %10, %12 : vector<1x1024xf32>
    %14 = vector.extract_strided_slice %13 {offsets = [0, 0], sizes = [1, 256], strides = [1, 1]} : vector<1x1024xf32> to vector<1x256xf32>
    %15 = arith.negf %14 : vector<1x256xf32>
    %16 = math.exp %15 : vector<1x256xf32>
    %cst_13 = arith.constant 1.000000e+00 : f32
    %17 = vector.broadcast %cst_13 : f32 to vector<1x256xf32>
    %18 = arith.addf %17, %16 : vector<1x256xf32>
    %19 = arith.divf %17, %18 : vector<1x256xf32>
    %20 = vector.extract_strided_slice %13 {offsets = [0, 256], sizes = [1, 256], strides = [1, 1]} : vector<1x1024xf32> to vector<1x256xf32>
    %21 = arith.negf %20 : vector<1x256xf32>
    %22 = math.exp %21 : vector<1x256xf32>
    %cst_14 = arith.constant 1.000000e+00 : f32
    %23 = vector.broadcast %cst_14 : f32 to vector<1x256xf32>
    %24 = arith.addf %23, %22 : vector<1x256xf32>
    %25 = arith.divf %23, %24 : vector<1x256xf32>
    %26 = vector.extract_strided_slice %13 {offsets = [0, 512], sizes = [1, 256], strides = [1, 1]} : vector<1x1024xf32> to vector<1x256xf32>
    %27 = math.tanh %26 : vector<1x256xf32>
    %28 = vector.extract_strided_slice %13 {offsets = [0, 768], sizes = [1, 256], strides = [1, 1]} : vector<1x1024xf32> to vector<1x256xf32>
    %29 = arith.negf %28 : vector<1x256xf32>
    %30 = math.exp %29 : vector<1x256xf32>
    %cst_15 = arith.constant 1.000000e+00 : f32
    %31 = vector.broadcast %cst_15 : f32 to vector<1x256xf32>
    %32 = arith.addf %31, %30 : vector<1x256xf32>
    %33 = arith.divf %31, %32 : vector<1x256xf32>
    %34 = arith.mulf %25, %8 : vector<1x256xf32>
    %35 = arith.mulf %19, %27 : vector<1x256xf32>
    %36 = arith.addf %34, %35 : vector<1x256xf32>
    %37 = math.tanh %36 : vector<1x256xf32>
    %38 = arith.mulf %33, %37 : vector<1x256xf32>
    %39 = arith.addf %9, %38 : vector<1x256xf32>
    %c0_16 = arith.constant 0 : index
    %c0_17 = arith.constant 0 : index
    %40 = vector.load %arg8[%c0_16, %c0_17] : memref<8x256xf32, #tpu.memory_space<vmem>>, vector<1x256xf32>
    tpu.vector_store %arg8[%c0_16, %c0_17], %38 {strides = array<i32>} : memref<8x256xf32, #tpu.memory_space<vmem>>, vector<1x256xf32>,
    %41 = vector.extract_strided_slice %5 {offsets = [1, 0], sizes = [1, 1024], strides = [1, 1]} : vector<8x1024xf32> to vector<1x1024xf32>
    %42 = arith.truncf %38 : vector<1x256xf32> to vector<1x256xbf16>
    %cst_18 = arith.constant dense<0.000000e+00> : vector<1x1024xf32>
    %43 = tpu.matmul %42, %6, %cst_18 {dimension_numbers = #tpu.dot_dimension_numbers<[1], [0], [0], [1], [0, 0, 1, 1], [], []>} : vector<1x256xbf16>, vector<256x1024xbf16>, vector<1x1024xf32> -> vector<1x1024xf32>
    %44 = arith.addf %41, %43 : vector<1x1024xf32>
    %45 = vector.extract_strided_slice %44 {offsets = [0, 0], sizes = [1, 256], strides = [1, 1]} : vector<1x1024xf32> to vector<1x256xf32>
    %46 = arith.negf %45 : vector<1x256xf32>
    %47 = math.exp %46 : vector<1x256xf32>
    %cst_19 = arith.constant 1.000000e+00 : f32
    %48 = vector.broadcast %cst_19 : f32 to vector<1x256xf32>
    %49 = arith.addf %48, %47 : vector<1x256xf32>
    %50 = arith.divf %48, %49 : vector<1x256xf32>
    %51 = vector.extract_strided_slice %44 {offsets = [0, 256], sizes = [1, 256], strides = [1, 1]} : vector<1x1024xf32> to vector<1x256xf32>
    %52 = arith.negf %51 : vector<1x256xf32>
    %53 = math.exp %52 : vector<1x256xf32>
    %cst_20 = arith.constant 1.000000e+00 : f32
    %54 = vector.broadcast %cst_20 : f32 to vector<1x256xf32>
    %55 = arith.addf %54, %53 : vector<1x256xf32>
    %56 = arith.divf %54, %55 : vector<1x256xf32>
    %57 = vector.extract_strided_slice %44 {offsets = [0, 512], sizes = [1, 256], strides = [1, 1]} : vector<1x1024xf32> to vector<1x256xf32>
    %58 = math.tanh %57 : vector<1x256xf32>
    %59 = vector.extract_strided_slice %44 {offsets = [0, 768], sizes = [1, 256], strides = [1, 1]} : vector<1x1024xf32> to vector<1x256xf32>
    %60 = arith.negf %59 : vector<1x256xf32>
    %61 = math.exp %60 : vector<1x256xf32>
    %cst_21 = arith.constant 1.000000e+00 : f32
    %62 = vector.broadcast %cst_21 : f32 to vector<1x256xf32>
    %63 = arith.addf %62, %61 : vector<1x256xf32>
    %64 = arith.divf %62, %63 : vector<1x256xf32>
    %65 = arith.mulf %56, %36 : vector<1x256xf32>
    %66 = arith.mulf %50, %58 : vector<1x256xf32>
    %67 = arith.addf %65, %66 : vector<1x256xf32>
    %68 = math.tanh %67 : vector<1x256xf32>
    %69 = arith.mulf %64, %68 : vector<1x256xf32>
    %70 = arith.addf %39, %69 : vector<1x256xf32>
    %c1 = arith.constant 1 : index
    %c0_22 = arith.constant 0 : index
    %71 = vector.load %arg8[%c1, %c0_22] : memref<8x256xf32, #tpu.memory_space<vmem>>, vector<1x256xf32>
    tpu.vector_store %arg8[%c1, %c0_22], %69 {strides = array<i32>} : memref<8x256xf32, #tpu.memory_space<vmem>>, vector<1x256xf32>,
    %72 = vector.extract_strided_slice %5 {offsets = [2, 0], sizes = [1, 1024], strides = [1, 1]} : vector<8x1024xf32> to vector<1x1024xf32>
    %73 = arith.truncf %69 : vector<1x256xf32> to vector<1x256xbf16>
    %cst_23 = arith.constant dense<0.000000e+00> : vector<1x1024xf32>
    %74 = tpu.matmul %73, %6, %cst_23 {dimension_numbers = #tpu.dot_dimension_numbers<[1], [0], [0], [1], [0, 0, 1, 1], [], []>} : vector<1x256xbf16>, vector<256x1024xbf16>, vector<1x1024xf32> -> vector<1x1024xf32>
    %75 = arith.addf %72, %74 : vector<1x1024xf32>
    %76 = vector.extract_strided_slice %75 {offsets = [0, 0], sizes = [1, 256], strides = [1, 1]} : vector<1x1024xf32> to vector<1x256xf32>
    %77 = arith.negf %76 : vector<1x256xf32>
    %78 = math.exp %77 : vector<1x256xf32>
    %cst_24 = arith.constant 1.000000e+00 : f32
    %79 = vector.broadcast %cst_24 : f32 to vector<1x256xf32>
    %80 = arith.addf %79, %78 : vector<1x256xf32>
    %81 = arith.divf %79, %80 : vector<1x256xf32>
    %82 = vector.extract_strided_slice %75 {offsets = [0, 256], sizes = [1, 256], strides = [1, 1]} : vector<1x1024xf32> to vector<1x256xf32>
    %83 = arith.negf %82 : vector<1x256xf32>
    %84 = math.exp %83 : vector<1x256xf32>
    %cst_25 = arith.constant 1.000000e+00 : f32
    %85 = vector.broadcast %cst_25 : f32 to vector<1x256xf32>
    %86 = arith.addf %85, %84 : vector<1x256xf32>
    %87 = arith.divf %85, %86 : vector<1x256xf32>
    %88 = vector.extract_strided_slice %75 {offsets = [0, 512], sizes = [1, 256], strides = [1, 1]} : vector<1x1024xf32> to vector<1x256xf32>
    %89 = math.tanh %88 : vector<1x256xf32>
    %90 = vector.extract_strided_slice %75 {offsets = [0, 768], sizes = [1, 256], strides = [1, 1]} : vector<1x1024xf32> to vector<1x256xf32>
    %91 = arith.negf %90 : vector<1x256xf32>
    %92 = math.exp %91 : vector<1x256xf32>
    %cst_26 = arith.constant 1.000000e+00 : f32
    %93 = vector.broadcast %cst_26 : f32 to vector<1x256xf32>
    %94 = arith.addf %93, %92 : vector<1x256xf32>
    %95 = arith.divf %93, %94 : vector<1x256xf32>
    %96 = arith.mulf %87, %67 : vector<1x256xf32>
    %97 = arith.mulf %81, %89 : vector<1x256xf32>
    %98 = arith.addf %96, %97 : vector<1x256xf32>
    %99 = math.tanh %98 : vector<1x256xf32>
    %100 = arith.mulf %95, %99 : vector<1x256xf32>
    %101 = arith.addf %70, %100 : vector<1x256xf32>
    %c2 = arith.constant 2 : index
    %c0_27 = arith.constant 0 : index
    %102 = vector.load %arg8[%c2, %c0_27] : memref<8x256xf32, #tpu.memory_space<vmem>>, vector<1x256xf32>
    tpu.vector_store %arg8[%c2, %c0_27], %100 {strides = array<i32>} : memref<8x256xf32, #tpu.memory_space<vmem>>, vector<1x256xf32>,
    %103 = vector.extract_strided_slice %5 {offsets = [3, 0], sizes = [1, 1024], strides = [1, 1]} : vector<8x1024xf32> to vector<1x1024xf32>
    %104 = arith.truncf %100 : vector<1x256xf32> to vector<1x256xbf16>
    %cst_28 = arith.constant dense<0.000000e+00> : vector<1x1024xf32>
    %105 = tpu.matmul %104, %6, %cst_28 {dimension_numbers = #tpu.dot_dimension_numbers<[1], [0], [0], [1], [0, 0, 1, 1], [], []>} : vector<1x256xbf16>, vector<256x1024xbf16>, vector<1x1024xf32> -> vector<1x1024xf32>
    %106 = arith.addf %103, %105 : vector<1x1024xf32>
    %107 = vector.extract_strided_slice %106 {offsets = [0, 0], sizes = [1, 256], strides = [1, 1]} : vector<1x1024xf32> to vector<1x256xf32>
    %108 = arith.negf %107 : vector<1x256xf32>
    %109 = math.exp %108 : vector<1x256xf32>
    %cst_29 = arith.constant 1.000000e+00 : f32
    %110 = vector.broadcast %cst_29 : f32 to vector<1x256xf32>
    %111 = arith.addf %110, %109 : vector<1x256xf32>
    %112 = arith.divf %110, %111 : vector<1x256xf32>
    %113 = vector.extract_strided_slice %106 {offsets = [0, 256], sizes = [1, 256], strides = [1, 1]} : vector<1x1024xf32> to vector<1x256xf32>
    %114 = arith.negf %113 : vector<1x256xf32>
    %115 = math.exp %114 : vector<1x256xf32>
    %cst_30 = arith.constant 1.000000e+00 : f32
    %116 = vector.broadcast %cst_30 : f32 to vector<1x256xf32>
    %117 = arith.addf %116, %115 : vector<1x256xf32>
    %118 = arith.divf %116, %117 : vector<1x256xf32>
    %119 = vector.extract_strided_slice %106 {offsets = [0, 512], sizes = [1, 256], strides = [1, 1]} : vector<1x1024xf32> to vector<1x256xf32>
    %120 = math.tanh %119 : vector<1x256xf32>
    %121 = vector.extract_strided_slice %106 {offsets = [0, 768], sizes = [1, 256], strides = [1, 1]} : vector<1x1024xf32> to vector<1x256xf32>
    %122 = arith.negf %121 : vector<1x256xf32>
    %123 = math.exp %122 : vector<1x256xf32>
    %cst_31 = arith.constant 1.000000e+00 : f32
    %124 = vector.broadcast %cst_31 : f32 to vector<1x256xf32>
    %125 = arith.addf %124, %123 : vector<1x256xf32>
    %126 = arith.divf %124, %125 : vector<1x256xf32>
    %127 = arith.mulf %118, %98 : vector<1x256xf32>
    %128 = arith.mulf %112, %120 : vector<1x256xf32>
    %129 = arith.addf %127, %128 : vector<1x256xf32>
    %130 = math.tanh %129 : vector<1x256xf32>
    %131 = arith.mulf %126, %130 : vector<1x256xf32>
    %132 = arith.addf %101, %131 : vector<1x256xf32>
    %c3 = arith.constant 3 : index
    %c0_32 = arith.constant 0 : index
    %133 = vector.load %arg8[%c3, %c0_32] : memref<8x256xf32, #tpu.memory_space<vmem>>, vector<1x256xf32>
    tpu.vector_store %arg8[%c3, %c0_32], %131 {strides = array<i32>} : memref<8x256xf32, #tpu.memory_space<vmem>>, vector<1x256xf32>,
    %134 = vector.extract_strided_slice %5 {offsets = [4, 0], sizes = [1, 1024], strides = [1, 1]} : vector<8x1024xf32> to vector<1x1024xf32>
    %135 = arith.truncf %131 : vector<1x256xf32> to vector<1x256xbf16>
    %cst_33 = arith.constant dense<0.000000e+00> : vector<1x1024xf32>
    %136 = tpu.matmul %135, %6, %cst_33 {dimension_numbers = #tpu.dot_dimension_numbers<[1], [0], [0], [1], [0, 0, 1, 1], [], []>} : vector<1x256xbf16>, vector<256x1024xbf16>, vector<1x1024xf32> -> vector<1x1024xf32>
    %137 = arith.addf %134, %136 : vector<1x1024xf32>
    %138 = vector.extract_strided_slice %137 {offsets = [0, 0], sizes = [1, 256], strides = [1, 1]} : vector<1x1024xf32> to vector<1x256xf32>
    %139 = arith.negf %138 : vector<1x256xf32>
    %140 = math.exp %139 : vector<1x256xf32>
    %cst_34 = arith.constant 1.000000e+00 : f32
    %141 = vector.broadcast %cst_34 : f32 to vector<1x256xf32>
    %142 = arith.addf %141, %140 : vector<1x256xf32>
    %143 = arith.divf %141, %142 : vector<1x256xf32>
    %144 = vector.extract_strided_slice %137 {offsets = [0, 256], sizes = [1, 256], strides = [1, 1]} : vector<1x1024xf32> to vector<1x256xf32>
    %145 = arith.negf %144 : vector<1x256xf32>
    %146 = math.exp %145 : vector<1x256xf32>
    %cst_35 = arith.constant 1.000000e+00 : f32
    %147 = vector.broadcast %cst_35 : f32 to vector<1x256xf32>
    %148 = arith.addf %147, %146 : vector<1x256xf32>
    %149 = arith.divf %147, %148 : vector<1x256xf32>
    %150 = vector.extract_strided_slice %137 {offsets = [0, 512], sizes = [1, 256], strides = [1, 1]} : vector<1x1024xf32> to vector<1x256xf32>
    %151 = math.tanh %150 : vector<1x256xf32>
    %152 = vector.extract_strided_slice %137 {offsets = [0, 768], sizes = [1, 256], strides = [1, 1]} : vector<1x1024xf32> to vector<1x256xf32>
    %153 = arith.negf %152 : vector<1x256xf32>
    %154 = math.exp %153 : vector<1x256xf32>
    %cst_36 = arith.constant 1.000000e+00 : f32
    %155 = vector.broadcast %cst_36 : f32 to vector<1x256xf32>
    %156 = arith.addf %155, %154 : vector<1x256xf32>
    %157 = arith.divf %155, %156 : vector<1x256xf32>
    %158 = arith.mulf %149, %129 : vector<1x256xf32>
    %159 = arith.mulf %143, %151 : vector<1x256xf32>
    %160 = arith.addf %158, %159 : vector<1x256xf32>
    %161 = math.tanh %160 : vector<1x256xf32>
    %162 = arith.mulf %157, %161 : vector<1x256xf32>
    %163 = arith.addf %132, %162 : vector<1x256xf32>
    %c4 = arith.constant 4 : index
    %c0_37 = arith.constant 0 : index
    %164 = vector.load %arg8[%c4, %c0_37] : memref<8x256xf32, #tpu.memory_space<vmem>>, vector<1x256xf32>
    tpu.vector_store %arg8[%c4, %c0_37], %162 {strides = array<i32>} : memref<8x256xf32, #tpu.memory_space<vmem>>, vector<1x256xf32>,
    %165 = vector.extract_strided_slice %5 {offsets = [5, 0], sizes = [1, 1024], strides = [1, 1]} : vector<8x1024xf32> to vector<1x1024xf32>
    %166 = arith.truncf %162 : vector<1x256xf32> to vector<1x256xbf16>
    %cst_38 = arith.constant dense<0.000000e+00> : vector<1x1024xf32>
    %167 = tpu.matmul %166, %6, %cst_38 {dimension_numbers = #tpu.dot_dimension_numbers<[1], [0], [0], [1], [0, 0, 1, 1], [], []>} : vector<1x256xbf16>, vector<256x1024xbf16>, vector<1x1024xf32> -> vector<1x1024xf32>
    %168 = arith.addf %165, %167 : vector<1x1024xf32>
    %169 = vector.extract_strided_slice %168 {offsets = [0, 0], sizes = [1, 256], strides = [1, 1]} : vector<1x1024xf32> to vector<1x256xf32>
    %170 = arith.negf %169 : vector<1x256xf32>
    %171 = math.exp %170 : vector<1x256xf32>
    %cst_39 = arith.constant 1.000000e+00 : f32
    %172 = vector.broadcast %cst_39 : f32 to vector<1x256xf32>
    %173 = arith.addf %172, %171 : vector<1x256xf32>
    %174 = arith.divf %172, %173 : vector<1x256xf32>
    %175 = vector.extract_strided_slice %168 {offsets = [0, 256], sizes = [1, 256], strides = [1, 1]} : vector<1x1024xf32> to vector<1x256xf32>
    %176 = arith.negf %175 : vector<1x256xf32>
    %177 = math.exp %176 : vector<1x256xf32>
    %cst_40 = arith.constant 1.000000e+00 : f32
    %178 = vector.broadcast %cst_40 : f32 to vector<1x256xf32>
    %179 = arith.addf %178, %177 : vector<1x256xf32>
    %180 = arith.divf %178, %179 : vector<1x256xf32>
    %181 = vector.extract_strided_slice %168 {offsets = [0, 512], sizes = [1, 256], strides = [1, 1]} : vector<1x1024xf32> to vector<1x256xf32>
    %182 = math.tanh %181 : vector<1x256xf32>
    %183 = vector.extract_strided_slice %168 {offsets = [0, 768], sizes = [1, 256], strides = [1, 1]} : vector<1x1024xf32> to vector<1x256xf32>
    %184 = arith.negf %183 : vector<1x256xf32>
    %185 = math.exp %184 : vector<1x256xf32>
    %cst_41 = arith.constant 1.000000e+00 : f32
    %186 = vector.broadcast %cst_41 : f32 to vector<1x256xf32>
    %187 = arith.addf %186, %185 : vector<1x256xf32>
    %188 = arith.divf %186, %187 : vector<1x256xf32>
    %189 = arith.mulf %180, %160 : vector<1x256xf32>
    %190 = arith.mulf %174, %182 : vector<1x256xf32>
    %191 = arith.addf %189, %190 : vector<1x256xf32>
    %192 = math.tanh %191 : vector<1x256xf32>
    %193 = arith.mulf %188, %192 : vector<1x256xf32>
    %194 = arith.addf %163, %193 : vector<1x256xf32>
    %c5 = arith.constant 5 : index
    %c0_42 = arith.constant 0 : index
    %195 = vector.load %arg8[%c5, %c0_42] : memref<8x256xf32, #tpu.memory_space<vmem>>, vector<1x256xf32>
    tpu.vector_store %arg8[%c5, %c0_42], %193 {strides = array<i32>} : memref<8x256xf32, #tpu.memory_space<vmem>>, vector<1x256xf32>,
    %196 = vector.extract_strided_slice %5 {offsets = [6, 0], sizes = [1, 1024], strides = [1, 1]} : vector<8x1024xf32> to vector<1x1024xf32>
    %197 = arith.truncf %193 : vector<1x256xf32> to vector<1x256xbf16>
    %cst_43 = arith.constant dense<0.000000e+00> : vector<1x1024xf32>
    %198 = tpu.matmul %197, %6, %cst_43 {dimension_numbers = #tpu.dot_dimension_numbers<[1], [0], [0], [1], [0, 0, 1, 1], [], []>} : vector<1x256xbf16>, vector<256x1024xbf16>, vector<1x1024xf32> -> vector<1x1024xf32>
    %199 = arith.addf %196, %198 : vector<1x1024xf32>
    %200 = vector.extract_strided_slice %199 {offsets = [0, 0], sizes = [1, 256], strides = [1, 1]} : vector<1x1024xf32> to vector<1x256xf32>
    %201 = arith.negf %200 : vector<1x256xf32>
    %202 = math.exp %201 : vector<1x256xf32>
    %cst_44 = arith.constant 1.000000e+00 : f32
    %203 = vector.broadcast %cst_44 : f32 to vector<1x256xf32>
    %204 = arith.addf %203, %202 : vector<1x256xf32>
    %205 = arith.divf %203, %204 : vector<1x256xf32>
    %206 = vector.extract_strided_slice %199 {offsets = [0, 256], sizes = [1, 256], strides = [1, 1]} : vector<1x1024xf32> to vector<1x256xf32>
    %207 = arith.negf %206 : vector<1x256xf32>
    %208 = math.exp %207 : vector<1x256xf32>
    %cst_45 = arith.constant 1.000000e+00 : f32
    %209 = vector.broadcast %cst_45 : f32 to vector<1x256xf32>
    %210 = arith.addf %209, %208 : vector<1x256xf32>
    %211 = arith.divf %209, %210 : vector<1x256xf32>
    %212 = vector.extract_strided_slice %199 {offsets = [0, 512], sizes = [1, 256], strides = [1, 1]} : vector<1x1024xf32> to vector<1x256xf32>
    %213 = math.tanh %212 : vector<1x256xf32>
    %214 = vector.extract_strided_slice %199 {offsets = [0, 768], sizes = [1, 256], strides = [1, 1]} : vector<1x1024xf32> to vector<1x256xf32>
    %215 = arith.negf %214 : vector<1x256xf32>
    %216 = math.exp %215 : vector<1x256xf32>
    %cst_46 = arith.constant 1.000000e+00 : f32
    %217 = vector.broadcast %cst_46 : f32 to vector<1x256xf32>
    %218 = arith.addf %217, %216 : vector<1x256xf32>
    %219 = arith.divf %217, %218 : vector<1x256xf32>
    %220 = arith.mulf %211, %191 : vector<1x256xf32>
    %221 = arith.mulf %205, %213 : vector<1x256xf32>
    %222 = arith.addf %220, %221 : vector<1x256xf32>
    %223 = math.tanh %222 : vector<1x256xf32>
    %224 = arith.mulf %219, %223 : vector<1x256xf32>
    %225 = arith.addf %194, %224 : vector<1x256xf32>
    %c6 = arith.constant 6 : index
    %c0_47 = arith.constant 0 : index
    %226 = vector.load %arg8[%c6, %c0_47] : memref<8x256xf32, #tpu.memory_space<vmem>>, vector<1x256xf32>
    tpu.vector_store %arg8[%c6, %c0_47], %224 {strides = array<i32>} : memref<8x256xf32, #tpu.memory_space<vmem>>, vector<1x256xf32>,
    %227 = vector.extract_strided_slice %5 {offsets = [7, 0], sizes = [1, 1024], strides = [1, 1]} : vector<8x1024xf32> to vector<1x1024xf32>
    %228 = arith.truncf %224 : vector<1x256xf32> to vector<1x256xbf16>
    %cst_48 = arith.constant dense<0.000000e+00> : vector<1x1024xf32>
    %229 = tpu.matmul %228, %6, %cst_48 {dimension_numbers = #tpu.dot_dimension_numbers<[1], [0], [0], [1], [0, 0, 1, 1], [], []>} : vector<1x256xbf16>, vector<256x1024xbf16>, vector<1x1024xf32> -> vector<1x1024xf32>
    %230 = arith.addf %227, %229 : vector<1x1024xf32>
    %231 = vector.extract_strided_slice %230 {offsets = [0, 0], sizes = [1, 256], strides = [1, 1]} : vector<1x1024xf32> to vector<1x256xf32>
    %232 = arith.negf %231 : vector<1x256xf32>
    %233 = math.exp %232 : vector<1x256xf32>
    %cst_49 = arith.constant 1.000000e+00 : f32
    %234 = vector.broadcast %cst_49 : f32 to vector<1x256xf32>
    %235 = arith.addf %234, %233 : vector<1x256xf32>
    %236 = arith.divf %234, %235 : vector<1x256xf32>
    %237 = vector.extract_strided_slice %230 {offsets = [0, 256], sizes = [1, 256], strides = [1, 1]} : vector<1x1024xf32> to vector<1x256xf32>
    %238 = arith.negf %237 : vector<1x256xf32>
    %239 = math.exp %238 : vector<1x256xf32>
    %cst_50 = arith.constant 1.000000e+00 : f32
    %240 = vector.broadcast %cst_50 : f32 to vector<1x256xf32>
    %241 = arith.addf %240, %239 : vector<1x256xf32>
    %242 = arith.divf %240, %241 : vector<1x256xf32>
    %243 = vector.extract_strided_slice %230 {offsets = [0, 512], sizes = [1, 256], strides = [1, 1]} : vector<1x1024xf32> to vector<1x256xf32>
    %244 = math.tanh %243 : vector<1x256xf32>
    %245 = vector.extract_strided_slice %230 {offsets = [0, 768], sizes = [1, 256], strides = [1, 1]} : vector<1x1024xf32> to vector<1x256xf32>
    %246 = arith.negf %245 : vector<1x256xf32>
    %247 = math.exp %246 : vector<1x256xf32>
    %cst_51 = arith.constant 1.000000e+00 : f32
    %248 = vector.broadcast %cst_51 : f32 to vector<1x256xf32>
    %249 = arith.addf %248, %247 : vector<1x256xf32>
    %250 = arith.divf %248, %249 : vector<1x256xf32>
    %251 = arith.mulf %242, %222 : vector<1x256xf32>
    %252 = arith.mulf %236, %244 : vector<1x256xf32>
    %253 = arith.addf %251, %252 : vector<1x256xf32>
    %254 = math.tanh %253 : vector<1x256xf32>
    %255 = arith.mulf %250, %254 : vector<1x256xf32>
    %256 = arith.addf %225, %255 : vector<1x256xf32>
    %c7 = arith.constant 7 : index
    %c0_52 = arith.constant 0 : index
    %257 = vector.load %arg8[%c7, %c0_52] : memref<8x256xf32, #tpu.memory_space<vmem>>, vector<1x256xf32>
    tpu.vector_store %arg8[%c7, %c0_52], %255 {strides = array<i32>} : memref<8x256xf32, #tpu.memory_space<vmem>>, vector<1x256xf32>,
    %c0_53 = arith.constant 0 : index
    %c0_54 = arith.constant 0 : index
    %258 = vector.load %arg9[%c0_53, %c0_54] : memref<1x256xf32, #tpu.memory_space<vmem>>, vector<1x256xf32>
    tpu.vector_store %arg9[%c0_53, %c0_54], %253 {strides = array<i32>} : memref<1x256xf32, #tpu.memory_space<vmem>>, vector<1x256xf32>,
    %cst_55 = arith.constant 1.250000e-01 : f32
    %259 = vector.broadcast %cst_55 : f32 to vector<1x256xf32>
    %260 = arith.mulf %256, %259 : vector<1x256xf32>
    %c0_56 = arith.constant 0 : index
    %c0_57 = arith.constant 0 : index
    %261 = vector.load %arg6[%c0_56, %c0_57] : memref<256x2xf32, #tpu.memory_space<vmem>>, vector<256x2xf32>
    %cst_58 = arith.constant dense<0.000000e+00> : vector<1x2xf32>
    %262 = tpu.matmul %260, %261, %cst_58 {dimension_numbers = #tpu.dot_dimension_numbers<[1], [0], [0], [1], [0, 0, 1, 1], [], []>} : vector<1x256xf32>, vector<256x2xf32>, vector<1x2xf32> -> vector<1x2xf32>
    %c0_59 = arith.constant 0 : index
    %c0_60 = arith.constant 0 : index
    %263 = vector.load %arg7[%c0_59, %c0_60] : memref<1x2xf32, #tpu.memory_space<vmem>>, vector<1x2xf32>
    %264 = arith.addf %262, %263 : vector<1x2xf32>
    %cst_61 = arith.constant dense<0xFF800000> : vector<1xf32>
    %265 = vector.multi_reduction <maximumf>, %264, %cst_61 [1] : vector<1x2xf32> to vector<1xf32>
    %266 = vector.shape_cast %265 : vector<1xf32> to vector<1x1xf32>
    %267 = vector.broadcast %266 : vector<1x1xf32> to vector<1x2xf32>
    %268 = arith.subf %264, %267 : vector<1x2xf32>
    %269 = math.exp %268 : vector<1x2xf32>
    %cst_62 = arith.constant dense<0.000000e+00> : vector<1xf32>
    %270 = vector.multi_reduction <add>, %269, %cst_62 [1] : vector<1x2xf32> to vector<1xf32>
    %271 = vector.shape_cast %270 : vector<1xf32> to vector<1x1xf32>
    %272 = vector.broadcast %271 : vector<1x1xf32> to vector<1x2xf32>
    %273 = arith.divf %269, %272 : vector<1x2xf32>
    %c0_63 = arith.constant 0 : index
    %c0_64 = arith.constant 0 : index
    %274 = vector.load %arg10[%c0_63, %c0_64] : memref<1x2xf32, #tpu.memory_space<vmem>>, vector<1x2xf32>
    tpu.vector_store %arg10[%c0_63, %c0_64], %273 {strides = array<i32>} : memref<1x2xf32, #tpu.memory_space<vmem>>, vector<1x2xf32>,
    return
  }
}

</mosaic_0001>

<llo_original>
// kernel: lstm_domain_transfer_forward.1
$region0: #{lstm_domain_transfer_forward.1}
  #allocation0 [shape = 'u32[]', space=smem, size = 0x4, offset = 0x4, fixed_abs, tag = 'smem constant byte address 0x4 - core index']
  #allocation1 [shape = 'u32[144,128]{1,0:T(1,128)}', space=vmem, size = 0x12000, scoped, tag = 'internal scratch']
  %s0 = inlined_call_operand.vmem [shape: bf16[8,32], index: 0, kind: input, shape index: {}]
  %s1 = inlined_call_operand.vmem [shape: bf16[32,1024], index: 1, kind: input, shape index: {}]
  %s2 = inlined_call_operand.hbm [shape: bf16[256,1024], index: 2, kind: input, shape index: {}]
  %s3 = inlined_call_operand.vmem [shape: f32[1,1024], index: 3, kind: input, shape index: {}]
  %s4 = inlined_call_operand.vmem [shape: f32[1,256], index: 4, kind: input, shape index: {}]
  %s5 = inlined_call_operand.vmem [shape: f32[1,256], index: 5, kind: input, shape index: {}]
  %s6 = inlined_call_operand.vmem [shape: f32[256,2], index: 6, kind: input, shape index: {}]
  %s7 = inlined_call_operand.vmem [shape: f32[1,2], index: 7, kind: input, shape index: {}]
  %s8 = inlined_call_operand.vmem [shape: f32[8,256], index: 8, kind: output, shape index: {0}]
  %s9 = inlined_call_operand.vmem [shape: f32[1,256], index: 9, kind: output, shape index: {1}]
  %s10 = inlined_call_operand.hbm [shape: f32[1,2], index: 10, kind: output, shape index: {2}]
  %11 = xla_tuple %s8, %s9, %s10
  %s12 = sld [smem:[#allocation0]]
  $region62: #{lstm_domain_transfer_forward.1} parent=0
    _
  %s14 = ssub.s32 1, %s12
  %s15 = scalar_select 0, %s14, %s12
  $region1: #{lstm_domain_transfer_forward.1} parent=0
    #allocation2 [shape = 'u8[524288]{0}', space=vmem, size = 0x80000, scoped, tag = 'input window, operand 2, single buffered']
    #allocation3 [shape = 's32[1]{0}', space=sflag, size = 0x4, scoped, tag = 'scoped memory for lstm_domain_transfer_forward.1']
    #allocation4 [shape = 's32[1]{0}', space=sflag, size = 0x4, scoped, tag = 'scoped memory for lstm_domain_transfer_forward.1']
    #allocation5 [shape = 'u8[512]{0}', space=vmem, size = 0x400, scoped, tag = 'output window, operand 2, single buffered']
    %16 = vsyncpa [#allocation3], 0
    %17 = vsyncpa [#allocation4], 0
    // Predicated region
    $region2: #{lstm_domain_transfer_forward.1} parent=1 // pred_check
      _
    $region3: #{lstm_domain_transfer_forward.1} parent=1 // pred_check_branch
      %19 = sbr.rel (0) target = $region5
    $region4: #{lstm_domain_transfer_forward.1} parent=1 // pred_region
      _
    $region5: #{lstm_domain_transfer_forward.1} parent=1 // pred_fallthru
      _
    // Predicated region
    $region6: #{lstm_domain_transfer_forward.1} parent=1 // pred_check
      _
    $region7: #{lstm_domain_transfer_forward.1} parent=1 // pred_check_branch
      %21 = sbr.rel (0) target = $region9
    $region8: #{lstm_domain_transfer_forward.1} parent=1 // pred_region
      _
    $region9: #{lstm_domain_transfer_forward.1} parent=1 // pred_fallthru
      _
    // Predicated region
    $region10: #{lstm_domain_transfer_forward.1} parent=1 // pred_check
      _
    $region11: #{lstm_domain_transfer_forward.1} parent=1 // pred_check_branch
      %23 = sbr.rel (0) target = $region13
    $region12: #{lstm_domain_transfer_forward.1} parent=1 // pred_region
      %s25 = ssub.s32 16384, 16384
      %26 = vsyncadd [#allocation3], %s25
      %s27 = sshll.u32 [#allocation2], 4
      %s28 = int_to_ptr.vmem [resolvable:$true] %s27
      %33 = dma.hbm_to_vmem [thread:$0]  %s2, 16384, %s28, [#allocation3], 512, 512, 32
    $region13: #{lstm_domain_transfer_forward.1} parent=1 // pred_fallthru
      _
    // Predicated region
    $region14: #{lstm_domain_transfer_forward.1} parent=1 // pred_check
      _
    $region15: #{lstm_domain_transfer_forward.1} parent=1 // pred_check_branch
      %35 = sbr.rel (0) target = $region17
    $region16: #{lstm_domain_transfer_forward.1} parent=1 // pred_region
      _
    $region17: #{lstm_domain_transfer_forward.1} parent=1 // pred_fallthru
      _
    // Predicated region
    $region18: #{lstm_domain_transfer_forward.1} parent=1 // pred_check
      _
    $region19: #{lstm_domain_transfer_forward.1} parent=1 // pred_check_branch
      %37 = sbr.rel (0) target = $region21
    $region20: #{lstm_domain_transfer_forward.1} parent=1 // pred_region
      _
    $region21: #{lstm_domain_transfer_forward.1} parent=1 // pred_fallthru
      _
    // Predicated region
    $region22: #{lstm_domain_transfer_forward.1} parent=1 // pred_check
      _
    $region23: #{lstm_domain_transfer_forward.1} parent=1 // pred_check_branch
      %39 = sbr.rel (0) target = $region25
    $region24: #{lstm_domain_transfer_forward.1} parent=1 // pred_region
      _
    $region25: #{lstm_domain_transfer_forward.1} parent=1 // pred_fallthru
      _
    // Predicated region
    $region26: #{lstm_domain_transfer_forward.1} parent=1 // pred_check
      _
    $region27: #{lstm_domain_transfer_forward.1} parent=1 // pred_check_branch
      %41 = sbr.rel (0) target = $region29
    $region28: #{lstm_domain_transfer_forward.1} parent=1 // pred_region
      _
    $region29: #{lstm_domain_transfer_forward.1} parent=1 // pred_fallthru
      _
    // Predicated region
    $region30: #{lstm_domain_transfer_forward.1} parent=1 // pred_check
      _
    $region31: #{lstm_domain_transfer_forward.1} parent=1 // pred_check_branch
      %43 = sbr.rel (0) target = $region33
    $region32: #{lstm_domain_transfer_forward.1} parent=1 // pred_region
      _
    $region33: #{lstm_domain_transfer_forward.1} parent=1 // pred_fallthru
      _
    // Predicated region
    $region34: #{lstm_domain_transfer_forward.1} parent=1 // pred_check
      _
    $region35: #{lstm_domain_transfer_forward.1} parent=1 // pred_check_branch
      %45 = sbr.rel (0) target = $region37
    $region36: #{lstm_domain_transfer_forward.1} parent=1 // pred_region
      %46 = dma.done [#allocation3], 16384
    $region37: #{lstm_domain_transfer_forward.1} parent=1 // pred_fallthru
      _
    %v48 = vld [vmem:[%s0] sm:$0xf]
    %v49 = vld [vmem:[%s1] sm:$0xff]
    %v50 = vld [vmem:[%s1 + $0x8] sm:$0xff]
    %v51 = vld [vmem:[%s1 + $0x10] sm:$0xff]
    %v52 = vld [vmem:[%s1 + $0x18] sm:$0xff]
    %v53 = vld [vmem:[%s1 + $0x20] sm:$0xff]
    %v54 = vld [vmem:[%s1 + $0x28] sm:$0xff]
    %v55 = vld [vmem:[%s1 + $0x30] sm:$0xff]
    %v56 = vld [vmem:[%s1 + $0x38] sm:$0xff]
    %v57 = vld [vmem:[%s1 + $0x40] sm:$0xff]
    %v58 = vld [vmem:[%s1 + $0x48] sm:$0xff]
    %v59 = vld [vmem:[%s1 + $0x50] sm:$0xff]
    %v60 = vld [vmem:[%s1 + $0x58] sm:$0xff]
    %v61 = vld [vmem:[%s1 + $0x60] sm:$0xff]
    %v62 = vld [vmem:[%s1 + $0x68] sm:$0xff]
    %v63 = vld [vmem:[%s1 + $0x70] sm:$0xff]
    %v64 = vld [vmem:[%s1 + $0x78] sm:$0xff]
    %v65 = vld [vmem:[%s3] sm:$0xff]
    %v67 = vlaneseq
    %v68 = vshrl.u32 %v67, 7
    %v69 = vsub.s32 0, %v68
    %v70 = vrot.slane %v65, %v69
    %v71 = vlaneseq
    %v72 = vshrl.u32 %v71, 7
    %v73 = vsub.s32 1, %v72
    %v74 = vrot.slane %v65, %v73
    %v75 = vlaneseq
    %v76 = vshrl.u32 %v75, 7
    %v77 = vsub.s32 2, %v76
    %v78 = vrot.slane %v65, %v77
    %v79 = vlaneseq
    %v80 = vshrl.u32 %v79, 7
    %v81 = vsub.s32 3, %v80
    %v82 = vrot.slane %v65, %v81
    %v83 = vlaneseq
    %v84 = vshrl.u32 %v83, 7
    %v85 = vsub.s32 4, %v84
    %v86 = vrot.slane %v65, %v85
    %v87 = vlaneseq
    %v88 = vshrl.u32 %v87, 7
    %v89 = vsub.s32 5, %v88
    %v90 = vrot.slane %v65, %v89
    %v91 = vlaneseq
    %v92 = vshrl.u32 %v91, 7
    %v93 = vsub.s32 6, %v92
    %v94 = vrot.slane %v65, %v93
    %v95 = vlaneseq
    %v96 = vshrl.u32 %v95, 7
    %v97 = vsub.s32 7, %v96
    %v98 = vrot.slane %v65, %v97
    %v123 = vunpack.c.l.b16 %v49
    %v124 = vunpack.c.h.b16 %v49
    %v125 = vunpack.c.l.b16 %v50
    %v126 = vunpack.c.h.b16 %v50
    %v127 = vunpack.c.l.b16 %v51
    %v128 = vunpack.c.h.b16 %v51
    %v129 = vunpack.c.l.b16 %v52
    %v130 = vunpack.c.h.b16 %v52
    %v131 = vunpack.c.l.b16 %v53
    %v132 = vunpack.c.h.b16 %v53
    %v133 = vunpack.c.l.b16 %v54
    %v134 = vunpack.c.h.b16 %v54
    %v135 = vunpack.c.l.b16 %v55
    %v136 = vunpack.c.h.b16 %v55
    %v137 = vunpack.c.l.b16 %v56
    %v138 = vunpack.c.h.b16 %v56
    %v139 = vunpack.c.l.b16 %v57
    %v140 = vunpack.c.h.b16 %v57
    %v141 = vunpack.c.l.b16 %v58
    %v142 = vunpack.c.h.b16 %v58
    %v143 = vunpack.c.l.b16 %v59
    %v144 = vunpack.c.h.b16 %v59
    %v145 = vunpack.c.l.b16 %v60
    %v146 = vunpack.c.h.b16 %v60
    %v147 = vunpack.c.l.b16 %v61
    %v148 = vunpack.c.h.b16 %v61
    %v149 = vunpack.c.l.b16 %v62
    %v150 = vunpack.c.h.b16 %v62
    %v151 = vunpack.c.l.b16 %v63
    %v152 = vunpack.c.h.b16 %v63
    %v153 = vunpack.c.l.b16 %v64
    %v154 = vunpack.c.h.b16 %v64
    %v155 = vpack.c.b16 %v131, %v123
    %v156 = vpack.c.b16 %v132, %v124
    %v157 = vpack.c.b16 %v133, %v125
    %v158 = vpack.c.b16 %v134, %v126
    %v159 = vpack.c.b16 %v135, %v127
    %v160 = vpack.c.b16 %v136, %v128
    %v161 = vpack.c.b16 %v137, %v129
    %v162 = vpack.c.b16 %v138, %v130
    %v163 = vpack.c.b16 %v147, %v139
    %v164 = vpack.c.b16 %v148, %v140
    %v165 = vpack.c.b16 %v149, %v141
    %v166 = vpack.c.b16 %v150, %v142
    %v167 = vpack.c.b16 %v151, %v143
    %v168 = vpack.c.b16 %v152, %v144
    %v169 = vpack.c.b16 %v153, %v145
    %v170 = vpack.c.b16 %v154, %v146
    %vm187 = vcmask 261120
    %v189 = vsel %vm187, %v48, 0
    %191 = vmatprep.subr.bf16.mxu0 0
    %192 = vmatpush1.bf16.msra.mxu0 0
    %193 = vmatprep.subr.bf16.mxu0 0
    %194 = vmatpush1.bf16.msra.mxu0 0
    %195 = vmatprep.subr.bf16.mxu0 0
    %196 = vmatpush1.bf16.msra.mxu0 0
    %197 = vmatprep.subr.bf16.mxu0 0
    %198 = vmatpush1.bf16.msra.mxu0 0
    %199 = vmatprep.subr.bf16.mxu0 0
    %200 = vmatpush1.bf16.msra.mxu0 0
    %201 = vmatprep.subr.bf16.mxu0 0
    %202 = vmatpush1.bf16.msra.mxu0 0
    %203 = vmatprep.subr.bf16.mxu0 %v164
    %204 = vmatpush1.bf16.msra.mxu0 %v163
    %205 = vmatprep.subr.bf16.mxu0 %v156
    %206 = vmatpush1.bf16.msra.mxu0 %v155
    %207 = vmatprep.subr.bf16.mxu0 0
    %208 = vmatpush2.bf16.msra.mxu0 0
    %209 = vmatprep.subr.bf16.mxu0 0
    %210 = vmatpush2.bf16.msra.mxu0 0
    %211 = vmatprep.subr.bf16.mxu0 0
    %212 = vmatpush2.bf16.msra.mxu0 0
    %213 = vmatprep.subr.bf16.mxu0 0
    %214 = vmatpush2.bf16.msra.mxu0 0
    %215 = vmatprep.subr.bf16.mxu0 0
    %216 = vmatpush2.bf16.msra.mxu0 0
    %217 = vmatprep.subr.bf16.mxu0 0
    %218 = vmatpush2.bf16.msra.mxu0 0
    %219 = vmatprep.subr.bf16.mxu0 0
    %220 = vmatpush2.bf16.msra.mxu0 0
    %221 = vmatprep.subr.bf16.mxu0 0
    %222 = vmatpush2.bf16.msra.mxu0 0
    %223 = vmatprep.mubr.bf16.mxu0 0
    %224 = vmatmul.mubr.bf16.gmra.mxu0 %v189
    %v225 = vpop.f32.mrf.mxu0
    %v226 = vadd.f32 %v70, %v225
    %v227 = vpop.f32.mrf.mxu0
    %v228 = vadd.f32 %v74, %v227
    %v229 = vpop.f32.mrf.mxu0
    %v230 = vpop.f32.mrf.mxu0
    %231 = vdwg.mxu0
    %232 = vmatprep.subr.bf16.mxu0 0
    %233 = vmatpush1.bf16.msra.mxu0 0
    %234 = vmatprep.subr.bf16.mxu0 0
    %235 = vmatpush1.bf16.msra.mxu0 0
    %236 = vmatprep.subr.bf16.mxu0 0
    %237 = vmatpush1.bf16.msra.mxu0 0
    %238 = vmatprep.subr.bf16.mxu0 0
    %239 = vmatpush1.bf16.msra.mxu0 0
    %240 = vmatprep.subr.bf16.mxu0 0
    %241 = vmatpush1.bf16.msra.mxu0 0
    %242 = vmatprep.subr.bf16.mxu0 0
    %243 = vmatpush1.bf16.msra.mxu0 0
    %244 = vmatprep.subr.bf16.mxu0 %v166
    %245 = vmatpush1.bf16.msra.mxu0 %v165
    %246 = vmatprep.subr.bf16.mxu0 %v158
    %247 = vmatpush1.bf16.msra.mxu0 %v157
    %248 = vmatprep.subr.bf16.mxu0 0
    %249 = vmatpush2.bf16.msra.mxu0 0
    %250 = vmatprep.subr.bf16.mxu0 0
    %251 = vmatpush2.bf16.msra.mxu0 0
    %252 = vmatprep.subr.bf16.mxu0 0
    %253 = vmatpush2.bf16.msra.mxu0 0
    %254 = vmatprep.subr.bf16.mxu0 0
    %255 = vmatpush2.bf16.msra.mxu0 0
    %256 = vmatprep.subr.bf16.mxu0 0
    %257 = vmatpush2.bf16.msra.mxu0 0
    %258 = vmatprep.subr.bf16.mxu0 0
    %259 = vmatpush2.bf16.msra.mxu0 0
    %260 = vmatprep.subr.bf16.mxu0 0
    %261 = vmatpush2.bf16.msra.mxu0 0
    %262 = vmatprep.subr.bf16.mxu0 0
    %263 = vmatpush2.bf16.msra.mxu0 0
    %264 = vmatprep.mubr.bf16.mxu0 0
    %265 = vmatmul.mubr.bf16.gmra.mxu0 %v189
    %v266 = vpop.f32.mrf.mxu0
    %v267 = vadd.f32 %v78, %v266
    %v268 = vpop.f32.mrf.mxu0
    %v269 = vadd.f32 %v82, %v268
    %v270 = vpop.f32.mrf.mxu0
    %v271 = vpop.f32.mrf.mxu0
    %272 = vdwg.mxu0
    %273 = vmatprep.subr.bf16.mxu0 0
    %274 = vmatpush1.bf16.msra.mxu0 0
    %275 = vmatprep.subr.bf16.mxu0 0
    %276 = vmatpush1.bf16.msra.mxu0 0
    %277 = vmatprep.subr.bf16.mxu0 0
    %278 = vmatpush1.bf16.msra.mxu0 0
    %279 = vmatprep.subr.bf16.mxu0 0
    %280 = vmatpush1.bf16.msra.mxu0 0
    %281 = vmatprep.subr.bf16.mxu0 0
    %282 = vmatpush1.bf16.msra.mxu0 0
    %283 = vmatprep.subr.bf16.mxu0 0
    %284 = vmatpush1.bf16.msra.mxu0 0
    %285 = vmatprep.subr.bf16.mxu0 %v168
    %286 = vmatpush1.bf16.msra.mxu0 %v167
    %287 = vmatprep.subr.bf16.mxu0 %v160
    %288 = vmatpush1.bf16.msra.mxu0 %v159
    %289 = vmatprep.subr.bf16.mxu0 0
    %290 = vmatpush2.bf16.msra.mxu0 0
    %291 = vmatprep.subr.bf16.mxu0 0
    %292 = vmatpush2.bf16.msra.mxu0 0
    %293 = vmatprep.subr.bf16.mxu0 0
    %294 = vmatpush2.bf16.msra.mxu0 0
    %295 = vmatprep.subr.bf16.mxu0 0
    %296 = vmatpush2.bf16.msra.mxu0 0
    %297 = vmatprep.subr.bf16.mxu0 0
    %298 = vmatpush2.bf16.msra.mxu0 0
    %299 = vmatprep.subr.bf16.mxu0 0
    %300 = vmatpush2.bf16.msra.mxu0 0
    %301 = vmatprep.subr.bf16.mxu0 0
    %302 = vmatpush2.bf16.msra.mxu0 0
    %303 = vmatprep.subr.bf16.mxu0 0
    %304 = vmatpush2.bf16.msra.mxu0 0
    %305 = vmatprep.mubr.bf16.mxu0 0
    %306 = vmatmul.mubr.bf16.gmra.mxu0 %v189
    %v307 = vpop.f32.mrf.mxu0
    %v308 = vadd.f32 %v86, %v307
    %v309 = vpop.f32.mrf.mxu0
    %v310 = vadd.f32 %v90, %v309
    %v311 = vpop.f32.mrf.mxu0
    %v312 = vpop.f32.mrf.mxu0
    %313 = vdwg.mxu0
    %314 = vmatprep.subr.bf16.mxu0 0
    %315 = vmatpush1.bf16.msra.mxu0 0
    %316 = vmatprep.subr.bf16.mxu0 0
    %317 = vmatpush1.bf16.msra.mxu0 0
    %318 = vmatprep.subr.bf16.mxu0 0
    %319 = vmatpush1.bf16.msra.mxu0 0
    %320 = vmatprep.subr.bf16.mxu0 0
    %321 = vmatpush1.bf16.msra.mxu0 0
    %322 = vmatprep.subr.bf16.mxu0 0
    %323 = vmatpush1.bf16.msra.mxu0 0
    %324 = vmatprep.subr.bf16.mxu0 0
    %325 = vmatpush1.bf16.msra.mxu0 0
    %326 = vmatprep.subr.bf16.mxu0 %v170
    %327 = vmatpush1.bf16.msra.mxu0 %v169
    %328 = vmatprep.subr.bf16.mxu0 %v162
    %329 = vmatpush1.bf16.msra.mxu0 %v161
    %330 = vmatprep.subr.bf16.mxu0 0
    %331 = vmatpush2.bf16.msra.mxu0 0
    %332 = vmatprep.subr.bf16.mxu0 0
    %333 = vmatpush2.bf16.msra.mxu0 0
    %334 = vmatprep.subr.bf16.mxu0 0
    %335 = vmatpush2.bf16.msra.mxu0 0
    %336 = vmatprep.subr.bf16.mxu0 0
    %337 = vmatpush2.bf16.msra.mxu0 0
    %338 = vmatprep.subr.bf16.mxu0 0
    %339 = vmatpush2.bf16.msra.mxu0 0
    %340 = vmatprep.subr.bf16.mxu0 0
    %341 = vmatpush2.bf16.msra.mxu0 0
    %342 = vmatprep.subr.bf16.mxu0 0
    %343 = vmatpush2.bf16.msra.mxu0 0
    %344 = vmatprep.subr.bf16.mxu0 0
    %345 = vmatpush2.bf16.msra.mxu0 0
    %346 = vmatprep.mubr.bf16.mxu0 0
    %347 = vmatmul.mubr.bf16.gmra.mxu0 %v189
    %v348 = vpop.f32.mrf.mxu0
    %v349 = vadd.f32 %v94, %v348
    %v350 = vpop.f32.mrf.mxu0
    %v351 = vadd.f32 %v98, %v350
    %v352 = vpop.f32.mrf.mxu0
    %v353 = vpop.f32.mrf.mxu0
    %354 = vdwg.mxu0
    %v355 = vld [vmem:[#allocation2] sm:$0xff]
    %v356 = vld [vmem:[#allocation2 + $0x8] sm:$0xff]
    %v357 = vld [vmem:[#allocation2 + $0x10] sm:$0xff]
    %v358 = vld [vmem:[#allocation2 + $0x18] sm:$0xff]
    %v359 = vld [vmem:[#allocation2 + $0x20] sm:$0xff]
    %v360 = vld [vmem:[#allocation2 + $0x28] sm:$0xff]
    %v361 = vld [vmem:[#allocation2 + $0x30] sm:$0xff]
    %v362 = vld [vmem:[#allocation2 + $0x38] sm:$0xff]
    %v363 = vld [vmem:[#allocation2 + $0x40] sm:$0xff]
    %v364 = vld [vmem:[#allocation2 + $0x48] sm:$0xff]
    %v365 = vld [vmem:[#allocation2 + $0x50] sm:$0xff]
    %v366 = vld [vmem:[#allocation2 + $0x58] sm:$0xff]
    %v367 = vld [vmem:[#allocation2 + $0x60] sm:$0xff]
    %v368 = vld [vmem:[#allocation2 + $0x68] sm:$0xff]
    %v369 = vld [vmem:[#allocation2 + $0x70] sm:$0xff]
    %v370 = vld [vmem:[#allocation2 + $0x78] sm:$0xff]
    %v371 = vld [vmem:[#allocation2 + $0x80] sm:$0xff]
    %v372 = vld [vmem:[#allocation2 + $0x88] sm:$0xff]
    %v373 = vld [vmem:[#allocation2 + $0x90] sm:$0xff]
    %v374 = vld [vmem:[#allocation2 + $0x98] sm:$0xff]
    %v375 = vld [vmem:[#allocation2 + $0xa0] sm:$0xff]
    %v376 = vld [vmem:[#allocation2 + $0xa8] sm:$0xff]
    %v377 = vld [vmem:[#allocation2 + $0xb0] sm:$0xff]
    %v378 = vld [vmem:[#allocation2 + $0xb8] sm:$0xff]
    %v379 = vld [vmem:[#allocation2 + $0xc0] sm:$0xff]
    %v380 = vld [vmem:[#allocation2 + $0xc8] sm:$0xff]
    %v381 = vld [vmem:[#allocation2 + $0xd0] sm:$0xff]
    %v382 = vld [vmem:[#allocation2 + $0xd8] sm:$0xff]
    %v383 = vld [vmem:[#allocation2 + $0xe0] sm:$0xff]
    %v384 = vld [vmem:[#allocation2 + $0xe8] sm:$0xff]
    %v385 = vld [vmem:[#allocation2 + $0xf0] sm:$0xff]
    %v386 = vld [vmem:[#allocation2 + $0xf8] sm:$0xff]
    %v387 = vld [vmem:[#allocation2 + $0x100] sm:$0xff]
    %v388 = vld [vmem:[#allocation2 + $0x108] sm:$0xff]
    %v389 = vld [vmem:[#allocation2 + $0x110] sm:$0xff]
    %v390 = vld [vmem:[#allocation2 + $0x118] sm:$0xff]
    %v391 = vld [vmem:[#allocation2 + $0x120] sm:$0xff]
    %v392 = vld [vmem:[#allocation2 + $0x128] sm:$0xff]
    %v393 = vld [vmem:[#allocation2 + $0x130] sm:$0xff]
    %v394 = vld [vmem:[#allocation2 + $0x138] sm:$0xff]
    %v395 = vld [vmem:[#allocation2 + $0x140] sm:$0xff]
    %v396 = vld [vmem:[#allocation2 + $0x148] sm:$0xff]
    %v397 = vld [vmem:[#allocation2 + $0x150] sm:$0xff]
    %v398 = vld [vmem:[#allocation2 + $0x158] sm:$0xff]
    %v399 = vld [vmem:[#allocation2 + $0x160] sm:$0xff]
    %v400 = vld [vmem:[#allocation2 + $0x168] sm:$0xff]
    %v401 = vld [vmem:[#allocation2 + $0x170] sm:$0xff]
    %v402 = vld [vmem:[#allocation2 + $0x178] sm:$0xff]
    %v403 = vld [vmem:[#allocation2 + $0x180] sm:$0xff]
    %v404 = vld [vmem:[#allocation2 + $0x188] sm:$0xff]
    %v405 = vld [vmem:[#allocation2 + $0x190] sm:$0xff]
    %v406 = vld [vmem:[#allocation2 + $0x198] sm:$0xff]
    %v407 = vld [vmem:[#allocation2 + $0x1a0] sm:$0xff]
    %v408 = vld [vmem:[#allocation2 + $0x1a8] sm:$0xff]
    %v409 = vld [vmem:[#allocation2 + $0x1b0] sm:$0xff]
    %v410 = vld [vmem:[#allocation2 + $0x1b8] sm:$0xff]
    %v411 = vld [vmem:[#allocation2 + $0x1c0] sm:$0xff]
    %v412 = vld [vmem:[#allocation2 + $0x1c8] sm:$0xff]
    %v413 = vld [vmem:[#allocation2 + $0x1d0] sm:$0xff]
    %v414 = vld [vmem:[#allocation2 + $0x1d8] sm:$0xff]
    %v415 = vld [vmem:[#allocation2 + $0x1e0] sm:$0xff]
    %v416 = vld [vmem:[#allocation2 + $0x1e8] sm:$0xff]
    %v417 = vld [vmem:[#allocation2 + $0x1f0] sm:$0xff]
    %v418 = vld [vmem:[#allocation2 + $0x1f8] sm:$0xff]
    %v419 = vld [vmem:[#allocation2 + $0x200] sm:$0xff]
    %v420 = vld [vmem:[#allocation2 + $0x208] sm:$0xff]
    %v421 = vld [vmem:[#allocation2 + $0x210] sm:$0xff]
    %v422 = vld [vmem:[#allocation2 + $0x218] sm:$0xff]
    %v423 = vld [vmem:[#allocation2 + $0x220] sm:$0xff]
    %v424 = vld [vmem:[#allocation2 + $0x228] sm:$0xff]
    %v425 = vld [vmem:[#allocation2 + $0x230] sm:$0xff]
    %v426 = vld [vmem:[#allocation2 + $0x238] sm:$0xff]
    %v427 = vld [vmem:[#allocation2 + $0x240] sm:$0xff]
    %v428 = vld [vmem:[#allocation2 + $0x248] sm:$0xff]
    %v429 = vld [vmem:[#allocation2 + $0x250] sm:$0xff]
    %v430 = vld [vmem:[#allocation2 + $0x258] sm:$0xff]
    %v431 = vld [vmem:[#allocation2 + $0x260] sm:$0xff]
    %v432 = vld [vmem:[#allocation2 + $0x268] sm:$0xff]
    %v433 = vld [vmem:[#allocation2 + $0x270] sm:$0xff]
    %v434 = vld [vmem:[#allocation2 + $0x278] sm:$0xff]
    %v435 = vld [vmem:[#allocation2 + $0x280] sm:$0xff]
    %v436 = vld [vmem:[#allocation2 + $0x288] sm:$0xff]
    %v437 = vld [vmem:[#allocation2 + $0x290] sm:$0xff]
    %v438 = vld [vmem:[#allocation2 + $0x298] sm:$0xff]
    %v439 = vld [vmem:[#allocation2 + $0x2a0] sm:$0xff]
    %v440 = vld [vmem:[#allocation2 + $0x2a8] sm:$0xff]
    %v441 = vld [vmem:[#allocation2 + $0x2b0] sm:$0xff]
    %v442 = vld [vmem:[#allocation2 + $0x2b8] sm:$0xff]
    %v443 = vld [vmem:[#allocation2 + $0x2c0] sm:$0xff]
    %v444 = vld [vmem:[#allocation2 + $0x2c8] sm:$0xff]
    %v445 = vld [vmem:[#allocation2 + $0x2d0] sm:$0xff]
    %v446 = vld [vmem:[#allocation2 + $0x2d8] sm:$0xff]
    %v447 = vld [vmem:[#allocation2 + $0x2e0] sm:$0xff]
    %v448 = vld [vmem:[#allocation2 + $0x2e8] sm:$0xff]
    %v449 = vld [vmem:[#allocation2 + $0x2f0] sm:$0xff]
    %v450 = vld [vmem:[#allocation2 + $0x2f8] sm:$0xff]
    %v451 = vld [vmem:[#allocation2 + $0x300] sm:$0xff]
    %v452 = vld [vmem:[#allocation2 + $0x308] sm:$0xff]
    %v453 = vld [vmem:[#allocation2 + $0x310] sm:$0xff]
    %v454 = vld [vmem:[#allocation2 + $0x318] sm:$0xff]
    %v455 = vld [vmem:[#allocation2 + $0x320] sm:$0xff]
    %v456 = vld [vmem:[#allocation2 + $0x328] sm:$0xff]
    %v457 = vld [vmem:[#allocation2 + $0x330] sm:$0xff]
    %v458 = vld [vmem:[#allocation2 + $0x338] sm:$0xff]
    %v459 = vld [vmem:[#allocation2 + $0x340] sm:$0xff]
    %v460 = vld [vmem:[#allocation2 + $0x348] sm:$0xff]
    %v461 = vld [vmem:[#allocation2 + $0x350] sm:$0xff]
    %v462 = vld [vmem:[#allocation2 + $0x358] sm:$0xff]
    %v463 = vld [vmem:[#allocation2 + $0x360] sm:$0xff]
    %v464 = vld [vmem:[#allocation2 + $0x368] sm:$0xff]
    %v465 = vld [vmem:[#allocation2 + $0x370] sm:$0xff]
    %v466 = vld [vmem:[#allocation2 + $0x378] sm:$0xff]
    %v467 = vld [vmem:[#allocation2 + $0x380] sm:$0xff]
    %v468 = vld [vmem:[#allocation2 + $0x388] sm:$0xff]
    %v469 = vld [vmem:[#allocation2 + $0x390] sm:$0xff]
    %v470 = vld [vmem:[#allocation2 + $0x398] sm:$0xff]
    %v471 = vld [vmem:[#allocation2 + $0x3a0] sm:$0xff]
    %v472 = vld [vmem:[#allocation2 + $0x3a8] sm:$0xff]
    %v473 = vld [vmem:[#allocation2 + $0x3b0] sm:$0xff]
    %v474 = vld [vmem:[#allocation2 + $0x3b8] sm:$0xff]
    %v475 = vld [vmem:[#allocation2 + $0x3c0] sm:$0xff]
    %v476 = vld [vmem:[#allocation2 + $0x3c8] sm:$0xff]
    %v477 = vld [vmem:[#allocation2 + $0x3d0] sm:$0xff]
    %v478 = vld [vmem:[#allocation2 + $0x3d8] sm:$0xff]
    %v479 = vld [vmem:[#allocation2 + $0x3e0] sm:$0xff]
    %v480 = vld [vmem:[#allocation2 + $0x3e8] sm:$0xff]
    %v481 = vld [vmem:[#allocation2 + $0x3f0] sm:$0xff]
    %v482 = vld [vmem:[#allocation2 + $0x3f8] sm:$0xff]
    %v483 = vld [vmem:[%s4] sm:$0x3]
    %v484 = vld [vmem:[%s5] sm:$0x3]
    %v486 = vlaneseq
    %v487 = vshrl.u32 %v486, 7
    %v488 = vsub.s32 0, %v487
    %v489 = vrot.slane %v483, %v488
    %v490 = vlaneseq
    %v491 = vshrl.u32 %v490, 7
    %v492 = vsub.s32 1, %v491
    %v493 = vrot.slane %v483, %v492
    %v496 = vpack.c.bf16 %v489, %v489
    %v497 = vpack.c.bf16 %v493, %v493
    %v626 = vunpack.c.l.b16 %v355
    %v627 = vunpack.c.h.b16 %v355
    %v628 = vunpack.c.l.b16 %v356
    %v629 = vunpack.c.h.b16 %v356
    %v630 = vunpack.c.l.b16 %v357
    %v631 = vunpack.c.h.b16 %v357
    %v632 = vunpack.c.l.b16 %v358
    %v633 = vunpack.c.h.b16 %v358
    %v634 = vunpack.c.l.b16 %v359
    %v635 = vunpack.c.h.b16 %v359
    %v636 = vunpack.c.l.b16 %v360
    %v637 = vunpack.c.h.b16 %v360
    %v638 = vunpack.c.l.b16 %v361
    %v639 = vunpack.c.h.b16 %v361
    %v640 = vunpack.c.l.b16 %v362
    %v641 = vunpack.c.h.b16 %v362
    %v642 = vunpack.c.l.b16 %v363
    %v643 = vunpack.c.h.b16 %v363
    %v644 = vunpack.c.l.b16 %v364
    %v645 = vunpack.c.h.b16 %v364
    %v646 = vunpack.c.l.b16 %v365
    %v647 = vunpack.c.h.b16 %v365
    %v648 = vunpack.c.l.b16 %v366
    %v649 = vunpack.c.h.b16 %v366
    %v650 = vunpack.c.l.b16 %v367
    %v651 = vunpack.c.h.b16 %v367
    %v652 = vunpack.c.l.b16 %v368
    %v653 = vunpack.c.h.b16 %v368
    %v654 = vunpack.c.l.b16 %v369
    %v655 = vunpack.c.h.b16 %v369
    %v656 = vunpack.c.l.b16 %v370
    %v657 = vunpack.c.h.b16 %v370
    %v658 = vunpack.c.l.b16 %v371
    %v659 = vunpack.c.h.b16 %v371
    %v660 = vunpack.c.l.b16 %v372
    %v661 = vunpack.c.h.b16 %v372
    %v662 = vunpack.c.l.b16 %v373
    %v663 = vunpack.c.h.b16 %v373
    %v664 = vunpack.c.l.b16 %v374
    %v665 = vunpack.c.h.b16 %v374
    %v666 = vunpack.c.l.b16 %v375
    %v667 = vunpack.c.h.b16 %v375
    %v668 = vunpack.c.l.b16 %v376
    %v669 = vunpack.c.h.b16 %v376
    %v670 = vunpack.c.l.b16 %v377
    %v671 = vunpack.c.h.b16 %v377
    %v672 = vunpack.c.l.b16 %v378
    %v673 = vunpack.c.h.b16 %v378
    %v674 = vunpack.c.l.b16 %v379
    %v675 = vunpack.c.h.b16 %v379
    %v676 = vunpack.c.l.b16 %v380
    %v677 = vunpack.c.h.b16 %v380
    %v678 = vunpack.c.l.b16 %v381
    %v679 = vunpack.c.h.b16 %v381
    %v680 = vunpack.c.l.b16 %v382
    %v681 = vunpack.c.h.b16 %v382
    %v682 = vunpack.c.l.b16 %v383
    %v683 = vunpack.c.h.b16 %v383
    %v684 = vunpack.c.l.b16 %v384
    %v685 = vunpack.c.h.b16 %v384
    %v686 = vunpack.c.l.b16 %v385
    %v687 = vunpack.c.h.b16 %v385
    %v688 = vunpack.c.l.b16 %v386
    %v689 = vunpack.c.h.b16 %v386
    %v690 = vunpack.c.l.b16 %v387
    %v691 = vunpack.c.h.b16 %v387
    %v692 = vunpack.c.l.b16 %v388
    %v693 = vunpack.c.h.b16 %v388
    %v694 = vunpack.c.l.b16 %v389
    %v695 = vunpack.c.h.b16 %v389
    %v696 = vunpack.c.l.b16 %v390
    %v697 = vunpack.c.h.b16 %v390
    %v698 = vunpack.c.l.b16 %v391
    %v699 = vunpack.c.h.b16 %v391
    %v700 = vunpack.c.l.b16 %v392
    %v701 = vunpack.c.h.b16 %v392
    %v702 = vunpack.c.l.b16 %v393
    %v703 = vunpack.c.h.b16 %v393
    %v704 = vunpack.c.l.b16 %v394
    %v705 = vunpack.c.h.b16 %v394
    %v706 = vunpack.c.l.b16 %v395
    %v707 = vunpack.c.h.b16 %v395
    %v708 = vunpack.c.l.b16 %v396
    %v709 = vunpack.c.h.b16 %v396
    %v710 = vunpack.c.l.b16 %v397
    %v711 = vunpack.c.h.b16 %v397
    %v712 = vunpack.c.l.b16 %v398
    %v713 = vunpack.c.h.b16 %v398
    %v714 = vunpack.c.l.b16 %v399
    %v715 = vunpack.c.h.b16 %v399
    %v716 = vunpack.c.l.b16 %v400
    %v717 = vunpack.c.h.b16 %v400
    %v718 = vunpack.c.l.b16 %v401
    %v719 = vunpack.c.h.b16 %v401
    %v720 = vunpack.c.l.b16 %v402
    %v721 = vunpack.c.h.b16 %v402
    %v722 = vunpack.c.l.b16 %v403
    %v723 = vunpack.c.h.b16 %v403
    %v724 = vunpack.c.l.b16 %v404
    %v725 = vunpack.c.h.b16 %v404
    %v726 = vunpack.c.l.b16 %v405
    %v727 = vunpack.c.h.b16 %v405
    %v728 = vunpack.c.l.b16 %v406
    %v729 = vunpack.c.h.b16 %v406
    %v730 = vunpack.c.l.b16 %v407
    %v731 = vunpack.c.h.b16 %v407
    %v732 = vunpack.c.l.b16 %v408
    %v733 = vunpack.c.h.b16 %v408
    %v734 = vunpack.c.l.b16 %v409
    %v735 = vunpack.c.h.b16 %v409
    %v736 = vunpack.c.l.b16 %v410
    %v737 = vunpack.c.h.b16 %v410
    %v738 = vunpack.c.l.b16 %v411
    %v739 = vunpack.c.h.b16 %v411
    %v740 = vunpack.c.l.b16 %v412
    %v741 = vunpack.c.h.b16 %v412
    %v742 = vunpack.c.l.b16 %v413
    %v743 = vunpack.c.h.b16 %v413
    %v744 = vunpack.c.l.b16 %v414
    %v745 = vunpack.c.h.b16 %v414
    %v746 = vunpack.c.l.b16 %v415
    %v747 = vunpack.c.h.b16 %v415
    %v748 = vunpack.c.l.b16 %v416
    %v749 = vunpack.c.h.b16 %v416
    %v750 = vunpack.c.l.b16 %v417
    %v751 = vunpack.c.h.b16 %v417
    %v752 = vunpack.c.l.b16 %v418
    %v753 = vunpack.c.h.b16 %v418
    %v754 = vunpack.c.l.b16 %v419
    %v755 = vunpack.c.h.b16 %v419
    %v756 = vunpack.c.l.b16 %v420
    %v757 = vunpack.c.h.b16 %v420
    %v758 = vunpack.c.l.b16 %v421
    %v759 = vunpack.c.h.b16 %v421
    %v760 = vunpack.c.l.b16 %v422
    %v761 = vunpack.c.h.b16 %v422
    %v762 = vunpack.c.l.b16 %v423
    %v763 = vunpack.c.h.b16 %v423
    %v764 = vunpack.c.l.b16 %v424
    %v765 = vunpack.c.h.b16 %v424
    %v766 = vunpack.c.l.b16 %v425
    %v767 = vunpack.c.h.b16 %v425
    %v768 = vunpack.c.l.b16 %v426
    %v769 = vunpack.c.h.b16 %v426
    %v770 = vunpack.c.l.b16 %v427
    %v771 = vunpack.c.h.b16 %v427
    %v772 = vunpack.c.l.b16 %v428
    %v773 = vunpack.c.h.b16 %v428
    %v774 = vunpack.c.l.b16 %v429
    %v775 = vunpack.c.h.b16 %v429
    %v776 = vunpack.c.l.b16 %v430
    %v777 = vunpack.c.h.b16 %v430
    %v778 = vunpack.c.l.b16 %v431
    %v779 = vunpack.c.h.b16 %v431
    %v780 = vunpack.c.l.b16 %v432
    %v781 = vunpack.c.h.b16 %v432
    %v782 = vunpack.c.l.b16 %v433
    %v783 = vunpack.c.h.b16 %v433
    %v784 = vunpack.c.l.b16 %v434
    %v785 = vunpack.c.h.b16 %v434
    %v786 = vunpack.c.l.b16 %v435
    %v787 = vunpack.c.h.b16 %v435
    %v788 = vunpack.c.l.b16 %v436
    %v789 = vunpack.c.h.b16 %v436
    %v790 = vunpack.c.l.b16 %v437
    %v791 = vunpack.c.h.b16 %v437
    %v792 = vunpack.c.l.b16 %v438
    %v793 = vunpack.c.h.b16 %v438
    %v794 = vunpack.c.l.b16 %v439
    %v795 = vunpack.c.h.b16 %v439
    %v796 = vunpack.c.l.b16 %v440
    %v797 = vunpack.c.h.b16 %v440
    %v798 = vunpack.c.l.b16 %v441
    %v799 = vunpack.c.h.b16 %v441
    %v800 = vunpack.c.l.b16 %v442
    %v801 = vunpack.c.h.b16 %v442
    %v802 = vunpack.c.l.b16 %v443
    %v803 = vunpack.c.h.b16 %v443
    %v804 = vunpack.c.l.b16 %v444
    %v805 = vunpack.c.h.b16 %v444
    %v806 = vunpack.c.l.b16 %v445
    %v807 = vunpack.c.h.b16 %v445
    %v808 = vunpack.c.l.b16 %v446
    %v809 = vunpack.c.h.b16 %v446
    %v810 = vunpack.c.l.b16 %v447
    %v811 = vunpack.c.h.b16 %v447
    %v812 = vunpack.c.l.b16 %v448
    %v813 = vunpack.c.h.b16 %v448
    %v814 = vunpack.c.l.b16 %v449
    %v815 = vunpack.c.h.b16 %v449
    %v816 = vunpack.c.l.b16 %v450
    %v817 = vunpack.c.h.b16 %v450
    %v818 = vunpack.c.l.b16 %v451
    %v819 = vunpack.c.h.b16 %v451
    %v820 = vunpack.c.l.b16 %v452
    %v821 = vunpack.c.h.b16 %v452
    %v822 = vunpack.c.l.b16 %v453
    %v823 = vunpack.c.h.b16 %v453
    %v824 = vunpack.c.l.b16 %v454
    %v825 = vunpack.c.h.b16 %v454
    %v826 = vunpack.c.l.b16 %v455
    %v827 = vunpack.c.h.b16 %v455
    %v828 = vunpack.c.l.b16 %v456
    %v829 = vunpack.c.h.b16 %v456
    %v830 = vunpack.c.l.b16 %v457
    %v831 = vunpack.c.h.b16 %v457
    %v832 = vunpack.c.l.b16 %v458
    %v833 = vunpack.c.h.b16 %v458
    %v834 = vunpack.c.l.b16 %v459
    %v835 = vunpack.c.h.b16 %v459
    %v836 = vunpack.c.l.b16 %v460
    %v837 = vunpack.c.h.b16 %v460
    %v838 = vunpack.c.l.b16 %v461
    %v839 = vunpack.c.h.b16 %v461
    %v840 = vunpack.c.l.b16 %v462
    %v841 = vunpack.c.h.b16 %v462
    %v842 = vunpack.c.l.b16 %v463
    %v843 = vunpack.c.h.b16 %v463
    %v844 = vunpack.c.l.b16 %v464
    %v845 = vunpack.c.h.b16 %v464
    %v846 = vunpack.c.l.b16 %v465
    %v847 = vunpack.c.h.b16 %v465
    %v848 = vunpack.c.l.b16 %v466
    %v849 = vunpack.c.h.b16 %v466
    %v850 = vunpack.c.l.b16 %v467
    %v851 = vunpack.c.h.b16 %v467
    %v852 = vunpack.c.l.b16 %v468
    %v853 = vunpack.c.h.b16 %v468
    %v854 = vunpack.c.l.b16 %v469
    %v855 = vunpack.c.h.b16 %v469
    %v856 = vunpack.c.l.b16 %v470
    %v857 = vunpack.c.h.b16 %v470
    %v858 = vunpack.c.l.b16 %v471
    %v859 = vunpack.c.h.b16 %v471
    %v860 = vunpack.c.l.b16 %v472
    %v861 = vunpack.c.h.b16 %v472
    %v862 = vunpack.c.l.b16 %v473
    %v863 = vunpack.c.h.b16 %v473
    %v864 = vunpack.c.l.b16 %v474
    %v865 = vunpack.c.h.b16 %v474
    %v866 = vunpack.c.l.b16 %v475
    %v867 = vunpack.c.h.b16 %v475
    %v868 = vunpack.c.l.b16 %v476
    %v869 = vunpack.c.h.b16 %v476
    %v870 = vunpack.c.l.b16 %v477
    %v871 = vunpack.c.h.b16 %v477
    %v872 = vunpack.c.l.b16 %v478
    %v873 = vunpack.c.h.b16 %v478
    %v874 = vunpack.c.l.b16 %v479
    %v875 = vunpack.c.h.b16 %v479
    %v876 = vunpack.c.l.b16 %v480
    %v877 = vunpack.c.h.b16 %v480
    %v878 = vunpack.c.l.b16 %v481
    %v879 = vunpack.c.h.b16 %v481
    %v880 = vunpack.c.l.b16 %v482
    %v881 = vunpack.c.h.b16 %v482
    %v882 = vpack.c.b16 %v634, %v626
    %v883 = vpack.c.b16 %v635, %v627
    %v884 = vpack.c.b16 %v636, %v628
    %v885 = vpack.c.b16 %v637, %v629
    %v886 = vpack.c.b16 %v638, %v630
    %v887 = vpack.c.b16 %v639, %v631
    %v888 = vpack.c.b16 %v640, %v632
    %v889 = vpack.c.b16 %v641, %v633
    %v890 = vpack.c.b16 %v650, %v642
    %v891 = vpack.c.b16 %v651, %v643
    %v892 = vpack.c.b16 %v652, %v644
    %v893 = vpack.c.b16 %v653, %v645
    %v894 = vpack.c.b16 %v654, %v646
    %v895 = vpack.c.b16 %v655, %v647
    %v896 = vpack.c.b16 %v656, %v648
    %v897 = vpack.c.b16 %v657, %v649
    %v898 = vpack.c.b16 %v666, %v658
    %v899 = vpack.c.b16 %v667, %v659
    %v900 = vpack.c.b16 %v668, %v660
    %v901 = vpack.c.b16 %v669, %v661
    %v902 = vpack.c.b16 %v670, %v662
    %v903 = vpack.c.b16 %v671, %v663
    %v904 = vpack.c.b16 %v672, %v664
    %v905 = vpack.c.b16 %v673, %v665
    %v906 = vpack.c.b16 %v682, %v674
    %v907 = vpack.c.b16 %v683, %v675
    %v908 = vpack.c.b16 %v684, %v676
    %v909 = vpack.c.b16 %v685, %v677
    %v910 = vpack.c.b16 %v686, %v678
    %v911 = vpack.c.b16 %v687, %v679
    %v912 = vpack.c.b16 %v688, %v680
    %v913 = vpack.c.b16 %v689, %v681
    %v914 = vpack.c.b16 %v698, %v690
    %v915 = vpack.c.b16 %v699, %v691
    %v916 = vpack.c.b16 %v700, %v692
    %v917 = vpack.c.b16 %v701, %v693
    %v918 = vpack.c.b16 %v702, %v694
    %v919 = vpack.c.b16 %v703, %v695
    %v920 = vpack.c.b16 %v704, %v696
    %v921 = vpack.c.b16 %v705, %v697
    %v922 = vpack.c.b16 %v714, %v706
    %v923 = vpack.c.b16 %v715, %v707
    %v924 = vpack.c.b16 %v716, %v708
    %v925 = vpack.c.b16 %v717, %v709
    %v926 = vpack.c.b16 %v718, %v710
    %v927 = vpack.c.b16 %v719, %v711
    %v928 = vpack.c.b16 %v720, %v712
    %v929 = vpack.c.b16 %v721, %v713
    %v930 = vpack.c.b16 %v730, %v722
    %v931 = vpack.c.b16 %v731, %v723
    %v932 = vpack.c.b16 %v732, %v724
    %v933 = vpack.c.b16 %v733, %v725
    %v934 = vpack.c.b16 %v734, %v726
    %v935 = vpack.c.b16 %v735, %v727
    %v936 = vpack.c.b16 %v736, %v728
    %v937 = vpack.c.b16 %v737, %v729
    %v938 = vpack.c.b16 %v746, %v738
    %v939 = vpack.c.b16 %v747, %v739
    %v940 = vpack.c.b16 %v748, %v740
    %v941 = vpack.c.b16 %v749, %v741
    %v942 = vpack.c.b16 %v750, %v742
    %v943 = vpack.c.b16 %v751, %v743
    %v944 = vpack.c.b16 %v752, %v744
    %v945 = vpack.c.b16 %v753, %v745
    %v946 = vpack.c.b16 %v762, %v754
    %v947 = vpack.c.b16 %v763, %v755
    %v948 = vpack.c.b16 %v764, %v756
    %v949 = vpack.c.b16 %v765, %v757
    %v950 = vpack.c.b16 %v766, %v758
    %v951 = vpack.c.b16 %v767, %v759
    %v952 = vpack.c.b16 %v768, %v760
    %v953 = vpack.c.b16 %v769, %v761
    %v954 = vpack.c.b16 %v778, %v770
    %v955 = vpack.c.b16 %v779, %v771
    %v956 = vpack.c.b16 %v780, %v772
    %v957 = vpack.c.b16 %v781, %v773
    %v958 = vpack.c.b16 %v782, %v774
    %v959 = vpack.c.b16 %v783, %v775
    %v960 = vpack.c.b16 %v784, %v776
    %v961 = vpack.c.b16 %v785, %v777
    %v962 = vpack.c.b16 %v794, %v786
    %v963 = vpack.c.b16 %v795, %v787
    %v964 = vpack.c.b16 %v796, %v788
    %v965 = vpack.c.b16 %v797, %v789
    %v966 = vpack.c.b16 %v798, %v790
    %v967 = vpack.c.b16 %v799, %v791
    %v968 = vpack.c.b16 %v800, %v792
    %v969 = vpack.c.b16 %v801, %v793
    %v970 = vpack.c.b16 %v810, %v802
    %v971 = vpack.c.b16 %v811, %v803
    %v972 = vpack.c.b16 %v812, %v804
    %v973 = vpack.c.b16 %v813, %v805
    %v974 = vpack.c.b16 %v814, %v806
    %v975 = vpack.c.b16 %v815, %v807
    %v976 = vpack.c.b16 %v816, %v808
    %v977 = vpack.c.b16 %v817, %v809
    %v978 = vpack.c.b16 %v826, %v818
    %v979 = vpack.c.b16 %v827, %v819
    %v980 = vpack.c.b16 %v828, %v820
    %v981 = vpack.c.b16 %v829, %v821
    %v982 = vpack.c.b16 %v830, %v822
    %v983 = vpack.c.b16 %v831, %v823
    %v984 = vpack.c.b16 %v832, %v824
    %v985 = vpack.c.b16 %v833, %v825
    %v986 = vpack.c.b16 %v842, %v834
    %v987 = vpack.c.b16 %v843, %v835
    %v988 = vpack.c.b16 %v844, %v836
    %v989 = vpack.c.b16 %v845, %v837
    %v990 = vpack.c.b16 %v846, %v838
    %v991 = vpack.c.b16 %v847, %v839
    %v992 = vpack.c.b16 %v848, %v840
    %v993 = vpack.c.b16 %v849, %v841
    %v994 = vpack.c.b16 %v858, %v850
    %v995 = vpack.c.b16 %v859, %v851
    %v996 = vpack.c.b16 %v860, %v852
    %v997 = vpack.c.b16 %v861, %v853
    %v998 = vpack.c.b16 %v862, %v854
    %v999 = vpack.c.b16 %v863, %v855
    %v1000 = vpack.c.b16 %v864, %v856
    %v1001 = vpack.c.b16 %v865, %v857
    %v1002 = vpack.c.b16 %v874, %v866
    %v1003 = vpack.c.b16 %v875, %v867
    %v1004 = vpack.c.b16 %v876, %v868
    %v1005 = vpack.c.b16 %v877, %v869
    %v1006 = vpack.c.b16 %v878, %v870
    %v1007 = vpack.c.b16 %v879, %v871
    %v1008 = vpack.c.b16 %v880, %v872
    %v1009 = vpack.c.b16 %v881, %v873
    %1138 = vmatprep.subr.bf16.mxu0 %v939
    %1139 = vmatpush1.bf16.msra.mxu0 %v938
    %1140 = vmatprep.subr.bf16.mxu0 %v931
    %1141 = vmatpush1.bf16.msra.mxu0 %v930
    %1142 = vmatprep.subr.bf16.mxu0 %v923
    %1143 = vmatpush1.bf16.msra.mxu0 %v922
    %1144 = vmatprep.subr.bf16.mxu0 %v915
    %1145 = vmatpush1.bf16.msra.mxu0 %v914
    %1146 = vmatprep.subr.bf16.mxu0 %v907
    %1147 = vmatpush1.bf16.msra.mxu0 %v906
    %1148 = vmatprep.subr.bf16.mxu0 %v899
    %1149 = vmatpush1.bf16.msra.mxu0 %v898
    %1150 = vmatprep.subr.bf16.mxu0 %v891
    %1151 = vmatpush1.bf16.msra.mxu0 %v890
    %1152 = vmatprep.subr.bf16.mxu0 %v883
    %1153 = vmatpush1.bf16.msra.mxu0 %v882
    %1154 = vmatprep.subr.bf16.mxu0 %v1003
    %1155 = vmatpush2.bf16.msra.mxu0 %v1002
    %1156 = vmatprep.subr.bf16.mxu0 %v995
    %1157 = vmatpush2.bf16.msra.mxu0 %v994
    %1158 = vmatprep.subr.bf16.mxu0 %v987
    %1159 = vmatpush2.bf16.msra.mxu0 %v986
    %1160 = vmatprep.subr.bf16.mxu0 %v979
    %1161 = vmatpush2.bf16.msra.mxu0 %v978
    %1162 = vmatprep.subr.bf16.mxu0 %v971
    %1163 = vmatpush2.bf16.msra.mxu0 %v970
    %1164 = vmatprep.subr.bf16.mxu0 %v963
    %1165 = vmatpush2.bf16.msra.mxu0 %v962
    %1166 = vmatprep.subr.bf16.mxu0 %v955
    %1167 = vmatpush2.bf16.msra.mxu0 %v954
    %1168 = vmatprep.subr.bf16.mxu0 %v947
    %1169 = vmatpush2.bf16.msra.mxu0 %v946
    %1170 = vmatprep.mubr.bf16.mxu0 %v497
    %1171 = vmatmul.mubr.bf16.gmra.mxu0 %v496
    %v1172 = vpop.f32.mrf.mxu0
    %v1173 = vadd.f32 0.0, %v1172
    %v1174 = vpop.f32.mrf.mxu0
    %v1175 = vadd.f32 0.0, %v1174
    %v1176 = vpop.f32.mrf.mxu0
    %v1177 = vpop.f32.mrf.mxu0
    %1178 = vdwg.mxu0
    %1179 = vmatprep.subr.bf16.mxu0 %v941
    %1180 = vmatpush1.bf16.msra.mxu0 %v940
    %1181 = vmatprep.subr.bf16.mxu0 %v933
    %1182 = vmatpush1.bf16.msra.mxu0 %v932
    %1183 = vmatprep.subr.bf16.mxu0 %v925
    %1184 = vmatpush1.bf16.msra.mxu0 %v924
    %1185 = vmatprep.subr.bf16.mxu0 %v917
    %1186 = vmatpush1.bf16.msra.mxu0 %v916
    %1187 = vmatprep.subr.bf16.mxu0 %v909
    %1188 = vmatpush1.bf16.msra.mxu0 %v908
    %1189 = vmatprep.subr.bf16.mxu0 %v901
    %1190 = vmatpush1.bf16.msra.mxu0 %v900
    %1191 = vmatprep.subr.bf16.mxu0 %v893
    %1192 = vmatpush1.bf16.msra.mxu0 %v892
    %1193 = vmatprep.subr.bf16.mxu0 %v885
    %1194 = vmatpush1.bf16.msra.mxu0 %v884
    %1195 = vmatprep.subr.bf16.mxu0 %v1005
    %1196 = vmatpush2.bf16.msra.mxu0 %v1004
    %1197 = vmatprep.subr.bf16.mxu0 %v997
    %1198 = vmatpush2.bf16.msra.mxu0 %v996
    %1199 = vmatprep.subr.bf16.mxu0 %v989
    %1200 = vmatpush2.bf16.msra.mxu0 %v988
    %1201 = vmatprep.subr.bf16.mxu0 %v981
    %1202 = vmatpush2.bf16.msra.mxu0 %v980
    %1203 = vmatprep.subr.bf16.mxu0 %v973
    %1204 = vmatpush2.bf16.msra.mxu0 %v972
    %1205 = vmatprep.subr.bf16.mxu0 %v965
    %1206 = vmatpush2.bf16.msra.mxu0 %v964
    %1207 = vmatprep.subr.bf16.mxu0 %v957
    %1208 = vmatpush2.bf16.msra.mxu0 %v956
    %1209 = vmatprep.subr.bf16.mxu0 %v949
    %1210 = vmatpush2.bf16.msra.mxu0 %v948
    %1211 = vmatprep.mubr.bf16.mxu0 %v497
    %1212 = vmatmul.mubr.bf16.gmra.mxu0 %v496
    %v1213 = vpop.f32.mrf.mxu0
    %v1214 = vadd.f32 0.0, %v1213
    %v1215 = vpop.f32.mrf.mxu0
    %v1216 = vadd.f32 0.0, %v1215
    %v1217 = vpop.f32.mrf.mxu0
    %v1218 = vpop.f32.mrf.mxu0
    %1219 = vdwg.mxu0
    %1220 = vmatprep.subr.bf16.mxu0 %v943
    %1221 = vmatpush1.bf16.msra.mxu0 %v942
    %1222 = vmatprep.subr.bf16.mxu0 %v935
    %1223 = vmatpush1.bf16.msra.mxu0 %v934
    %1224 = vmatprep.subr.bf16.mxu0 %v927
    %1225 = vmatpush1.bf16.msra.mxu0 %v926
    %1226 = vmatprep.subr.bf16.mxu0 %v919
    %1227 = vmatpush1.bf16.msra.mxu0 %v918
    %1228 = vmatprep.subr.bf16.mxu0 %v911
    %1229 = vmatpush1.bf16.msra.mxu0 %v910
    %1230 = vmatprep.subr.bf16.mxu0 %v903
    %1231 = vmatpush1.bf16.msra.mxu0 %v902
    %1232 = vmatprep.subr.bf16.mxu0 %v895
    %1233 = vmatpush1.bf16.msra.mxu0 %v894
    %1234 = vmatprep.subr.bf16.mxu0 %v887
    %1235 = vmatpush1.bf16.msra.mxu0 %v886
    %1236 = vmatprep.subr.bf16.mxu0 %v1007
    %1237 = vmatpush2.bf16.msra.mxu0 %v1006
    %1238 = vmatprep.subr.bf16.mxu0 %v999
    %1239 = vmatpush2.bf16.msra.mxu0 %v998
    %1240 = vmatprep.subr.bf16.mxu0 %v991
    %1241 = vmatpush2.bf16.msra.mxu0 %v990
    %1242 = vmatprep.subr.bf16.mxu0 %v983
    %1243 = vmatpush2.bf16.msra.mxu0 %v982
    %1244 = vmatprep.subr.bf16.mxu0 %v975
    %1245 = vmatpush2.bf16.msra.mxu0 %v974
    %1246 = vmatprep.subr.bf16.mxu0 %v967
    %1247 = vmatpush2.bf16.msra.mxu0 %v966
    %1248 = vmatprep.subr.bf16.mxu0 %v959
    %1249 = vmatpush2.bf16.msra.mxu0 %v958
    %1250 = vmatprep.subr.bf16.mxu0 %v951
    %1251 = vmatpush2.bf16.msra.mxu0 %v950
    %1252 = vmatprep.mubr.bf16.mxu0 %v497
    %1253 = vmatmul.mubr.bf16.gmra.mxu0 %v496
    %v1254 = vpop.f32.mrf.mxu0
    %v1255 = vadd.f32 0.0, %v1254
    %v1256 = vpop.f32.mrf.mxu0
    %v1257 = vadd.f32 0.0, %v1256
    %v1258 = vpop.f32.mrf.mxu0
    %v1259 = vpop.f32.mrf.mxu0
    %1260 = vdwg.mxu0
    %1261 = vmatprep.subr.bf16.mxu0 %v945
    %1262 = vmatpush1.bf16.msra.mxu0 %v944
    %1263 = vmatprep.subr.bf16.mxu0 %v937
    %1264 = vmatpush1.bf16.msra.mxu0 %v936
    %1265 = vmatprep.subr.bf16.mxu0 %v929
    %1266 = vmatpush1.bf16.msra.mxu0 %v928
    %1267 = vmatprep.subr.bf16.mxu0 %v921
    %1268 = vmatpush1.bf16.msra.mxu0 %v920
    %1269 = vmatprep.subr.bf16.mxu0 %v913
    %1270 = vmatpush1.bf16.msra.mxu0 %v912
    %1271 = vmatprep.subr.bf16.mxu0 %v905
    %1272 = vmatpush1.bf16.msra.mxu0 %v904
    %1273 = vmatprep.subr.bf16.mxu0 %v897
    %1274 = vmatpush1.bf16.msra.mxu0 %v896
    %1275 = vmatprep.subr.bf16.mxu0 %v889
    %1276 = vmatpush1.bf16.msra.mxu0 %v888
    %1277 = vmatprep.subr.bf16.mxu0 %v1009
    %1278 = vmatpush2.bf16.msra.mxu0 %v1008
    %1279 = vmatprep.subr.bf16.mxu0 %v1001
    %1280 = vmatpush2.bf16.msra.mxu0 %v1000
    %1281 = vmatprep.subr.bf16.mxu0 %v993
    %1282 = vmatpush2.bf16.msra.mxu0 %v992
    %1283 = vmatprep.subr.bf16.mxu0 %v985
    %1284 = vmatpush2.bf16.msra.mxu0 %v984
    %1285 = vmatprep.subr.bf16.mxu0 %v977
    %1286 = vmatpush2.bf16.msra.mxu0 %v976
    %1287 = vmatprep.subr.bf16.mxu0 %v969
    %1288 = vmatpush2.bf16.msra.mxu0 %v968
    %1289 = vmatprep.subr.bf16.mxu0 %v961
    %1290 = vmatpush2.bf16.msra.mxu0 %v960
    %1291 = vmatprep.subr.bf16.mxu0 %v953
    %1292 = vmatpush2.bf16.msra.mxu0 %v952
    %1293 = vmatprep.mubr.bf16.mxu0 %v497
    %1294 = vmatmul.mubr.bf16.gmra.mxu0 %v496
    %v1295 = vpop.f32.mrf.mxu0
    %v1296 = vadd.f32 0.0, %v1295
    %v1297 = vpop.f32.mrf.mxu0
    %v1298 = vadd.f32 0.0, %v1297
    %v1299 = vpop.f32.mrf.mxu0
    %v1300 = vpop.f32.mrf.mxu0
    %1301 = vdwg.mxu0
    %v1302 = vadd.f32 %v226, %v1173
    %v1303 = vadd.f32 %v228, %v1175
    %v1304 = vadd.f32 %v267, %v1214
    %v1305 = vadd.f32 %v269, %v1216
    %v1306 = vadd.f32 %v308, %v1255
    %v1307 = vadd.f32 %v310, %v1257
    %v1308 = vadd.f32 %v349, %v1296
    %v1309 = vadd.f32 %v351, %v1298
    %v1310 = vxor.u32 %v1302, 2147483648
    %v1311 = vxor.u32 %v1303, 2147483648
    %v1312 = vmul.f32 %v1310, 1.442695
    %v1313 = vpow.pop %v1312
    %v1314 = vmul.f32 %v1311, 1.442695
    %v1315 = vpow.pop %v1314
    %v1316 = vadd.f32 %v1313, 1.0
    %v1317 = vadd.f32 %v1315, 1.0
    %v1318 = vrcp.pop %v1316
    %v1319 = vmul.f32 1.0, %v1318
    %v1320 = vrcp.pop %v1317
    %v1321 = vmul.f32 1.0, %v1320
    %v1322 = vxor.u32 %v1304, 2147483648
    %v1323 = vxor.u32 %v1305, 2147483648
    %v1324 = vmul.f32 %v1322, 1.442695
    %v1325 = vpow.pop %v1324
    %v1326 = vmul.f32 %v1323, 1.442695
    %v1327 = vpow.pop %v1326
    %v1328 = vadd.f32 %v1325, 1.0
    %v1329 = vadd.f32 %v1327, 1.0
    %v1330 = vrcp.pop %v1328
    %v1331 = vmul.f32 1.0, %v1330
    %v1332 = vrcp.pop %v1329
    %v1333 = vmul.f32 1.0, %v1332
    %v1334 = vtanh.pop %v1306
    %v1335 = vtanh.pop %v1307
    %v1336 = vxor.u32 %v1308, 2147483648
    %v1337 = vxor.u32 %v1309, 2147483648
    %v1338 = vmul.f32 %v1336, 1.442695
    %v1339 = vpow.pop %v1338
    %v1340 = vmul.f32 %v1337, 1.442695
    %v1341 = vpow.pop %v1340
    %v1342 = vadd.f32 %v1339, 1.0
    %v1343 = vadd.f32 %v1341, 1.0
    %v1344 = vrcp.pop %v1342
    %v1345 = vmul.f32 1.0, %v1344
    %v1346 = vrcp.pop %v1343
    %v1347 = vmul.f32 1.0, %v1346
    %v1349 = vlaneseq
    %v1350 = vshrl.u32 %v1349, 7
    %v1351 = vsub.s32 0, %v1350
    %v1352 = vrot.slane %v484, %v1351
    %v1353 = vlaneseq
    %v1354 = vshrl.u32 %v1353, 7
    %v1355 = vsub.s32 1, %v1354
    %v1356 = vrot.slane %v484, %v1355
    %v1359 = vmul.f32 %v1331, %v1352
    %v1360 = vmul.f32 %v1333, %v1356
    %v1361 = vmul.f32 %v1319, %v1334
    %v1362 = vmul.f32 %v1321, %v1335
    %v1363 = vadd.f32 %v1359, %v1361
    %v1364 = vadd.f32 %v1360, %v1362
    %v1365 = vtanh.pop %v1363
    %v1366 = vtanh.pop %v1364
    %v1367 = vmul.f32 %v1345, %v1365
    %v1368 = vmul.f32 %v1347, %v1366
    %v1369 = vadd.f32 %v1367, 0.0
    %v1370 = vadd.f32 %v1368, 0.0
    %v1373 = vcombine.low %v1367, %v1368
    %v1375 = vunpack.c.l.s4 1966171168
    %v1376 = vunpack.c.0.s8 %v1375
    %v1377 = vlaneseq
    %v1378 = vshrl.u32 %v1377, 7
    %v1379 = vsub.s32 %v1376, %v1378
    %v1380 = vrot.slane %v1373, %v1379
    %v1382 = vunpack.c.l.s4 1966171168
    %v1383 = vunpack.c.0.s8 %v1382
    %v1384 = vlaneseq
    %v1385 = vshrl.u32 %v1384, 7
    %v1386 = vsub.s32 %v1383, %v1385
    %v1387 = vrot.slane %v1380, %v1386
    %v1389 = vlaneseq
    %vm1390 = vcmp.ge.s32.totalorder %v1389, 0
    %vm1391 = vcmp.lt.s32.totalorder %v1389, 256
    %vm1392 = vmand %vm1390, %vm1391
    %1393 = vst.msk [vmem:[%s8] ss:$8 sm:$0x3] %vm1392, %v1387
    %1394 = vst.msk [vmem:[%s8] ss:$8 sm:$0x0] %vm1392, %v1387
    %v1395 = vpack.c.bf16 %v1367, %v1367
    %v1396 = vpack.c.bf16 %v1368, %v1368
    %1397 = vmatprep.subr.bf16.mxu0 %v939
    %1398 = vmatpush1.bf16.msra.mxu0 %v938
    %1399 = vmatprep.subr.bf16.mxu0 %v931
    %1400 = vmatpush1.bf16.msra.mxu0 %v930
    %1401 = vmatprep.subr.bf16.mxu0 %v923
    %1402 = vmatpush1.bf16.msra.mxu0 %v922
    %1403 = vmatprep.subr.bf16.mxu0 %v915
    %1404 = vmatpush1.bf16.msra.mxu0 %v914
    %1405 = vmatprep.subr.bf16.mxu0 %v907
    %1406 = vmatpush1.bf16.msra.mxu0 %v906
    %1407 = vmatprep.subr.bf16.mxu0 %v899
    %1408 = vmatpush1.bf16.msra.mxu0 %v898
    %1409 = vmatprep.subr.bf16.mxu0 %v891
    %1410 = vmatpush1.bf16.msra.mxu0 %v890
    %1411 = vmatprep.subr.bf16.mxu0 %v883
    %1412 = vmatpush1.bf16.msra.mxu0 %v882
    %1413 = vmatprep.subr.bf16.mxu0 %v1003
    %1414 = vmatpush2.bf16.msra.mxu0 %v1002
    %1415 = vmatprep.subr.bf16.mxu0 %v995
    %1416 = vmatpush2.bf16.msra.mxu0 %v994
    %1417 = vmatprep.subr.bf16.mxu0 %v987
    %1418 = vmatpush2.bf16.msra.mxu0 %v986
    %1419 = vmatprep.subr.bf16.mxu0 %v979
    %1420 = vmatpush2.bf16.msra.mxu0 %v978
    %1421 = vmatprep.subr.bf16.mxu0 %v971
    %1422 = vmatpush2.bf16.msra.mxu0 %v970
    %1423 = vmatprep.subr.bf16.mxu0 %v963
    %1424 = vmatpush2.bf16.msra.mxu0 %v962
    %1425 = vmatprep.subr.bf16.mxu0 %v955
    %1426 = vmatpush2.bf16.msra.mxu0 %v954
    %1427 = vmatprep.subr.bf16.mxu0 %v947
    %1428 = vmatpush2.bf16.msra.mxu0 %v946
    %1429 = vmatprep.mubr.bf16.mxu0 %v1396
    %1430 = vmatmul.mubr.bf16.gmra.mxu0 %v1395
    %v1431 = vpop.f32.mrf.mxu0
    %v1432 = vadd.f32 0.0, %v1431
    %v1433 = vpop.f32.mrf.mxu0
    %v1434 = vadd.f32 0.0, %v1433
    %v1435 = vpop.f32.mrf.mxu0
    %v1436 = vpop.f32.mrf.mxu0
    %1437 = vdwg.mxu0
    %1438 = vmatprep.subr.bf16.mxu0 %v941
    %1439 = vmatpush1.bf16.msra.mxu0 %v940
    %1440 = vmatprep.subr.bf16.mxu0 %v933
    %1441 = vmatpush1.bf16.msra.mxu0 %v932
    %1442 = vmatprep.subr.bf16.mxu0 %v925
    %1443 = vmatpush1.bf16.msra.mxu0 %v924
    %1444 = vmatprep.subr.bf16.mxu0 %v917
    %1445 = vmatpush1.bf16.msra.mxu0 %v916
    %1446 = vmatprep.subr.bf16.mxu0 %v909
    %1447 = vmatpush1.bf16.msra.mxu0 %v908
    %1448 = vmatprep.subr.bf16.mxu0 %v901
    %1449 = vmatpush1.bf16.msra.mxu0 %v900
    %1450 = vmatprep.subr.bf16.mxu0 %v893
    %1451 = vmatpush1.bf16.msra.mxu0 %v892
    %1452 = vmatprep.subr.bf16.mxu0 %v885
    %1453 = vmatpush1.bf16.msra.mxu0 %v884
    %1454 = vmatprep.subr.bf16.mxu0 %v1005
    %1455 = vmatpush2.bf16.msra.mxu0 %v1004
    %1456 = vmatprep.subr.bf16.mxu0 %v997
    %1457 = vmatpush2.bf16.msra.mxu0 %v996
    %1458 = vmatprep.subr.bf16.mxu0 %v989
    %1459 = vmatpush2.bf16.msra.mxu0 %v988
    %1460 = vmatprep.subr.bf16.mxu0 %v981
    %1461 = vmatpush2.bf16.msra.mxu0 %v980
    %1462 = vmatprep.subr.bf16.mxu0 %v973
    %1463 = vmatpush2.bf16.msra.mxu0 %v972
    %1464 = vmatprep.subr.bf16.mxu0 %v965
    %1465 = vmatpush2.bf16.msra.mxu0 %v964
    %1466 = vmatprep.subr.bf16.mxu0 %v957
    %1467 = vmatpush2.bf16.msra.mxu0 %v956
    %1468 = vmatprep.subr.bf16.mxu0 %v949
    %1469 = vmatpush2.bf16.msra.mxu0 %v948
    %1470 = vmatprep.mubr.bf16.mxu0 %v1396
    %1471 = vmatmul.mubr.bf16.gmra.mxu0 %v1395
    %v1472 = vpop.f32.mrf.mxu0
    %v1473 = vadd.f32 0.0, %v1472
    %v1474 = vpop.f32.mrf.mxu0
    %v1475 = vadd.f32 0.0, %v1474
    %v1476 = vpop.f32.mrf.mxu0
    %v1477 = vpop.f32.mrf.mxu0
    %1478 = vdwg.mxu0
    %1479 = vmatprep.subr.bf16.mxu0 %v943
    %1480 = vmatpush1.bf16.msra.mxu0 %v942
    %1481 = vmatprep.subr.bf16.mxu0 %v935
    %1482 = vmatpush1.bf16.msra.mxu0 %v934
    %1483 = vmatprep.subr.bf16.mxu0 %v927
    %1484 = vmatpush1.bf16.msra.mxu0 %v926
    %1485 = vmatprep.subr.bf16.mxu0 %v919
    %1486 = vmatpush1.bf16.msra.mxu0 %v918
    %1487 = vmatprep.subr.bf16.mxu0 %v911
    %1488 = vmatpush1.bf16.msra.mxu0 %v910
    %1489 = vmatprep.subr.bf16.mxu0 %v903
    %1490 = vmatpush1.bf16.msra.mxu0 %v902
    %1491 = vmatprep.subr.bf16.mxu0 %v895
    %1492 = vmatpush1.bf16.msra.mxu0 %v894
    %1493 = vmatprep.subr.bf16.mxu0 %v887
    %1494 = vmatpush1.bf16.msra.mxu0 %v886
    %1495 = vmatprep.subr.bf16.mxu0 %v1007
    %1496 = vmatpush2.bf16.msra.mxu0 %v1006
    %1497 = vmatprep.subr.bf16.mxu0 %v999
    %1498 = vmatpush2.bf16.msra.mxu0 %v998
    %1499 = vmatprep.subr.bf16.mxu0 %v991
    %1500 = vmatpush2.bf16.msra.mxu0 %v990
    %1501 = vmatprep.subr.bf16.mxu0 %v983
    %1502 = vmatpush2.bf16.msra.mxu0 %v982
    %1503 = vmatprep.subr.bf16.mxu0 %v975
    %1504 = vmatpush2.bf16.msra.mxu0 %v974
    %1505 = vmatprep.subr.bf16.mxu0 %v967
    %1506 = vmatpush2.bf16.msra.mxu0 %v966
    %1507 = vmatprep.subr.bf16.mxu0 %v959
    %1508 = vmatpush2.bf16.msra.mxu0 %v958
    %1509 = vmatprep.subr.bf16.mxu0 %v951
    %1510 = vmatpush2.bf16.msra.mxu0 %v950
    %1511 = vmatprep.mubr.bf16.mxu0 %v1396
    %1512 = vmatmul.mubr.bf16.gmra.mxu0 %v1395
    %v1513 = vpop.f32.mrf.mxu0
    %v1514 = vadd.f32 0.0, %v1513
    %v1515 = vpop.f32.mrf.mxu0
    %v1516 = vadd.f32 0.0, %v1515
    %v1517 = vpop.f32.mrf.mxu0
    %v1518 = vpop.f32.mrf.mxu0
    %1519 = vdwg.mxu0
    %1520 = vmatprep.subr.bf16.mxu0 %v945
    %1521 = vmatpush1.bf16.msra.mxu0 %v944
    %1522 = vmatprep.subr.bf16.mxu0 %v937
    %1523 = vmatpush1.bf16.msra.mxu0 %v936
    %1524 = vmatprep.subr.bf16.mxu0 %v929
    %1525 = vmatpush1.bf16.msra.mxu0 %v928
    %1526 = vmatprep.subr.bf16.mxu0 %v921
    %1527 = vmatpush1.bf16.msra.mxu0 %v920
    %1528 = vmatprep.subr.bf16.mxu0 %v913
    %1529 = vmatpush1.bf16.msra.mxu0 %v912
    %1530 = vmatprep.subr.bf16.mxu0 %v905
    %1531 = vmatpush1.bf16.msra.mxu0 %v904
    %1532 = vmatprep.subr.bf16.mxu0 %v897
    %1533 = vmatpush1.bf16.msra.mxu0 %v896
    %1534 = vmatprep.subr.bf16.mxu0 %v889
    %1535 = vmatpush1.bf16.msra.mxu0 %v888
    %1536 = vmatprep.subr.bf16.mxu0 %v1009
    %1537 = vmatpush2.bf16.msra.mxu0 %v1008
    %1538 = vmatprep.subr.bf16.mxu0 %v1001
    %1539 = vmatpush2.bf16.msra.mxu0 %v1000
    %1540 = vmatprep.subr.bf16.mxu0 %v993
    %1541 = vmatpush2.bf16.msra.mxu0 %v992
    %1542 = vmatprep.subr.bf16.mxu0 %v985
    %1543 = vmatpush2.bf16.msra.mxu0 %v984
    %1544 = vmatprep.subr.bf16.mxu0 %v977
    %1545 = vmatpush2.bf16.msra.mxu0 %v976
    %1546 = vmatprep.subr.bf16.mxu0 %v969
    %1547 = vmatpush2.bf16.msra.mxu0 %v968
    %1548 = vmatprep.subr.bf16.mxu0 %v961
    %1549 = vmatpush2.bf16.msra.mxu0 %v960
    %1550 = vmatprep.subr.bf16.mxu0 %v953
    %1551 = vmatpush2.bf16.msra.mxu0 %v952
    %1552 = vmatprep.mubr.bf16.mxu0 %v1396
    %1553 = vmatmul.mubr.bf16.gmra.mxu0 %v1395
    %v1554 = vpop.f32.mrf.mxu0
    %v1555 = vadd.f32 0.0, %v1554
    %v1556 = vpop.f32.mrf.mxu0
    %v1557 = vadd.f32 0.0, %v1556
    %v1558 = vpop.f32.mrf.mxu0
    %v1559 = vpop.f32.mrf.mxu0
    %1560 = vdwg.mxu0
    %v1569 = vrot.slane %v1432, 7
    %v1570 = vrot.slane %v1434, 7
    %v1571 = vrot.slane %v1473, 7
    %v1572 = vrot.slane %v1475, 7
    %v1573 = vrot.slane %v1514, 7
    %v1574 = vrot.slane %v1516, 7
    %v1575 = vrot.slane %v1555, 7
    %v1576 = vrot.slane %v1557, 7
    %v1585 = vadd.f32 %v226, %v1569
    %v1586 = vadd.f32 %v228, %v1570
    %v1587 = vadd.f32 %v267, %v1571
    %v1588 = vadd.f32 %v269, %v1572
    %v1589 = vadd.f32 %v308, %v1573
    %v1590 = vadd.f32 %v310, %v1574
    %v1591 = vadd.f32 %v349, %v1575
    %v1592 = vadd.f32 %v351, %v1576
    %v1593 = vxor.u32 %v1585, 2147483648
    %v1594 = vxor.u32 %v1586, 2147483648
    %v1595 = vmul.f32 %v1593, 1.442695
    %v1596 = vpow.pop %v1595
    %v1597 = vmul.f32 %v1594, 1.442695
    %v1598 = vpow.pop %v1597
    %v1599 = vadd.f32 %v1596, 1.0
    %v1600 = vadd.f32 %v1598, 1.0
    %v1601 = vrcp.pop %v1599
    %v1602 = vmul.f32 1.0, %v1601
    %v1603 = vrcp.pop %v1600
    %v1604 = vmul.f32 1.0, %v1603
    %v1605 = vxor.u32 %v1587, 2147483648
    %v1606 = vxor.u32 %v1588, 2147483648
    %v1607 = vmul.f32 %v1605, 1.442695
    %v1608 = vpow.pop %v1607
    %v1609 = vmul.f32 %v1606, 1.442695
    %v1610 = vpow.pop %v1609
    %v1611 = vadd.f32 %v1608, 1.0
    %v1612 = vadd.f32 %v1610, 1.0
    %v1613 = vrcp.pop %v1611
    %v1614 = vmul.f32 1.0, %v1613
    %v1615 = vrcp.pop %v1612
    %v1616 = vmul.f32 1.0, %v1615
    %v1617 = vtanh.pop %v1589
    %v1618 = vtanh.pop %v1590
    %v1619 = vxor.u32 %v1591, 2147483648
    %v1620 = vxor.u32 %v1592, 2147483648
    %v1621 = vmul.f32 %v1619, 1.442695
    %v1622 = vpow.pop %v1621
    %v1623 = vmul.f32 %v1620, 1.442695
    %v1624 = vpow.pop %v1623
    %v1625 = vadd.f32 %v1622, 1.0
    %v1626 = vadd.f32 %v1624, 1.0
    %v1627 = vrcp.pop %v1625
    %v1628 = vmul.f32 1.0, %v1627
    %v1629 = vrcp.pop %v1626
    %v1630 = vmul.f32 1.0, %v1629
    %v1633 = vrot.slane %v1363, 7
    %v1634 = vrot.slane %v1364, 7
    %v1637 = vmul.f32 %v1614, %v1633
    %v1638 = vmul.f32 %v1616, %v1634
    %v1639 = vmul.f32 %v1602, %v1617
    %v1640 = vmul.f32 %v1604, %v1618
    %v1641 = vadd.f32 %v1637, %v1639
    %v1642 = vadd.f32 %v1638, %v1640
    %v1643 = vtanh.pop %v1641
    %v1644 = vtanh.pop %v1642
    %v1645 = vmul.f32 %v1628, %v1643
    %v1646 = vmul.f32 %v1630, %v1644
    %v1649 = vrot.slane %v1645, 1
    %v1650 = vrot.slane %v1646, 1
    %v1653 = vadd.f32 %v1369, %v1649
    %v1654 = vadd.f32 %v1370, %v1650
    %v1655 = vcombine.low %v1645, %v1646
    %v1657 = vunpack.c.l.s4 1966171168
    %v1658 = vunpack.c.0.s8 %v1657
    %v1659 = vlaneseq
    %v1660 = vshrl.u32 %v1659, 7
    %v1661 = vsub.s32 %v1658, %v1660
    %v1662 = vrot.slane %v1655, %v1661
    %v1663 = vcombine.high %v1662, %v1662
    %v1665 = vunpack.c.l.s4 1966171168
    %v1666 = vunpack.c.0.s8 %v1665
    %v1667 = vlaneseq
    %v1668 = vshrl.u32 %v1667, 7
    %v1669 = vsub.s32 %v1666, %v1668
    %v1670 = vrot.slane %v1663, %v1669
    %s1672 = scalar_lea.vmem %s8, 1
    %1673 = vst.msk [vmem:[%s1672] ss:$8 sm:$0x3] %vm1392, %v1670
    %1674 = vst.msk [vmem:[%s1672] ss:$8 sm:$0x0] %vm1392, %v1670
    %v1675 = vpack.c.bf16 %v1645, %v1645
    %v1676 = vpack.c.bf16 %v1646, %v1646
    %v1678 = vshrl.u32 %v1675, 16
    %v1681 = vshrl.u32 %v1676, 16
    %1685 = vmatprep.subr.bf16.mxu0 %v939
    %1686 = vmatpush1.bf16.msra.mxu0 %v938
    %1687 = vmatprep.subr.bf16.mxu0 %v931
    %1688 = vmatpush1.bf16.msra.mxu0 %v930
    %1689 = vmatprep.subr.bf16.mxu0 %v923
    %1690 = vmatpush1.bf16.msra.mxu0 %v922
    %1691 = vmatprep.subr.bf16.mxu0 %v915
    %1692 = vmatpush1.bf16.msra.mxu0 %v914
    %1693 = vmatprep.subr.bf16.mxu0 %v907
    %1694 = vmatpush1.bf16.msra.mxu0 %v906
    %1695 = vmatprep.subr.bf16.mxu0 %v899
    %1696 = vmatpush1.bf16.msra.mxu0 %v898
    %1697 = vmatprep.subr.bf16.mxu0 %v891
    %1698 = vmatpush1.bf16.msra.mxu0 %v890
    %1699 = vmatprep.subr.bf16.mxu0 %v883
    %1700 = vmatpush1.bf16.msra.mxu0 %v882
    %1701 = vmatprep.subr.bf16.mxu0 %v1003
    %1702 = vmatpush2.bf16.msra.mxu0 %v1002
    %1703 = vmatprep.subr.bf16.mxu0 %v995
    %1704 = vmatpush2.bf16.msra.mxu0 %v994
    %1705 = vmatprep.subr.bf16.mxu0 %v987
    %1706 = vmatpush2.bf16.msra.mxu0 %v986
    %1707 = vmatprep.subr.bf16.mxu0 %v979
    %1708 = vmatpush2.bf16.msra.mxu0 %v978
    %1709 = vmatprep.subr.bf16.mxu0 %v971
    %1710 = vmatpush2.bf16.msra.mxu0 %v970
    %1711 = vmatprep.subr.bf16.mxu0 %v963
    %1712 = vmatpush2.bf16.msra.mxu0 %v962
    %1713 = vmatprep.subr.bf16.mxu0 %v955
    %1714 = vmatpush2.bf16.msra.mxu0 %v954
    %1715 = vmatprep.subr.bf16.mxu0 %v947
    %1716 = vmatpush2.bf16.msra.mxu0 %v946
    %1717 = vmatprep.mubr.bf16.mxu0 %v1681
    %1718 = vmatmul.mubr.bf16.gmra.mxu0 %v1678
    %v1719 = vpop.f32.mrf.mxu0
    %v1720 = vadd.f32 0.0, %v1719
    %v1721 = vpop.f32.mrf.mxu0
    %v1722 = vadd.f32 0.0, %v1721
    %v1723 = vpop.f32.mrf.mxu0
    %v1724 = vpop.f32.mrf.mxu0
    %1725 = vdwg.mxu0
    %1726 = vmatprep.subr.bf16.mxu0 %v941
    %1727 = vmatpush1.bf16.msra.mxu0 %v940
    %1728 = vmatprep.subr.bf16.mxu0 %v933
    %1729 = vmatpush1.bf16.msra.mxu0 %v932
    %1730 = vmatprep.subr.bf16.mxu0 %v925
    %1731 = vmatpush1.bf16.msra.mxu0 %v924
    %1732 = vmatprep.subr.bf16.mxu0 %v917
    %1733 = vmatpush1.bf16.msra.mxu0 %v916
    %1734 = vmatprep.subr.bf16.mxu0 %v909
    %1735 = vmatpush1.bf16.msra.mxu0 %v908
    %1736 = vmatprep.subr.bf16.mxu0 %v901
    %1737 = vmatpush1.bf16.msra.mxu0 %v900
    %1738 = vmatprep.subr.bf16.mxu0 %v893
    %1739 = vmatpush1.bf16.msra.mxu0 %v892
    %1740 = vmatprep.subr.bf16.mxu0 %v885
    %1741 = vmatpush1.bf16.msra.mxu0 %v884
    %1742 = vmatprep.subr.bf16.mxu0 %v1005
    %1743 = vmatpush2.bf16.msra.mxu0 %v1004
    %1744 = vmatprep.subr.bf16.mxu0 %v997
    %1745 = vmatpush2.bf16.msra.mxu0 %v996
    %1746 = vmatprep.subr.bf16.mxu0 %v989
    %1747 = vmatpush2.bf16.msra.mxu0 %v988
    %1748 = vmatprep.subr.bf16.mxu0 %v981
    %1749 = vmatpush2.bf16.msra.mxu0 %v980
    %1750 = vmatprep.subr.bf16.mxu0 %v973
    %1751 = vmatpush2.bf16.msra.mxu0 %v972
    %1752 = vmatprep.subr.bf16.mxu0 %v965
    %1753 = vmatpush2.bf16.msra.mxu0 %v964
    %1754 = vmatprep.subr.bf16.mxu0 %v957
    %1755 = vmatpush2.bf16.msra.mxu0 %v956
    %1756 = vmatprep.subr.bf16.mxu0 %v949
    %1757 = vmatpush2.bf16.msra.mxu0 %v948
    %1758 = vmatprep.mubr.bf16.mxu0 %v1681
    %1759 = vmatmul.mubr.bf16.gmra.mxu0 %v1678
    %v1760 = vpop.f32.mrf.mxu0
    %v1761 = vadd.f32 0.0, %v1760
    %v1762 = vpop.f32.mrf.mxu0
    %v1763 = vadd.f32 0.0, %v1762
    %v1764 = vpop.f32.mrf.mxu0
    %v1765 = vpop.f32.mrf.mxu0
    %1766 = vdwg.mxu0
    %1767 = vmatprep.subr.bf16.mxu0 %v943
    %1768 = vmatpush1.bf16.msra.mxu0 %v942
    %1769 = vmatprep.subr.bf16.mxu0 %v935
    %1770 = vmatpush1.bf16.msra.mxu0 %v934
    %1771 = vmatprep.subr.bf16.mxu0 %v927
    %1772 = vmatpush1.bf16.msra.mxu0 %v926
    %1773 = vmatprep.subr.bf16.mxu0 %v919
    %1774 = vmatpush1.bf16.msra.mxu0 %v918
    %1775 = vmatprep.subr.bf16.mxu0 %v911
    %1776 = vmatpush1.bf16.msra.mxu0 %v910
    %1777 = vmatprep.subr.bf16.mxu0 %v903
    %1778 = vmatpush1.bf16.msra.mxu0 %v902
    %1779 = vmatprep.subr.bf16.mxu0 %v895
    %1780 = vmatpush1.bf16.msra.mxu0 %v894
    %1781 = vmatprep.subr.bf16.mxu0 %v887
    %1782 = vmatpush1.bf16.msra.mxu0 %v886
    %1783 = vmatprep.subr.bf16.mxu0 %v1007
    %1784 = vmatpush2.bf16.msra.mxu0 %v1006
    %1785 = vmatprep.subr.bf16.mxu0 %v999
    %1786 = vmatpush2.bf16.msra.mxu0 %v998
    %1787 = vmatprep.subr.bf16.mxu0 %v991
    %1788 = vmatpush2.bf16.msra.mxu0 %v990
    %1789 = vmatprep.subr.bf16.mxu0 %v983
    %1790 = vmatpush2.bf16.msra.mxu0 %v982
    %1791 = vmatprep.subr.bf16.mxu0 %v975
    %1792 = vmatpush2.bf16.msra.mxu0 %v974
    %1793 = vmatprep.subr.bf16.mxu0 %v967
    %1794 = vmatpush2.bf16.msra.mxu0 %v966
    %1795 = vmatprep.subr.bf16.mxu0 %v959
    %1796 = vmatpush2.bf16.msra.mxu0 %v958
    %1797 = vmatprep.subr.bf16.mxu0 %v951
    %1798 = vmatpush2.bf16.msra.mxu0 %v950
    %1799 = vmatprep.mubr.bf16.mxu0 %v1681
    %1800 = vmatmul.mubr.bf16.gmra.mxu0 %v1678
    %v1801 = vpop.f32.mrf.mxu0
    %v1802 = vadd.f32 0.0, %v1801
    %v1803 = vpop.f32.mrf.mxu0
    %v1804 = vadd.f32 0.0, %v1803
    %v1805 = vpop.f32.mrf.mxu0
    %v1806 = vpop.f32.mrf.mxu0
    %1807 = vdwg.mxu0
    %1808 = vmatprep.subr.bf16.mxu0 %v945
    %1809 = vmatpush1.bf16.msra.mxu0 %v944
    %1810 = vmatprep.subr.bf16.mxu0 %v937
    %1811 = vmatpush1.bf16.msra.mxu0 %v936
    %1812 = vmatprep.subr.bf16.mxu0 %v929
    %1813 = vmatpush1.bf16.msra.mxu0 %v928
    %1814 = vmatprep.subr.bf16.mxu0 %v921
    %1815 = vmatpush1.bf16.msra.mxu0 %v920
    %1816 = vmatprep.subr.bf16.mxu0 %v913
    %1817 = vmatpush1.bf16.msra.mxu0 %v912
    %1818 = vmatprep.subr.bf16.mxu0 %v905
    %1819 = vmatpush1.bf16.msra.mxu0 %v904
    %1820 = vmatprep.subr.bf16.mxu0 %v897
    %1821 = vmatpush1.bf16.msra.mxu0 %v896
    %1822 = vmatprep.subr.bf16.mxu0 %v889
    %1823 = vmatpush1.bf16.msra.mxu0 %v888
    %1824 = vmatprep.subr.bf16.mxu0 %v1009
    %1825 = vmatpush2.bf16.msra.mxu0 %v1008
    %1826 = vmatprep.subr.bf16.mxu0 %v1001
    %1827 = vmatpush2.bf16.msra.mxu0 %v1000
    %1828 = vmatprep.subr.bf16.mxu0 %v993
    %1829 = vmatpush2.bf16.msra.mxu0 %v992
    %1830 = vmatprep.subr.bf16.mxu0 %v985
    %1831 = vmatpush2.bf16.msra.mxu0 %v984
    %1832 = vmatprep.subr.bf16.mxu0 %v977
    %1833 = vmatpush2.bf16.msra.mxu0 %v976
    %1834 = vmatprep.subr.bf16.mxu0 %v969
    %1835 = vmatpush2.bf16.msra.mxu0 %v968
    %1836 = vmatprep.subr.bf16.mxu0 %v961
    %1837 = vmatpush2.bf16.msra.mxu0 %v960
    %1838 = vmatprep.subr.bf16.mxu0 %v953
    %1839 = vmatpush2.bf16.msra.mxu0 %v952
    %1840 = vmatprep.mubr.bf16.mxu0 %v1681
    %1841 = vmatmul.mubr.bf16.gmra.mxu0 %v1678
    %v1842 = vpop.f32.mrf.mxu0
    %v1843 = vadd.f32 0.0, %v1842
    %v1844 = vpop.f32.mrf.mxu0
    %v1845 = vadd.f32 0.0, %v1844
    %v1846 = vpop.f32.mrf.mxu0
    %v1847 = vpop.f32.mrf.mxu0
    %1848 = vdwg.mxu0
    %v1857 = vrot.slane %v1720, 6
    %v1858 = vrot.slane %v1722, 6
    %v1859 = vrot.slane %v1761, 6
    %v1860 = vrot.slane %v1763, 6
    %v1861 = vrot.slane %v1802, 6
    %v1862 = vrot.slane %v1804, 6
    %v1863 = vrot.slane %v1843, 6
    %v1864 = vrot.slane %v1845, 6
    %v1873 = vadd.f32 %v226, %v1857
    %v1874 = vadd.f32 %v228, %v1858
    %v1875 = vadd.f32 %v267, %v1859
    %v1876 = vadd.f32 %v269, %v1860
    %v1877 = vadd.f32 %v308, %v1861
    %v1878 = vadd.f32 %v310, %v1862
    %v1879 = vadd.f32 %v349, %v1863
    %v1880 = vadd.f32 %v351, %v1864
    %v1881 = vxor.u32 %v1873, 2147483648
    %v1882 = vxor.u32 %v1874, 2147483648
    %v1883 = vmul.f32 %v1881, 1.442695
    %v1884 = vpow.pop %v1883
    %v1885 = vmul.f32 %v1882, 1.442695
    %v1886 = vpow.pop %v1885
    %v1887 = vadd.f32 %v1884, 1.0
    %v1888 = vadd.f32 %v1886, 1.0
    %v1889 = vrcp.pop %v1887
    %v1890 = vmul.f32 1.0, %v1889
    %v1891 = vrcp.pop %v1888
    %v1892 = vmul.f32 1.0, %v1891
    %v1893 = vxor.u32 %v1875, 2147483648
    %v1894 = vxor.u32 %v1876, 2147483648
    %v1895 = vmul.f32 %v1893, 1.442695
    %v1896 = vpow.pop %v1895
    %v1897 = vmul.f32 %v1894, 1.442695
    %v1898 = vpow.pop %v1897
    %v1899 = vadd.f32 %v1896, 1.0
    %v1900 = vadd.f32 %v1898, 1.0
    %v1901 = vrcp.pop %v1899
    %v1902 = vmul.f32 1.0, %v1901
    %v1903 = vrcp.pop %v1900
    %v1904 = vmul.f32 1.0, %v1903
    %v1905 = vtanh.pop %v1877
    %v1906 = vtanh.pop %v1878
    %v1907 = vxor.u32 %v1879, 2147483648
    %v1908 = vxor.u32 %v1880, 2147483648
    %v1909 = vmul.f32 %v1907, 1.442695
    %v1910 = vpow.pop %v1909
    %v1911 = vmul.f32 %v1908, 1.442695
    %v1912 = vpow.pop %v1911
    %v1913 = vadd.f32 %v1910, 1.0
    %v1914 = vadd.f32 %v1912, 1.0
    %v1915 = vrcp.pop %v1913
    %v1916 = vmul.f32 1.0, %v1915
    %v1917 = vrcp.pop %v1914
    %v1918 = vmul.f32 1.0, %v1917
    %v1921 = vrot.slane %v1641, 7
    %v1922 = vrot.slane %v1642, 7
    %v1925 = vmul.f32 %v1902, %v1921
    %v1926 = vmul.f32 %v1904, %v1922
    %v1927 = vmul.f32 %v1890, %v1905
    %v1928 = vmul.f32 %v1892, %v1906
    %v1929 = vadd.f32 %v1925, %v1927
    %v1930 = vadd.f32 %v1926, %v1928
    %v1931 = vtanh.pop %v1929
    %v1932 = vtanh.pop %v1930
    %v1933 = vmul.f32 %v1916, %v1931
    %v1934 = vmul.f32 %v1918, %v1932
    %v1937 = vrot.slane %v1933, 2
    %v1938 = vrot.slane %v1934, 2
    %v1941 = vadd.f32 %v1653, %v1937
    %v1942 = vadd.f32 %v1654, %v1938
    %v1943 = vcombine.low %v1933, %v1934
    %v1945 = vunpack.c.l.s4 1966171168
    %v1946 = vunpack.c.0.s8 %v1945
    %v1947 = vlaneseq
    %v1948 = vshrl.u32 %v1947, 7
    %v1949 = vsub.s32 %v1946, %v1948
    %v1950 = vrot.slane %v1943, %v1949
    %v1952 = vunpack.c.l.s4 1966171168
    %v1953 = vunpack.c.0.s8 %v1952
    %v1954 = vlaneseq
    %v1955 = vshrl.u32 %v1954, 7
    %v1956 = vsub.s32 %v1953, %v1955
    %v1957 = vrot.slane %v1950, %v1956
    %v1958 = vcombine.high %v1957, %v1957
    %s1960 = scalar_lea.vmem %s8, 2
    %1961 = vst.msk [vmem:[%s1960] ss:$8 sm:$0x3] %vm1392, %v1958
    %1962 = vst.msk [vmem:[%s1960] ss:$8 sm:$0x0] %vm1392, %v1958
    %v1963 = vpack.c.bf16 %v1933, %v1933
    %v1964 = vpack.c.bf16 %v1934, %v1934
    %v1967 = vrot.slane %v1963, 1
    %v1968 = vrot.slane %v1964, 1
    %1971 = vmatprep.subr.bf16.mxu0 %v939
    %1972 = vmatpush1.bf16.msra.mxu0 %v938
    %1973 = vmatprep.subr.bf16.mxu0 %v931
    %1974 = vmatpush1.bf16.msra.mxu0 %v930
    %1975 = vmatprep.subr.bf16.mxu0 %v923
    %1976 = vmatpush1.bf16.msra.mxu0 %v922
    %1977 = vmatprep.subr.bf16.mxu0 %v915
    %1978 = vmatpush1.bf16.msra.mxu0 %v914
    %1979 = vmatprep.subr.bf16.mxu0 %v907
    %1980 = vmatpush1.bf16.msra.mxu0 %v906
    %1981 = vmatprep.subr.bf16.mxu0 %v899
    %1982 = vmatpush1.bf16.msra.mxu0 %v898
    %1983 = vmatprep.subr.bf16.mxu0 %v891
    %1984 = vmatpush1.bf16.msra.mxu0 %v890
    %1985 = vmatprep.subr.bf16.mxu0 %v883
    %1986 = vmatpush1.bf16.msra.mxu0 %v882
    %1987 = vmatprep.subr.bf16.mxu0 %v1003
    %1988 = vmatpush2.bf16.msra.mxu0 %v1002
    %1989 = vmatprep.subr.bf16.mxu0 %v995
    %1990 = vmatpush2.bf16.msra.mxu0 %v994
    %1991 = vmatprep.subr.bf16.mxu0 %v987
    %1992 = vmatpush2.bf16.msra.mxu0 %v986
    %1993 = vmatprep.subr.bf16.mxu0 %v979
    %1994 = vmatpush2.bf16.msra.mxu0 %v978
    %1995 = vmatprep.subr.bf16.mxu0 %v971
    %1996 = vmatpush2.bf16.msra.mxu0 %v970
    %1997 = vmatprep.subr.bf16.mxu0 %v963
    %1998 = vmatpush2.bf16.msra.mxu0 %v962
    %1999 = vmatprep.subr.bf16.mxu0 %v955
    %2000 = vmatpush2.bf16.msra.mxu0 %v954
    %2001 = vmatprep.subr.bf16.mxu0 %v947
    %2002 = vmatpush2.bf16.msra.mxu0 %v946
    %2003 = vmatprep.mubr.bf16.mxu0 %v1968
    %2004 = vmatmul.mubr.bf16.gmra.mxu0 %v1967
    %v2005 = vpop.f32.mrf.mxu0
    %v2006 = vadd.f32 0.0, %v2005
    %v2007 = vpop.f32.mrf.mxu0
    %v2008 = vadd.f32 0.0, %v2007
    %v2009 = vpop.f32.mrf.mxu0
    %v2010 = vpop.f32.mrf.mxu0
    %2011 = vdwg.mxu0
    %2012 = vmatprep.subr.bf16.mxu0 %v941
    %2013 = vmatpush1.bf16.msra.mxu0 %v940
    %2014 = vmatprep.subr.bf16.mxu0 %v933
    %2015 = vmatpush1.bf16.msra.mxu0 %v932
    %2016 = vmatprep.subr.bf16.mxu0 %v925
    %2017 = vmatpush1.bf16.msra.mxu0 %v924
    %2018 = vmatprep.subr.bf16.mxu0 %v917
    %2019 = vmatpush1.bf16.msra.mxu0 %v916
    %2020 = vmatprep.subr.bf16.mxu0 %v909
    %2021 = vmatpush1.bf16.msra.mxu0 %v908
    %2022 = vmatprep.subr.bf16.mxu0 %v901
    %2023 = vmatpush1.bf16.msra.mxu0 %v900
    %2024 = vmatprep.subr.bf16.mxu0 %v893
    %2025 = vmatpush1.bf16.msra.mxu0 %v892
    %2026 = vmatprep.subr.bf16.mxu0 %v885
    %2027 = vmatpush1.bf16.msra.mxu0 %v884
    %2028 = vmatprep.subr.bf16.mxu0 %v1005
    %2029 = vmatpush2.bf16.msra.mxu0 %v1004
    %2030 = vmatprep.subr.bf16.mxu0 %v997
    %2031 = vmatpush2.bf16.msra.mxu0 %v996
    %2032 = vmatprep.subr.bf16.mxu0 %v989
    %2033 = vmatpush2.bf16.msra.mxu0 %v988
    %2034 = vmatprep.subr.bf16.mxu0 %v981
    %2035 = vmatpush2.bf16.msra.mxu0 %v980
    %2036 = vmatprep.subr.bf16.mxu0 %v973
    %2037 = vmatpush2.bf16.msra.mxu0 %v972
    %2038 = vmatprep.subr.bf16.mxu0 %v965
    %2039 = vmatpush2.bf16.msra.mxu0 %v964
    %2040 = vmatprep.subr.bf16.mxu0 %v957
    %2041 = vmatpush2.bf16.msra.mxu0 %v956
    %2042 = vmatprep.subr.bf16.mxu0 %v949
    %2043 = vmatpush2.bf16.msra.mxu0 %v948
    %2044 = vmatprep.mubr.bf16.mxu0 %v1968
    %2045 = vmatmul.mubr.bf16.gmra.mxu0 %v1967
    %v2046 = vpop.f32.mrf.mxu0
    %v2047 = vadd.f32 0.0, %v2046
    %v2048 = vpop.f32.mrf.mxu0
    %v2049 = vadd.f32 0.0, %v2048
    %v2050 = vpop.f32.mrf.mxu0
    %v2051 = vpop.f32.mrf.mxu0
    %2052 = vdwg.mxu0
    %2053 = vmatprep.subr.bf16.mxu0 %v943
    %2054 = vmatpush1.bf16.msra.mxu0 %v942
    %2055 = vmatprep.subr.bf16.mxu0 %v935
    %2056 = vmatpush1.bf16.msra.mxu0 %v934
    %2057 = vmatprep.subr.bf16.mxu0 %v927
    %2058 = vmatpush1.bf16.msra.mxu0 %v926
    %2059 = vmatprep.subr.bf16.mxu0 %v919
    %2060 = vmatpush1.bf16.msra.mxu0 %v918
    %2061 = vmatprep.subr.bf16.mxu0 %v911
    %2062 = vmatpush1.bf16.msra.mxu0 %v910
    %2063 = vmatprep.subr.bf16.mxu0 %v903
    %2064 = vmatpush1.bf16.msra.mxu0 %v902
    %2065 = vmatprep.subr.bf16.mxu0 %v895
    %2066 = vmatpush1.bf16.msra.mxu0 %v894
    %2067 = vmatprep.subr.bf16.mxu0 %v887
    %2068 = vmatpush1.bf16.msra.mxu0 %v886
    %2069 = vmatprep.subr.bf16.mxu0 %v1007
    %2070 = vmatpush2.bf16.msra.mxu0 %v1006
    %2071 = vmatprep.subr.bf16.mxu0 %v999
    %2072 = vmatpush2.bf16.msra.mxu0 %v998
    %2073 = vmatprep.subr.bf16.mxu0 %v991
    %2074 = vmatpush2.bf16.msra.mxu0 %v990
    %2075 = vmatprep.subr.bf16.mxu0 %v983
    %2076 = vmatpush2.bf16.msra.mxu0 %v982
    %2077 = vmatprep.subr.bf16.mxu0 %v975
    %2078 = vmatpush2.bf16.msra.mxu0 %v974
    %2079 = vmatprep.subr.bf16.mxu0 %v967
    %2080 = vmatpush2.bf16.msra.mxu0 %v966
    %2081 = vmatprep.subr.bf16.mxu0 %v959
    %2082 = vmatpush2.bf16.msra.mxu0 %v958
    %2083 = vmatprep.subr.bf16.mxu0 %v951
    %2084 = vmatpush2.bf16.msra.mxu0 %v950
    %2085 = vmatprep.mubr.bf16.mxu0 %v1968
    %2086 = vmatmul.mubr.bf16.gmra.mxu0 %v1967
    %v2087 = vpop.f32.mrf.mxu0
    %v2088 = vadd.f32 0.0, %v2087
    %v2089 = vpop.f32.mrf.mxu0
    %v2090 = vadd.f32 0.0, %v2089
    %v2091 = vpop.f32.mrf.mxu0
    %v2092 = vpop.f32.mrf.mxu0
    %2093 = vdwg.mxu0
    %2094 = vmatprep.subr.bf16.mxu0 %v945
    %2095 = vmatpush1.bf16.msra.mxu0 %v944
    %2096 = vmatprep.subr.bf16.mxu0 %v937
    %2097 = vmatpush1.bf16.msra.mxu0 %v936
    %2098 = vmatprep.subr.bf16.mxu0 %v929
    %2099 = vmatpush1.bf16.msra.mxu0 %v928
    %2100 = vmatprep.subr.bf16.mxu0 %v921
    %2101 = vmatpush1.bf16.msra.mxu0 %v920
    %2102 = vmatprep.subr.bf16.mxu0 %v913
    %2103 = vmatpush1.bf16.msra.mxu0 %v912
    %2104 = vmatprep.subr.bf16.mxu0 %v905
    %2105 = vmatpush1.bf16.msra.mxu0 %v904
    %2106 = vmatprep.subr.bf16.mxu0 %v897
    %2107 = vmatpush1.bf16.msra.mxu0 %v896
    %2108 = vmatprep.subr.bf16.mxu0 %v889
    %2109 = vmatpush1.bf16.msra.mxu0 %v888
    %2110 = vmatprep.subr.bf16.mxu0 %v1009
    %2111 = vmatpush2.bf16.msra.mxu0 %v1008
    %2112 = vmatprep.subr.bf16.mxu0 %v1001
    %2113 = vmatpush2.bf16.msra.mxu0 %v1000
    %2114 = vmatprep.subr.bf16.mxu0 %v993
    %2115 = vmatpush2.bf16.msra.mxu0 %v992
    %2116 = vmatprep.subr.bf16.mxu0 %v985
    %2117 = vmatpush2.bf16.msra.mxu0 %v984
    %2118 = vmatprep.subr.bf16.mxu0 %v977
    %2119 = vmatpush2.bf16.msra.mxu0 %v976
    %2120 = vmatprep.subr.bf16.mxu0 %v969
    %2121 = vmatpush2.bf16.msra.mxu0 %v968
    %2122 = vmatprep.subr.bf16.mxu0 %v961
    %2123 = vmatpush2.bf16.msra.mxu0 %v960
    %2124 = vmatprep.subr.bf16.mxu0 %v953
    %2125 = vmatpush2.bf16.msra.mxu0 %v952
    %2126 = vmatprep.mubr.bf16.mxu0 %v1968
    %2127 = vmatmul.mubr.bf16.gmra.mxu0 %v1967
    %v2128 = vpop.f32.mrf.mxu0
    %v2129 = vadd.f32 0.0, %v2128
    %v2130 = vpop.f32.mrf.mxu0
    %v2131 = vadd.f32 0.0, %v2130
    %v2132 = vpop.f32.mrf.mxu0
    %v2133 = vpop.f32.mrf.mxu0
    %2134 = vdwg.mxu0
    %v2143 = vrot.slane %v2006, 5
    %v2144 = vrot.slane %v2008, 5
    %v2145 = vrot.slane %v2047, 5
    %v2146 = vrot.slane %v2049, 5
    %v2147 = vrot.slane %v2088, 5
    %v2148 = vrot.slane %v2090, 5
    %v2149 = vrot.slane %v2129, 5
    %v2150 = vrot.slane %v2131, 5
    %v2159 = vadd.f32 %v226, %v2143
    %v2160 = vadd.f32 %v228, %v2144
    %v2161 = vadd.f32 %v267, %v2145
    %v2162 = vadd.f32 %v269, %v2146
    %v2163 = vadd.f32 %v308, %v2147
    %v2164 = vadd.f32 %v310, %v2148
    %v2165 = vadd.f32 %v349, %v2149
    %v2166 = vadd.f32 %v351, %v2150
    %v2167 = vxor.u32 %v2159, 2147483648
    %v2168 = vxor.u32 %v2160, 2147483648
    %v2169 = vmul.f32 %v2167, 1.442695
    %v2170 = vpow.pop %v2169
    %v2171 = vmul.f32 %v2168, 1.442695
    %v2172 = vpow.pop %v2171
    %v2173 = vadd.f32 %v2170, 1.0
    %v2174 = vadd.f32 %v2172, 1.0
    %v2175 = vrcp.pop %v2173
    %v2176 = vmul.f32 1.0, %v2175
    %v2177 = vrcp.pop %v2174
    %v2178 = vmul.f32 1.0, %v2177
    %v2179 = vxor.u32 %v2161, 2147483648
    %v2180 = vxor.u32 %v2162, 2147483648
    %v2181 = vmul.f32 %v2179, 1.442695
    %v2182 = vpow.pop %v2181
    %v2183 = vmul.f32 %v2180, 1.442695
    %v2184 = vpow.pop %v2183
    %v2185 = vadd.f32 %v2182, 1.0
    %v2186 = vadd.f32 %v2184, 1.0
    %v2187 = vrcp.pop %v2185
    %v2188 = vmul.f32 1.0, %v2187
    %v2189 = vrcp.pop %v2186
    %v2190 = vmul.f32 1.0, %v2189
    %v2191 = vtanh.pop %v2163
    %v2192 = vtanh.pop %v2164
    %v2193 = vxor.u32 %v2165, 2147483648
    %v2194 = vxor.u32 %v2166, 2147483648
    %v2195 = vmul.f32 %v2193, 1.442695
    %v2196 = vpow.pop %v2195
    %v2197 = vmul.f32 %v2194, 1.442695
    %v2198 = vpow.pop %v2197
    %v2199 = vadd.f32 %v2196, 1.0
    %v2200 = vadd.f32 %v2198, 1.0
    %v2201 = vrcp.pop %v2199
    %v2202 = vmul.f32 1.0, %v2201
    %v2203 = vrcp.pop %v2200
    %v2204 = vmul.f32 1.0, %v2203
    %v2207 = vrot.slane %v1929, 7
    %v2208 = vrot.slane %v1930, 7
    %v2211 = vmul.f32 %v2188, %v2207
    %v2212 = vmul.f32 %v2190, %v2208
    %v2213 = vmul.f32 %v2176, %v2191
    %v2214 = vmul.f32 %v2178, %v2192
    %v2215 = vadd.f32 %v2211, %v2213
    %v2216 = vadd.f32 %v2212, %v2214
    %v2217 = vtanh.pop %v2215
    %v2218 = vtanh.pop %v2216
    %v2219 = vmul.f32 %v2202, %v2217
    %v2220 = vmul.f32 %v2204, %v2218
    %v2223 = vrot.slane %v2219, 3
    %v2224 = vrot.slane %v2220, 3
    %v2227 = vadd.f32 %v1941, %v2223
    %v2228 = vadd.f32 %v1942, %v2224
    %v2229 = vcombine.low %v2219, %v2220
    %v2231 = vunpack.c.l.s4 1966171168
    %v2232 = vunpack.c.0.s8 %v2231
    %v2233 = vlaneseq
    %v2234 = vshrl.u32 %v2233, 7
    %v2235 = vsub.s32 %v2232, %v2234
    %v2236 = vrot.slane %v2229, %v2235
    %v2237 = vcombine.high %v2236, %v2236
    %v2239 = vunpack.c.l.s4 1966171168
    %v2240 = vunpack.c.0.s8 %v2239
    %v2241 = vlaneseq
    %v2242 = vshrl.u32 %v2241, 7
    %v2243 = vsub.s32 %v2240, %v2242
    %v2244 = vrot.slane %v2237, %v2243
    %v2245 = vcombine.high %v2244, %v2244
    %s2247 = scalar_lea.vmem %s8, 3
    %2248 = vst.msk [vmem:[%s2247] ss:$8 sm:$0x3] %vm1392, %v2245
    %2249 = vst.msk [vmem:[%s2247] ss:$8 sm:$0x0] %vm1392, %v2245
    %v2250 = vpack.c.bf16 %v2219, %v2219
    %v2251 = vpack.c.bf16 %v2220, %v2220
    %v2253 = vshrl.u32 %v2250, 16
    %v2255 = vrot.slane %v2253, 1
    %v2257 = vshrl.u32 %v2251, 16
    %v2259 = vrot.slane %v2257, 1
    %2262 = vmatprep.subr.bf16.mxu0 %v939
    %2263 = vmatpush1.bf16.msra.mxu0 %v938
    %2264 = vmatprep.subr.bf16.mxu0 %v931
    %2265 = vmatpush1.bf16.msra.mxu0 %v930
    %2266 = vmatprep.subr.bf16.mxu0 %v923
    %2267 = vmatpush1.bf16.msra.mxu0 %v922
    %2268 = vmatprep.subr.bf16.mxu0 %v915
    %2269 = vmatpush1.bf16.msra.mxu0 %v914
    %2270 = vmatprep.subr.bf16.mxu0 %v907
    %2271 = vmatpush1.bf16.msra.mxu0 %v906
    %2272 = vmatprep.subr.bf16.mxu0 %v899
    %2273 = vmatpush1.bf16.msra.mxu0 %v898
    %2274 = vmatprep.subr.bf16.mxu0 %v891
    %2275 = vmatpush1.bf16.msra.mxu0 %v890
    %2276 = vmatprep.subr.bf16.mxu0 %v883
    %2277 = vmatpush1.bf16.msra.mxu0 %v882
    %2278 = vmatprep.subr.bf16.mxu0 %v1003
    %2279 = vmatpush2.bf16.msra.mxu0 %v1002
    %2280 = vmatprep.subr.bf16.mxu0 %v995
    %2281 = vmatpush2.bf16.msra.mxu0 %v994
    %2282 = vmatprep.subr.bf16.mxu0 %v987
    %2283 = vmatpush2.bf16.msra.mxu0 %v986
    %2284 = vmatprep.subr.bf16.mxu0 %v979
    %2285 = vmatpush2.bf16.msra.mxu0 %v978
    %2286 = vmatprep.subr.bf16.mxu0 %v971
    %2287 = vmatpush2.bf16.msra.mxu0 %v970
    %2288 = vmatprep.subr.bf16.mxu0 %v963
    %2289 = vmatpush2.bf16.msra.mxu0 %v962
    %2290 = vmatprep.subr.bf16.mxu0 %v955
    %2291 = vmatpush2.bf16.msra.mxu0 %v954
    %2292 = vmatprep.subr.bf16.mxu0 %v947
    %2293 = vmatpush2.bf16.msra.mxu0 %v946
    %2294 = vmatprep.mubr.bf16.mxu0 %v2259
    %2295 = vmatmul.mubr.bf16.gmra.mxu0 %v2255
    %v2296 = vpop.f32.mrf.mxu0
    %v2297 = vadd.f32 0.0, %v2296
    %v2298 = vpop.f32.mrf.mxu0
    %v2299 = vadd.f32 0.0, %v2298
    %v2300 = vpop.f32.mrf.mxu0
    %v2301 = vpop.f32.mrf.mxu0
    %2302 = vdwg.mxu0
    %2303 = vmatprep.subr.bf16.mxu0 %v941
    %2304 = vmatpush1.bf16.msra.mxu0 %v940
    %2305 = vmatprep.subr.bf16.mxu0 %v933
    %2306 = vmatpush1.bf16.msra.mxu0 %v932
    %2307 = vmatprep.subr.bf16.mxu0 %v925
    %2308 = vmatpush1.bf16.msra.mxu0 %v924
    %2309 = vmatprep.subr.bf16.mxu0 %v917
    %2310 = vmatpush1.bf16.msra.mxu0 %v916
    %2311 = vmatprep.subr.bf16.mxu0 %v909
    %2312 = vmatpush1.bf16.msra.mxu0 %v908
    %2313 = vmatprep.subr.bf16.mxu0 %v901
    %2314 = vmatpush1.bf16.msra.mxu0 %v900
    %2315 = vmatprep.subr.bf16.mxu0 %v893
    %2316 = vmatpush1.bf16.msra.mxu0 %v892
    %2317 = vmatprep.subr.bf16.mxu0 %v885
    %2318 = vmatpush1.bf16.msra.mxu0 %v884
    %2319 = vmatprep.subr.bf16.mxu0 %v1005
    %2320 = vmatpush2.bf16.msra.mxu0 %v1004
    %2321 = vmatprep.subr.bf16.mxu0 %v997
    %2322 = vmatpush2.bf16.msra.mxu0 %v996
    %2323 = vmatprep.subr.bf16.mxu0 %v989
    %2324 = vmatpush2.bf16.msra.mxu0 %v988
    %2325 = vmatprep.subr.bf16.mxu0 %v981
    %2326 = vmatpush2.bf16.msra.mxu0 %v980
    %2327 = vmatprep.subr.bf16.mxu0 %v973
    %2328 = vmatpush2.bf16.msra.mxu0 %v972
    %2329 = vmatprep.subr.bf16.mxu0 %v965
    %2330 = vmatpush2.bf16.msra.mxu0 %v964
    %2331 = vmatprep.subr.bf16.mxu0 %v957
    %2332 = vmatpush2.bf16.msra.mxu0 %v956
    %2333 = vmatprep.subr.bf16.mxu0 %v949
    %2334 = vmatpush2.bf16.msra.mxu0 %v948
    %2335 = vmatprep.mubr.bf16.mxu0 %v2259
    %2336 = vmatmul.mubr.bf16.gmra.mxu0 %v2255
    %v2337 = vpop.f32.mrf.mxu0
    %v2338 = vadd.f32 0.0, %v2337
    %v2339 = vpop.f32.mrf.mxu0
    %v2340 = vadd.f32 0.0, %v2339
    %v2341 = vpop.f32.mrf.mxu0
    %v2342 = vpop.f32.mrf.mxu0
    %2343 = vdwg.mxu0
    %2344 = vmatprep.subr.bf16.mxu0 %v943
    %2345 = vmatpush1.bf16.msra.mxu0 %v942
    %2346 = vmatprep.subr.bf16.mxu0 %v935
    %2347 = vmatpush1.bf16.msra.mxu0 %v934
    %2348 = vmatprep.subr.bf16.mxu0 %v927
    %2349 = vmatpush1.bf16.msra.mxu0 %v926
    %2350 = vmatprep.subr.bf16.mxu0 %v919
    %2351 = vmatpush1.bf16.msra.mxu0 %v918
    %2352 = vmatprep.subr.bf16.mxu0 %v911
    %2353 = vmatpush1.bf16.msra.mxu0 %v910
    %2354 = vmatprep.subr.bf16.mxu0 %v903
    %2355 = vmatpush1.bf16.msra.mxu0 %v902
    %2356 = vmatprep.subr.bf16.mxu0 %v895
    %2357 = vmatpush1.bf16.msra.mxu0 %v894
    %2358 = vmatprep.subr.bf16.mxu0 %v887
    %2359 = vmatpush1.bf16.msra.mxu0 %v886
    %2360 = vmatprep.subr.bf16.mxu0 %v1007
    %2361 = vmatpush2.bf16.msra.mxu0 %v1006
    %2362 = vmatprep.subr.bf16.mxu0 %v999
    %2363 = vmatpush2.bf16.msra.mxu0 %v998
    %2364 = vmatprep.subr.bf16.mxu0 %v991
    %2365 = vmatpush2.bf16.msra.mxu0 %v990
    %2366 = vmatprep.subr.bf16.mxu0 %v983
    %2367 = vmatpush2.bf16.msra.mxu0 %v982
    %2368 = vmatprep.subr.bf16.mxu0 %v975
    %2369 = vmatpush2.bf16.msra.mxu0 %v974
    %2370 = vmatprep.subr.bf16.mxu0 %v967
    %2371 = vmatpush2.bf16.msra.mxu0 %v966
    %2372 = vmatprep.subr.bf16.mxu0 %v959
    %2373 = vmatpush2.bf16.msra.mxu0 %v958
    %2374 = vmatprep.subr.bf16.mxu0 %v951
    %2375 = vmatpush2.bf16.msra.mxu0 %v950
    %2376 = vmatprep.mubr.bf16.mxu0 %v2259
    %2377 = vmatmul.mubr.bf16.gmra.mxu0 %v2255
    %v2378 = vpop.f32.mrf.mxu0
    %v2379 = vadd.f32 0.0, %v2378
    %v2380 = vpop.f32.mrf.mxu0
    %v2381 = vadd.f32 0.0, %v2380
    %v2382 = vpop.f32.mrf.mxu0
    %v2383 = vpop.f32.mrf.mxu0
    %2384 = vdwg.mxu0
    %2385 = vmatprep.subr.bf16.mxu0 %v945
    %2386 = vmatpush1.bf16.msra.mxu0 %v944
    %2387 = vmatprep.subr.bf16.mxu0 %v937
    %2388 = vmatpush1.bf16.msra.mxu0 %v936
    %2389 = vmatprep.subr.bf16.mxu0 %v929
    %2390 = vmatpush1.bf16.msra.mxu0 %v928
    %2391 = vmatprep.subr.bf16.mxu0 %v921
    %2392 = vmatpush1.bf16.msra.mxu0 %v920
    %2393 = vmatprep.subr.bf16.mxu0 %v913
    %2394 = vmatpush1.bf16.msra.mxu0 %v912
    %2395 = vmatprep.subr.bf16.mxu0 %v905
    %2396 = vmatpush1.bf16.msra.mxu0 %v904
    %2397 = vmatprep.subr.bf16.mxu0 %v897
    %2398 = vmatpush1.bf16.msra.mxu0 %v896
    %2399 = vmatprep.subr.bf16.mxu0 %v889
    %2400 = vmatpush1.bf16.msra.mxu0 %v888
    %2401 = vmatprep.subr.bf16.mxu0 %v1009
    %2402 = vmatpush2.bf16.msra.mxu0 %v1008
    %2403 = vmatprep.subr.bf16.mxu0 %v1001
    %2404 = vmatpush2.bf16.msra.mxu0 %v1000
    %2405 = vmatprep.subr.bf16.mxu0 %v993
    %2406 = vmatpush2.bf16.msra.mxu0 %v992
    %2407 = vmatprep.subr.bf16.mxu0 %v985
    %2408 = vmatpush2.bf16.msra.mxu0 %v984
    %2409 = vmatprep.subr.bf16.mxu0 %v977
    %2410 = vmatpush2.bf16.msra.mxu0 %v976
    %2411 = vmatprep.subr.bf16.mxu0 %v969
    %2412 = vmatpush2.bf16.msra.mxu0 %v968
    %2413 = vmatprep.subr.bf16.mxu0 %v961
    %2414 = vmatpush2.bf16.msra.mxu0 %v960
    %2415 = vmatprep.subr.bf16.mxu0 %v953
    %2416 = vmatpush2.bf16.msra.mxu0 %v952
    %2417 = vmatprep.mubr.bf16.mxu0 %v2259
    %2418 = vmatmul.mubr.bf16.gmra.mxu0 %v2255
    %v2419 = vpop.f32.mrf.mxu0
    %v2420 = vadd.f32 0.0, %v2419
    %v2421 = vpop.f32.mrf.mxu0
    %v2422 = vadd.f32 0.0, %v2421
    %v2423 = vpop.f32.mrf.mxu0
    %v2424 = vpop.f32.mrf.mxu0
    %2425 = vdwg.mxu0
    %v2434 = vrot.slane %v2297, 4
    %v2435 = vrot.slane %v2299, 4
    %v2436 = vrot.slane %v2338, 4
    %v2437 = vrot.slane %v2340, 4
    %v2438 = vrot.slane %v2379, 4
    %v2439 = vrot.slane %v2381, 4
    %v2440 = vrot.slane %v2420, 4
    %v2441 = vrot.slane %v2422, 4
    %v2450 = vadd.f32 %v226, %v2434
    %v2451 = vadd.f32 %v228, %v2435
    %v2452 = vadd.f32 %v267, %v2436
    %v2453 = vadd.f32 %v269, %v2437
    %v2454 = vadd.f32 %v308, %v2438
    %v2455 = vadd.f32 %v310, %v2439
    %v2456 = vadd.f32 %v349, %v2440
    %v2457 = vadd.f32 %v351, %v2441
    %v2458 = vxor.u32 %v2450, 2147483648
    %v2459 = vxor.u32 %v2451, 2147483648
    %v2460 = vmul.f32 %v2458, 1.442695
    %v2461 = vpow.pop %v2460
    %v2462 = vmul.f32 %v2459, 1.442695
    %v2463 = vpow.pop %v2462
    %v2464 = vadd.f32 %v2461, 1.0
    %v2465 = vadd.f32 %v2463, 1.0
    %v2466 = vrcp.pop %v2464
    %v2467 = vmul.f32 1.0, %v2466
    %v2468 = vrcp.pop %v2465
    %v2469 = vmul.f32 1.0, %v2468
    %v2470 = vxor.u32 %v2452, 2147483648
    %v2471 = vxor.u32 %v2453, 2147483648
    %v2472 = vmul.f32 %v2470, 1.442695
    %v2473 = vpow.pop %v2472
    %v2474 = vmul.f32 %v2471, 1.442695
    %v2475 = vpow.pop %v2474
    %v2476 = vadd.f32 %v2473, 1.0
    %v2477 = vadd.f32 %v2475, 1.0
    %v2478 = vrcp.pop %v2476
    %v2479 = vmul.f32 1.0, %v2478
    %v2480 = vrcp.pop %v2477
    %v2481 = vmul.f32 1.0, %v2480
    %v2482 = vtanh.pop %v2454
    %v2483 = vtanh.pop %v2455
    %v2484 = vxor.u32 %v2456, 2147483648
    %v2485 = vxor.u32 %v2457, 2147483648
    %v2486 = vmul.f32 %v2484, 1.442695
    %v2487 = vpow.pop %v2486
    %v2488 = vmul.f32 %v2485, 1.442695
    %v2489 = vpow.pop %v2488
    %v2490 = vadd.f32 %v2487, 1.0
    %v2491 = vadd.f32 %v2489, 1.0
    %v2492 = vrcp.pop %v2490
    %v2493 = vmul.f32 1.0, %v2492
    %v2494 = vrcp.pop %v2491
    %v2495 = vmul.f32 1.0, %v2494
    %v2498 = vrot.slane %v2215, 7
    %v2499 = vrot.slane %v2216, 7
    %v2502 = vmul.f32 %v2479, %v2498
    %v2503 = vmul.f32 %v2481, %v2499
    %v2504 = vmul.f32 %v2467, %v2482
    %v2505 = vmul.f32 %v2469, %v2483
    %v2506 = vadd.f32 %v2502, %v2504
    %v2507 = vadd.f32 %v2503, %v2505
    %v2508 = vtanh.pop %v2506
    %v2509 = vtanh.pop %v2507
    %v2510 = vmul.f32 %v2493, %v2508
    %v2511 = vmul.f32 %v2495, %v2509
    %v2514 = vrot.slane %v2510, 4
    %v2515 = vrot.slane %v2511, 4
    %v2518 = vadd.f32 %v2227, %v2514
    %v2519 = vadd.f32 %v2228, %v2515
    %v2520 = vcombine.high %v2510, %v2511
    %v2522 = vunpack.c.l.s4 1966171168
    %v2523 = vunpack.c.0.s8 %v2522
    %v2524 = vlaneseq
    %v2525 = vshrl.u32 %v2524, 7
    %v2526 = vsub.s32 %v2523, %v2525
    %v2527 = vrot.slane %v2520, %v2526
    %v2529 = vunpack.c.l.s4 1966171168
    %v2530 = vunpack.c.0.s8 %v2529
    %v2531 = vlaneseq
    %v2532 = vshrl.u32 %v2531, 7
    %v2533 = vsub.s32 %v2530, %v2532
    %v2534 = vrot.slane %v2527, %v2533
    %s2536 = scalar_lea.vmem %s8, 4
    %2537 = vst.msk [vmem:[%s2536] ss:$8 sm:$0x3] %vm1392, %v2534
    %2538 = vst.msk [vmem:[%s2536] ss:$8 sm:$0x0] %vm1392, %v2534
    %v2539 = vpack.c.bf16 %v2510, %v2510
    %v2540 = vpack.c.bf16 %v2511, %v2511
    %v2543 = vrot.slane %v2539, 2
    %v2544 = vrot.slane %v2540, 2
    %2547 = vmatprep.subr.bf16.mxu0 %v939
    %2548 = vmatpush1.bf16.msra.mxu0 %v938
    %2549 = vmatprep.subr.bf16.mxu0 %v931
    %2550 = vmatpush1.bf16.msra.mxu0 %v930
    %2551 = vmatprep.subr.bf16.mxu0 %v923
    %2552 = vmatpush1.bf16.msra.mxu0 %v922
    %2553 = vmatprep.subr.bf16.mxu0 %v915
    %2554 = vmatpush1.bf16.msra.mxu0 %v914
    %2555 = vmatprep.subr.bf16.mxu0 %v907
    %2556 = vmatpush1.bf16.msra.mxu0 %v906
    %2557 = vmatprep.subr.bf16.mxu0 %v899
    %2558 = vmatpush1.bf16.msra.mxu0 %v898
    %2559 = vmatprep.subr.bf16.mxu0 %v891
    %2560 = vmatpush1.bf16.msra.mxu0 %v890
    %2561 = vmatprep.subr.bf16.mxu0 %v883
    %2562 = vmatpush1.bf16.msra.mxu0 %v882
    %2563 = vmatprep.subr.bf16.mxu0 %v1003
    %2564 = vmatpush2.bf16.msra.mxu0 %v1002
    %2565 = vmatprep.subr.bf16.mxu0 %v995
    %2566 = vmatpush2.bf16.msra.mxu0 %v994
    %2567 = vmatprep.subr.bf16.mxu0 %v987
    %2568 = vmatpush2.bf16.msra.mxu0 %v986
    %2569 = vmatprep.subr.bf16.mxu0 %v979
    %2570 = vmatpush2.bf16.msra.mxu0 %v978
    %2571 = vmatprep.subr.bf16.mxu0 %v971
    %2572 = vmatpush2.bf16.msra.mxu0 %v970
    %2573 = vmatprep.subr.bf16.mxu0 %v963
    %2574 = vmatpush2.bf16.msra.mxu0 %v962
    %2575 = vmatprep.subr.bf16.mxu0 %v955
    %2576 = vmatpush2.bf16.msra.mxu0 %v954
    %2577 = vmatprep.subr.bf16.mxu0 %v947
    %2578 = vmatpush2.bf16.msra.mxu0 %v946
    %2579 = vmatprep.mubr.bf16.mxu0 %v2544
    %2580 = vmatmul.mubr.bf16.gmra.mxu0 %v2543
    %v2581 = vpop.f32.mrf.mxu0
    %v2582 = vadd.f32 0.0, %v2581
    %v2583 = vpop.f32.mrf.mxu0
    %v2584 = vadd.f32 0.0, %v2583
    %v2585 = vpop.f32.mrf.mxu0
    %v2586 = vpop.f32.mrf.mxu0
    %2587 = vdwg.mxu0
    %2588 = vmatprep.subr.bf16.mxu0 %v941
    %2589 = vmatpush1.bf16.msra.mxu0 %v940
    %2590 = vmatprep.subr.bf16.mxu0 %v933
    %2591 = vmatpush1.bf16.msra.mxu0 %v932
    %2592 = vmatprep.subr.bf16.mxu0 %v925
    %2593 = vmatpush1.bf16.msra.mxu0 %v924
    %2594 = vmatprep.subr.bf16.mxu0 %v917
    %2595 = vmatpush1.bf16.msra.mxu0 %v916
    %2596 = vmatprep.subr.bf16.mxu0 %v909
    %2597 = vmatpush1.bf16.msra.mxu0 %v908
    %2598 = vmatprep.subr.bf16.mxu0 %v901
    %2599 = vmatpush1.bf16.msra.mxu0 %v900
    %2600 = vmatprep.subr.bf16.mxu0 %v893
    %2601 = vmatpush1.bf16.msra.mxu0 %v892
    %2602 = vmatprep.subr.bf16.mxu0 %v885
    %2603 = vmatpush1.bf16.msra.mxu0 %v884
    %2604 = vmatprep.subr.bf16.mxu0 %v1005
    %2605 = vmatpush2.bf16.msra.mxu0 %v1004
    %2606 = vmatprep.subr.bf16.mxu0 %v997
    %2607 = vmatpush2.bf16.msra.mxu0 %v996
    %2608 = vmatprep.subr.bf16.mxu0 %v989
    %2609 = vmatpush2.bf16.msra.mxu0 %v988
    %2610 = vmatprep.subr.bf16.mxu0 %v981
    %2611 = vmatpush2.bf16.msra.mxu0 %v980
    %2612 = vmatprep.subr.bf16.mxu0 %v973
    %2613 = vmatpush2.bf16.msra.mxu0 %v972
    %2614 = vmatprep.subr.bf16.mxu0 %v965
    %2615 = vmatpush2.bf16.msra.mxu0 %v964
    %2616 = vmatprep.subr.bf16.mxu0 %v957
    %2617 = vmatpush2.bf16.msra.mxu0 %v956
    %2618 = vmatprep.subr.bf16.mxu0 %v949
    %2619 = vmatpush2.bf16.msra.mxu0 %v948
    %2620 = vmatprep.mubr.bf16.mxu0 %v2544
    %2621 = vmatmul.mubr.bf16.gmra.mxu0 %v2543
    %v2622 = vpop.f32.mrf.mxu0
    %v2623 = vadd.f32 0.0, %v2622
    %v2624 = vpop.f32.mrf.mxu0
    %v2625 = vadd.f32 0.0, %v2624
    %v2626 = vpop.f32.mrf.mxu0
    %v2627 = vpop.f32.mrf.mxu0
    %2628 = vdwg.mxu0
    %2629 = vmatprep.subr.bf16.mxu0 %v943
    %2630 = vmatpush1.bf16.msra.mxu0 %v942
    %2631 = vmatprep.subr.bf16.mxu0 %v935
    %2632 = vmatpush1.bf16.msra.mxu0 %v934
    %2633 = vmatprep.subr.bf16.mxu0 %v927
    %2634 = vmatpush1.bf16.msra.mxu0 %v926
    %2635 = vmatprep.subr.bf16.mxu0 %v919
    %2636 = vmatpush1.bf16.msra.mxu0 %v918
    %2637 = vmatprep.subr.bf16.mxu0 %v911
    %2638 = vmatpush1.bf16.msra.mxu0 %v910
    %2639 = vmatprep.subr.bf16.mxu0 %v903
    %2640 = vmatpush1.bf16.msra.mxu0 %v902
    %2641 = vmatprep.subr.bf16.mxu0 %v895
    %2642 = vmatpush1.bf16.msra.mxu0 %v894
    %2643 = vmatprep.subr.bf16.mxu0 %v887
    %2644 = vmatpush1.bf16.msra.mxu0 %v886
    %2645 = vmatprep.subr.bf16.mxu0 %v1007
    %2646 = vmatpush2.bf16.msra.mxu0 %v1006
    %2647 = vmatprep.subr.bf16.mxu0 %v999
    %2648 = vmatpush2.bf16.msra.mxu0 %v998
    %2649 = vmatprep.subr.bf16.mxu0 %v991
    %2650 = vmatpush2.bf16.msra.mxu0 %v990
    %2651 = vmatprep.subr.bf16.mxu0 %v983
    %2652 = vmatpush2.bf16.msra.mxu0 %v982
    %2653 = vmatprep.subr.bf16.mxu0 %v975
    %2654 = vmatpush2.bf16.msra.mxu0 %v974
    %2655 = vmatprep.subr.bf16.mxu0 %v967
    %2656 = vmatpush2.bf16.msra.mxu0 %v966
    %2657 = vmatprep.subr.bf16.mxu0 %v959
    %2658 = vmatpush2.bf16.msra.mxu0 %v958
    %2659 = vmatprep.subr.bf16.mxu0 %v951
    %2660 = vmatpush2.bf16.msra.mxu0 %v950
    %2661 = vmatprep.mubr.bf16.mxu0 %v2544
    %2662 = vmatmul.mubr.bf16.gmra.mxu0 %v2543
    %v2663 = vpop.f32.mrf.mxu0
    %v2664 = vadd.f32 0.0, %v2663
    %v2665 = vpop.f32.mrf.mxu0
    %v2666 = vadd.f32 0.0, %v2665
    %v2667 = vpop.f32.mrf.mxu0
    %v2668 = vpop.f32.mrf.mxu0
    %2669 = vdwg.mxu0
    %2670 = vmatprep.subr.bf16.mxu0 %v945
    %2671 = vmatpush1.bf16.msra.mxu0 %v944
    %2672 = vmatprep.subr.bf16.mxu0 %v937
    %2673 = vmatpush1.bf16.msra.mxu0 %v936
    %2674 = vmatprep.subr.bf16.mxu0 %v929
    %2675 = vmatpush1.bf16.msra.mxu0 %v928
    %2676 = vmatprep.subr.bf16.mxu0 %v921
    %2677 = vmatpush1.bf16.msra.mxu0 %v920
    %2678 = vmatprep.subr.bf16.mxu0 %v913
    %2679 = vmatpush1.bf16.msra.mxu0 %v912
    %2680 = vmatprep.subr.bf16.mxu0 %v905
    %2681 = vmatpush1.bf16.msra.mxu0 %v904
    %2682 = vmatprep.subr.bf16.mxu0 %v897
    %2683 = vmatpush1.bf16.msra.mxu0 %v896
    %2684 = vmatprep.subr.bf16.mxu0 %v889
    %2685 = vmatpush1.bf16.msra.mxu0 %v888
    %2686 = vmatprep.subr.bf16.mxu0 %v1009
    %2687 = vmatpush2.bf16.msra.mxu0 %v1008
    %2688 = vmatprep.subr.bf16.mxu0 %v1001
    %2689 = vmatpush2.bf16.msra.mxu0 %v1000
    %2690 = vmatprep.subr.bf16.mxu0 %v993
    %2691 = vmatpush2.bf16.msra.mxu0 %v992
    %2692 = vmatprep.subr.bf16.mxu0 %v985
    %2693 = vmatpush2.bf16.msra.mxu0 %v984
    %2694 = vmatprep.subr.bf16.mxu0 %v977
    %2695 = vmatpush2.bf16.msra.mxu0 %v976
    %2696 = vmatprep.subr.bf16.mxu0 %v969
    %2697 = vmatpush2.bf16.msra.mxu0 %v968
    %2698 = vmatprep.subr.bf16.mxu0 %v961
    %2699 = vmatpush2.bf16.msra.mxu0 %v960
    %2700 = vmatprep.subr.bf16.mxu0 %v953
    %2701 = vmatpush2.bf16.msra.mxu0 %v952
    %2702 = vmatprep.mubr.bf16.mxu0 %v2544
    %2703 = vmatmul.mubr.bf16.gmra.mxu0 %v2543
    %v2704 = vpop.f32.mrf.mxu0
    %v2705 = vadd.f32 0.0, %v2704
    %v2706 = vpop.f32.mrf.mxu0
    %v2707 = vadd.f32 0.0, %v2706
    %v2708 = vpop.f32.mrf.mxu0
    %v2709 = vpop.f32.mrf.mxu0
    %2710 = vdwg.mxu0
    %v2719 = vrot.slane %v2582, 3
    %v2720 = vrot.slane %v2584, 3
    %v2721 = vrot.slane %v2623, 3
    %v2722 = vrot.slane %v2625, 3
    %v2723 = vrot.slane %v2664, 3
    %v2724 = vrot.slane %v2666, 3
    %v2725 = vrot.slane %v2705, 3
    %v2726 = vrot.slane %v2707, 3
    %v2735 = vadd.f32 %v226, %v2719
    %v2736 = vadd.f32 %v228, %v2720
    %v2737 = vadd.f32 %v267, %v2721
    %v2738 = vadd.f32 %v269, %v2722
    %v2739 = vadd.f32 %v308, %v2723
    %v2740 = vadd.f32 %v310, %v2724
    %v2741 = vadd.f32 %v349, %v2725
    %v2742 = vadd.f32 %v351, %v2726
    %v2743 = vxor.u32 %v2735, 2147483648
    %v2744 = vxor.u32 %v2736, 2147483648
    %v2745 = vmul.f32 %v2743, 1.442695
    %v2746 = vpow.pop %v2745
    %v2747 = vmul.f32 %v2744, 1.442695
    %v2748 = vpow.pop %v2747
    %v2749 = vadd.f32 %v2746, 1.0
    %v2750 = vadd.f32 %v2748, 1.0
    %v2751 = vrcp.pop %v2749
    %v2752 = vmul.f32 1.0, %v2751
    %v2753 = vrcp.pop %v2750
    %v2754 = vmul.f32 1.0, %v2753
    %v2755 = vxor.u32 %v2737, 2147483648
    %v2756 = vxor.u32 %v2738, 2147483648
    %v2757 = vmul.f32 %v2755, 1.442695
    %v2758 = vpow.pop %v2757
    %v2759 = vmul.f32 %v2756, 1.442695
    %v2760 = vpow.pop %v2759
    %v2761 = vadd.f32 %v2758, 1.0
    %v2762 = vadd.f32 %v2760, 1.0
    %v2763 = vrcp.pop %v2761
    %v2764 = vmul.f32 1.0, %v2763
    %v2765 = vrcp.pop %v2762
    %v2766 = vmul.f32 1.0, %v2765
    %v2767 = vtanh.pop %v2739
    %v2768 = vtanh.pop %v2740
    %v2769 = vxor.u32 %v2741, 2147483648
    %v2770 = vxor.u32 %v2742, 2147483648
    %v2771 = vmul.f32 %v2769, 1.442695
    %v2772 = vpow.pop %v2771
    %v2773 = vmul.f32 %v2770, 1.442695
    %v2774 = vpow.pop %v2773
    %v2775 = vadd.f32 %v2772, 1.0
    %v2776 = vadd.f32 %v2774, 1.0
    %v2777 = vrcp.pop %v2775
    %v2778 = vmul.f32 1.0, %v2777
    %v2779 = vrcp.pop %v2776
    %v2780 = vmul.f32 1.0, %v2779
    %v2783 = vrot.slane %v2506, 7
    %v2784 = vrot.slane %v2507, 7
    %v2787 = vmul.f32 %v2764, %v2783
    %v2788 = vmul.f32 %v2766, %v2784
    %v2789 = vmul.f32 %v2752, %v2767
    %v2790 = vmul.f32 %v2754, %v2768
    %v2791 = vadd.f32 %v2787, %v2789
    %v2792 = vadd.f32 %v2788, %v2790
    %v2793 = vtanh.pop %v2791
    %v2794 = vtanh.pop %v2792
    %v2795 = vmul.f32 %v2778, %v2793
    %v2796 = vmul.f32 %v2780, %v2794
    %v2799 = vrot.slane %v2795, 5
    %v2800 = vrot.slane %v2796, 5
    %v2803 = vadd.f32 %v2518, %v2799
    %v2804 = vadd.f32 %v2519, %v2800
    %v2805 = vcombine.high %v2795, %v2796
    %v2807 = vunpack.c.l.s4 1966171168
    %v2808 = vunpack.c.0.s8 %v2807
    %v2809 = vlaneseq
    %v2810 = vshrl.u32 %v2809, 7
    %v2811 = vsub.s32 %v2808, %v2810
    %v2812 = vrot.slane %v2805, %v2811
    %v2813 = vcombine.high %v2812, %v2812
    %v2815 = vunpack.c.l.s4 1966171168
    %v2816 = vunpack.c.0.s8 %v2815
    %v2817 = vlaneseq
    %v2818 = vshrl.u32 %v2817, 7
    %v2819 = vsub.s32 %v2816, %v2818
    %v2820 = vrot.slane %v2813, %v2819
    %s2822 = scalar_lea.vmem %s8, 5
    %2823 = vst.msk [vmem:[%s2822] ss:$8 sm:$0x3] %vm1392, %v2820
    %2824 = vst.msk [vmem:[%s2822] ss:$8 sm:$0x0] %vm1392, %v2820
    %v2825 = vpack.c.bf16 %v2795, %v2795
    %v2826 = vpack.c.bf16 %v2796, %v2796
    %v2828 = vshrl.u32 %v2825, 16
    %v2830 = vrot.slane %v2828, 2
    %v2832 = vshrl.u32 %v2826, 16
    %v2834 = vrot.slane %v2832, 2
    %2837 = vmatprep.subr.bf16.mxu0 %v939
    %2838 = vmatpush1.bf16.msra.mxu0 %v938
    %2839 = vmatprep.subr.bf16.mxu0 %v931
    %2840 = vmatpush1.bf16.msra.mxu0 %v930
    %2841 = vmatprep.subr.bf16.mxu0 %v923
    %2842 = vmatpush1.bf16.msra.mxu0 %v922
    %2843 = vmatprep.subr.bf16.mxu0 %v915
    %2844 = vmatpush1.bf16.msra.mxu0 %v914
    %2845 = vmatprep.subr.bf16.mxu0 %v907
    %2846 = vmatpush1.bf16.msra.mxu0 %v906
    %2847 = vmatprep.subr.bf16.mxu0 %v899
    %2848 = vmatpush1.bf16.msra.mxu0 %v898
    %2849 = vmatprep.subr.bf16.mxu0 %v891
    %2850 = vmatpush1.bf16.msra.mxu0 %v890
    %2851 = vmatprep.subr.bf16.mxu0 %v883
    %2852 = vmatpush1.bf16.msra.mxu0 %v882
    %2853 = vmatprep.subr.bf16.mxu0 %v1003
    %2854 = vmatpush2.bf16.msra.mxu0 %v1002
    %2855 = vmatprep.subr.bf16.mxu0 %v995
    %2856 = vmatpush2.bf16.msra.mxu0 %v994
    %2857 = vmatprep.subr.bf16.mxu0 %v987
    %2858 = vmatpush2.bf16.msra.mxu0 %v986
    %2859 = vmatprep.subr.bf16.mxu0 %v979
    %2860 = vmatpush2.bf16.msra.mxu0 %v978
    %2861 = vmatprep.subr.bf16.mxu0 %v971
    %2862 = vmatpush2.bf16.msra.mxu0 %v970
    %2863 = vmatprep.subr.bf16.mxu0 %v963
    %2864 = vmatpush2.bf16.msra.mxu0 %v962
    %2865 = vmatprep.subr.bf16.mxu0 %v955
    %2866 = vmatpush2.bf16.msra.mxu0 %v954
    %2867 = vmatprep.subr.bf16.mxu0 %v947
    %2868 = vmatpush2.bf16.msra.mxu0 %v946
    %2869 = vmatprep.mubr.bf16.mxu0 %v2834
    %2870 = vmatmul.mubr.bf16.gmra.mxu0 %v2830
    %v2871 = vpop.f32.mrf.mxu0
    %v2872 = vadd.f32 0.0, %v2871
    %v2873 = vpop.f32.mrf.mxu0
    %v2874 = vadd.f32 0.0, %v2873
    %v2875 = vpop.f32.mrf.mxu0
    %v2876 = vpop.f32.mrf.mxu0
    %2877 = vdwg.mxu0
    %2878 = vmatprep.subr.bf16.mxu0 %v941
    %2879 = vmatpush1.bf16.msra.mxu0 %v940
    %2880 = vmatprep.subr.bf16.mxu0 %v933
    %2881 = vmatpush1.bf16.msra.mxu0 %v932
    %2882 = vmatprep.subr.bf16.mxu0 %v925
    %2883 = vmatpush1.bf16.msra.mxu0 %v924
    %2884 = vmatprep.subr.bf16.mxu0 %v917
    %2885 = vmatpush1.bf16.msra.mxu0 %v916
    %2886 = vmatprep.subr.bf16.mxu0 %v909
    %2887 = vmatpush1.bf16.msra.mxu0 %v908
    %2888 = vmatprep.subr.bf16.mxu0 %v901
    %2889 = vmatpush1.bf16.msra.mxu0 %v900
    %2890 = vmatprep.subr.bf16.mxu0 %v893
    %2891 = vmatpush1.bf16.msra.mxu0 %v892
    %2892 = vmatprep.subr.bf16.mxu0 %v885
    %2893 = vmatpush1.bf16.msra.mxu0 %v884
    %2894 = vmatprep.subr.bf16.mxu0 %v1005
    %2895 = vmatpush2.bf16.msra.mxu0 %v1004
    %2896 = vmatprep.subr.bf16.mxu0 %v997
    %2897 = vmatpush2.bf16.msra.mxu0 %v996
    %2898 = vmatprep.subr.bf16.mxu0 %v989
    %2899 = vmatpush2.bf16.msra.mxu0 %v988
    %2900 = vmatprep.subr.bf16.mxu0 %v981
    %2901 = vmatpush2.bf16.msra.mxu0 %v980
    %2902 = vmatprep.subr.bf16.mxu0 %v973
    %2903 = vmatpush2.bf16.msra.mxu0 %v972
    %2904 = vmatprep.subr.bf16.mxu0 %v965
    %2905 = vmatpush2.bf16.msra.mxu0 %v964
    %2906 = vmatprep.subr.bf16.mxu0 %v957
    %2907 = vmatpush2.bf16.msra.mxu0 %v956
    %2908 = vmatprep.subr.bf16.mxu0 %v949
    %2909 = vmatpush2.bf16.msra.mxu0 %v948
    %2910 = vmatprep.mubr.bf16.mxu0 %v2834
    %2911 = vmatmul.mubr.bf16.gmra.mxu0 %v2830
    %v2912 = vpop.f32.mrf.mxu0
    %v2913 = vadd.f32 0.0, %v2912
    %v2914 = vpop.f32.mrf.mxu0
    %v2915 = vadd.f32 0.0, %v2914
    %v2916 = vpop.f32.mrf.mxu0
    %v2917 = vpop.f32.mrf.mxu0
    %2918 = vdwg.mxu0
    %2919 = vmatprep.subr.bf16.mxu0 %v943
    %2920 = vmatpush1.bf16.msra.mxu0 %v942
    %2921 = vmatprep.subr.bf16.mxu0 %v935
    %2922 = vmatpush1.bf16.msra.mxu0 %v934
    %2923 = vmatprep.subr.bf16.mxu0 %v927
    %2924 = vmatpush1.bf16.msra.mxu0 %v926
    %2925 = vmatprep.subr.bf16.mxu0 %v919
    %2926 = vmatpush1.bf16.msra.mxu0 %v918
    %2927 = vmatprep.subr.bf16.mxu0 %v911
    %2928 = vmatpush1.bf16.msra.mxu0 %v910
    %2929 = vmatprep.subr.bf16.mxu0 %v903
    %2930 = vmatpush1.bf16.msra.mxu0 %v902
    %2931 = vmatprep.subr.bf16.mxu0 %v895
    %2932 = vmatpush1.bf16.msra.mxu0 %v894
    %2933 = vmatprep.subr.bf16.mxu0 %v887
    %2934 = vmatpush1.bf16.msra.mxu0 %v886
    %2935 = vmatprep.subr.bf16.mxu0 %v1007
    %2936 = vmatpush2.bf16.msra.mxu0 %v1006
    %2937 = vmatprep.subr.bf16.mxu0 %v999
    %2938 = vmatpush2.bf16.msra.mxu0 %v998
    %2939 = vmatprep.subr.bf16.mxu0 %v991
    %2940 = vmatpush2.bf16.msra.mxu0 %v990
    %2941 = vmatprep.subr.bf16.mxu0 %v983
    %2942 = vmatpush2.bf16.msra.mxu0 %v982
    %2943 = vmatprep.subr.bf16.mxu0 %v975
    %2944 = vmatpush2.bf16.msra.mxu0 %v974
    %2945 = vmatprep.subr.bf16.mxu0 %v967
    %2946 = vmatpush2.bf16.msra.mxu0 %v966
    %2947 = vmatprep.subr.bf16.mxu0 %v959
    %2948 = vmatpush2.bf16.msra.mxu0 %v958
    %2949 = vmatprep.subr.bf16.mxu0 %v951
    %2950 = vmatpush2.bf16.msra.mxu0 %v950
    %2951 = vmatprep.mubr.bf16.mxu0 %v2834
    %2952 = vmatmul.mubr.bf16.gmra.mxu0 %v2830
    %v2953 = vpop.f32.mrf.mxu0
    %v2954 = vadd.f32 0.0, %v2953
    %v2955 = vpop.f32.mrf.mxu0
    %v2956 = vadd.f32 0.0, %v2955
    %v2957 = vpop.f32.mrf.mxu0
    %v2958 = vpop.f32.mrf.mxu0
    %2959 = vdwg.mxu0
    %2960 = vmatprep.subr.bf16.mxu0 %v945
    %2961 = vmatpush1.bf16.msra.mxu0 %v944
    %2962 = vmatprep.subr.bf16.mxu0 %v937
    %2963 = vmatpush1.bf16.msra.mxu0 %v936
    %2964 = vmatprep.subr.bf16.mxu0 %v929
    %2965 = vmatpush1.bf16.msra.mxu0 %v928
    %2966 = vmatprep.subr.bf16.mxu0 %v921
    %2967 = vmatpush1.bf16.msra.mxu0 %v920
    %2968 = vmatprep.subr.bf16.mxu0 %v913
    %2969 = vmatpush1.bf16.msra.mxu0 %v912
    %2970 = vmatprep.subr.bf16.mxu0 %v905
    %2971 = vmatpush1.bf16.msra.mxu0 %v904
    %2972 = vmatprep.subr.bf16.mxu0 %v897
    %2973 = vmatpush1.bf16.msra.mxu0 %v896
    %2974 = vmatprep.subr.bf16.mxu0 %v889
    %2975 = vmatpush1.bf16.msra.mxu0 %v888
    %2976 = vmatprep.subr.bf16.mxu0 %v1009
    %2977 = vmatpush2.bf16.msra.mxu0 %v1008
    %2978 = vmatprep.subr.bf16.mxu0 %v1001
    %2979 = vmatpush2.bf16.msra.mxu0 %v1000
    %2980 = vmatprep.subr.bf16.mxu0 %v993
    %2981 = vmatpush2.bf16.msra.mxu0 %v992
    %2982 = vmatprep.subr.bf16.mxu0 %v985
    %2983 = vmatpush2.bf16.msra.mxu0 %v984
    %2984 = vmatprep.subr.bf16.mxu0 %v977
    %2985 = vmatpush2.bf16.msra.mxu0 %v976
    %2986 = vmatprep.subr.bf16.mxu0 %v969
    %2987 = vmatpush2.bf16.msra.mxu0 %v968
    %2988 = vmatprep.subr.bf16.mxu0 %v961
    %2989 = vmatpush2.bf16.msra.mxu0 %v960
    %2990 = vmatprep.subr.bf16.mxu0 %v953
    %2991 = vmatpush2.bf16.msra.mxu0 %v952
    %2992 = vmatprep.mubr.bf16.mxu0 %v2834
    %2993 = vmatmul.mubr.bf16.gmra.mxu0 %v2830
    %v2994 = vpop.f32.mrf.mxu0
    %v2995 = vadd.f32 0.0, %v2994
    %v2996 = vpop.f32.mrf.mxu0
    %v2997 = vadd.f32 0.0, %v2996
    %v2998 = vpop.f32.mrf.mxu0
    %v2999 = vpop.f32.mrf.mxu0
    %3000 = vdwg.mxu0
    %v3009 = vrot.slane %v2872, 2
    %v3010 = vrot.slane %v2874, 2
    %v3011 = vrot.slane %v2913, 2
    %v3012 = vrot.slane %v2915, 2
    %v3013 = vrot.slane %v2954, 2
    %v3014 = vrot.slane %v2956, 2
    %v3015 = vrot.slane %v2995, 2
    %v3016 = vrot.slane %v2997, 2
    %v3025 = vadd.f32 %v226, %v3009
    %v3026 = vadd.f32 %v228, %v3010
    %v3027 = vadd.f32 %v267, %v3011
    %v3028 = vadd.f32 %v269, %v3012
    %v3029 = vadd.f32 %v308, %v3013
    %v3030 = vadd.f32 %v310, %v3014
    %v3031 = vadd.f32 %v349, %v3015
    %v3032 = vadd.f32 %v351, %v3016
    %v3033 = vxor.u32 %v3025, 2147483648
    %v3034 = vxor.u32 %v3026, 2147483648
    %v3035 = vmul.f32 %v3033, 1.442695
    %v3036 = vpow.pop %v3035
    %v3037 = vmul.f32 %v3034, 1.442695
    %v3038 = vpow.pop %v3037
    %v3039 = vadd.f32 %v3036, 1.0
    %v3040 = vadd.f32 %v3038, 1.0
    %v3041 = vrcp.pop %v3039
    %v3042 = vmul.f32 1.0, %v3041
    %v3043 = vrcp.pop %v3040
    %v3044 = vmul.f32 1.0, %v3043
    %v3045 = vxor.u32 %v3027, 2147483648
    %v3046 = vxor.u32 %v3028, 2147483648
    %v3047 = vmul.f32 %v3045, 1.442695
    %v3048 = vpow.pop %v3047
    %v3049 = vmul.f32 %v3046, 1.442695
    %v3050 = vpow.pop %v3049
    %v3051 = vadd.f32 %v3048, 1.0
    %v3052 = vadd.f32 %v3050, 1.0
    %v3053 = vrcp.pop %v3051
    %v3054 = vmul.f32 1.0, %v3053
    %v3055 = vrcp.pop %v3052
    %v3056 = vmul.f32 1.0, %v3055
    %v3057 = vtanh.pop %v3029
    %v3058 = vtanh.pop %v3030
    %v3059 = vxor.u32 %v3031, 2147483648
    %v3060 = vxor.u32 %v3032, 2147483648
    %v3061 = vmul.f32 %v3059, 1.442695
    %v3062 = vpow.pop %v3061
    %v3063 = vmul.f32 %v3060, 1.442695
    %v3064 = vpow.pop %v3063
    %v3065 = vadd.f32 %v3062, 1.0
    %v3066 = vadd.f32 %v3064, 1.0
    %v3067 = vrcp.pop %v3065
    %v3068 = vmul.f32 1.0, %v3067
    %v3069 = vrcp.pop %v3066
    %v3070 = vmul.f32 1.0, %v3069
    %v3073 = vrot.slane %v2791, 7
    %v3074 = vrot.slane %v2792, 7
    %v3077 = vmul.f32 %v3054, %v3073
    %v3078 = vmul.f32 %v3056, %v3074
    %v3079 = vmul.f32 %v3042, %v3057
    %v3080 = vmul.f32 %v3044, %v3058
    %v3081 = vadd.f32 %v3077, %v3079
    %v3082 = vadd.f32 %v3078, %v3080
    %v3083 = vtanh.pop %v3081
    %v3084 = vtanh.pop %v3082
    %v3085 = vmul.f32 %v3068, %v3083
    %v3086 = vmul.f32 %v3070, %v3084
    %v3089 = vrot.slane %v3085, 6
    %v3090 = vrot.slane %v3086, 6
    %v3093 = vadd.f32 %v2803, %v3089
    %v3094 = vadd.f32 %v2804, %v3090
    %v3095 = vcombine.high %v3085, %v3086
    %v3097 = vunpack.c.l.s4 1966171168
    %v3098 = vunpack.c.0.s8 %v3097
    %v3099 = vlaneseq
    %v3100 = vshrl.u32 %v3099, 7
    %v3101 = vsub.s32 %v3098, %v3100
    %v3102 = vrot.slane %v3095, %v3101
    %v3104 = vunpack.c.l.s4 1966171168
    %v3105 = vunpack.c.0.s8 %v3104
    %v3106 = vlaneseq
    %v3107 = vshrl.u32 %v3106, 7
    %v3108 = vsub.s32 %v3105, %v3107
    %v3109 = vrot.slane %v3102, %v3108
    %v3110 = vcombine.high %v3109, %v3109
    %s3112 = scalar_lea.vmem %s8, 6
    %3113 = vst.msk [vmem:[%s3112] ss:$8 sm:$0x3] %vm1392, %v3110
    %3114 = vst.msk [vmem:[%s3112] ss:$8 sm:$0x0] %vm1392, %v3110
    %v3115 = vpack.c.bf16 %v3085, %v3085
    %v3116 = vpack.c.bf16 %v3086, %v3086
    %v3119 = vrot.slane %v3115, 3
    %v3120 = vrot.slane %v3116, 3
    %3123 = vmatprep.subr.bf16.mxu0 %v939
    %3124 = vmatpush1.bf16.msra.mxu0 %v938
    %3125 = vmatprep.subr.bf16.mxu0 %v931
    %3126 = vmatpush1.bf16.msra.mxu0 %v930
    %3127 = vmatprep.subr.bf16.mxu0 %v923
    %3128 = vmatpush1.bf16.msra.mxu0 %v922
    %3129 = vmatprep.subr.bf16.mxu0 %v915
    %3130 = vmatpush1.bf16.msra.mxu0 %v914
    %3131 = vmatprep.subr.bf16.mxu0 %v907
    %3132 = vmatpush1.bf16.msra.mxu0 %v906
    %3133 = vmatprep.subr.bf16.mxu0 %v899
    %3134 = vmatpush1.bf16.msra.mxu0 %v898
    %3135 = vmatprep.subr.bf16.mxu0 %v891
    %3136 = vmatpush1.bf16.msra.mxu0 %v890
    %3137 = vmatprep.subr.bf16.mxu0 %v883
    %3138 = vmatpush1.bf16.msra.mxu0 %v882
    %3139 = vmatprep.subr.bf16.mxu0 %v1003
    %3140 = vmatpush2.bf16.msra.mxu0 %v1002
    %3141 = vmatprep.subr.bf16.mxu0 %v995
    %3142 = vmatpush2.bf16.msra.mxu0 %v994
    %3143 = vmatprep.subr.bf16.mxu0 %v987
    %3144 = vmatpush2.bf16.msra.mxu0 %v986
    %3145 = vmatprep.subr.bf16.mxu0 %v979
    %3146 = vmatpush2.bf16.msra.mxu0 %v978
    %3147 = vmatprep.subr.bf16.mxu0 %v971
    %3148 = vmatpush2.bf16.msra.mxu0 %v970
    %3149 = vmatprep.subr.bf16.mxu0 %v963
    %3150 = vmatpush2.bf16.msra.mxu0 %v962
    %3151 = vmatprep.subr.bf16.mxu0 %v955
    %3152 = vmatpush2.bf16.msra.mxu0 %v954
    %3153 = vmatprep.subr.bf16.mxu0 %v947
    %3154 = vmatpush2.bf16.msra.mxu0 %v946
    %3155 = vmatprep.mubr.bf16.mxu0 %v3120
    %3156 = vmatmul.mubr.bf16.gmra.mxu0 %v3119
    %v3157 = vpop.f32.mrf.mxu0
    %v3158 = vadd.f32 0.0, %v3157
    %v3159 = vpop.f32.mrf.mxu0
    %v3160 = vadd.f32 0.0, %v3159
    %v3161 = vpop.f32.mrf.mxu0
    %v3162 = vpop.f32.mrf.mxu0
    %3163 = vdwg.mxu0
    %3164 = vmatprep.subr.bf16.mxu0 %v941
    %3165 = vmatpush1.bf16.msra.mxu0 %v940
    %3166 = vmatprep.subr.bf16.mxu0 %v933
    %3167 = vmatpush1.bf16.msra.mxu0 %v932
    %3168 = vmatprep.subr.bf16.mxu0 %v925
    %3169 = vmatpush1.bf16.msra.mxu0 %v924
    %3170 = vmatprep.subr.bf16.mxu0 %v917
    %3171 = vmatpush1.bf16.msra.mxu0 %v916
    %3172 = vmatprep.subr.bf16.mxu0 %v909
    %3173 = vmatpush1.bf16.msra.mxu0 %v908
    %3174 = vmatprep.subr.bf16.mxu0 %v901
    %3175 = vmatpush1.bf16.msra.mxu0 %v900
    %3176 = vmatprep.subr.bf16.mxu0 %v893
    %3177 = vmatpush1.bf16.msra.mxu0 %v892
    %3178 = vmatprep.subr.bf16.mxu0 %v885
    %3179 = vmatpush1.bf16.msra.mxu0 %v884
    %3180 = vmatprep.subr.bf16.mxu0 %v1005
    %3181 = vmatpush2.bf16.msra.mxu0 %v1004
    %3182 = vmatprep.subr.bf16.mxu0 %v997
    %3183 = vmatpush2.bf16.msra.mxu0 %v996
    %3184 = vmatprep.subr.bf16.mxu0 %v989
    %3185 = vmatpush2.bf16.msra.mxu0 %v988
    %3186 = vmatprep.subr.bf16.mxu0 %v981
    %3187 = vmatpush2.bf16.msra.mxu0 %v980
    %3188 = vmatprep.subr.bf16.mxu0 %v973
    %3189 = vmatpush2.bf16.msra.mxu0 %v972
    %3190 = vmatprep.subr.bf16.mxu0 %v965
    %3191 = vmatpush2.bf16.msra.mxu0 %v964
    %3192 = vmatprep.subr.bf16.mxu0 %v957
    %3193 = vmatpush2.bf16.msra.mxu0 %v956
    %3194 = vmatprep.subr.bf16.mxu0 %v949
    %3195 = vmatpush2.bf16.msra.mxu0 %v948
    %3196 = vmatprep.mubr.bf16.mxu0 %v3120
    %3197 = vmatmul.mubr.bf16.gmra.mxu0 %v3119
    %v3198 = vpop.f32.mrf.mxu0
    %v3199 = vadd.f32 0.0, %v3198
    %v3200 = vpop.f32.mrf.mxu0
    %v3201 = vadd.f32 0.0, %v3200
    %v3202 = vpop.f32.mrf.mxu0
    %v3203 = vpop.f32.mrf.mxu0
    %3204 = vdwg.mxu0
    %3205 = vmatprep.subr.bf16.mxu0 %v943
    %3206 = vmatpush1.bf16.msra.mxu0 %v942
    %3207 = vmatprep.subr.bf16.mxu0 %v935
    %3208 = vmatpush1.bf16.msra.mxu0 %v934
    %3209 = vmatprep.subr.bf16.mxu0 %v927
    %3210 = vmatpush1.bf16.msra.mxu0 %v926
    %3211 = vmatprep.subr.bf16.mxu0 %v919
    %3212 = vmatpush1.bf16.msra.mxu0 %v918
    %3213 = vmatprep.subr.bf16.mxu0 %v911
    %3214 = vmatpush1.bf16.msra.mxu0 %v910
    %3215 = vmatprep.subr.bf16.mxu0 %v903
    %3216 = vmatpush1.bf16.msra.mxu0 %v902
    %3217 = vmatprep.subr.bf16.mxu0 %v895
    %3218 = vmatpush1.bf16.msra.mxu0 %v894
    %3219 = vmatprep.subr.bf16.mxu0 %v887
    %3220 = vmatpush1.bf16.msra.mxu0 %v886
    %3221 = vmatprep.subr.bf16.mxu0 %v1007
    %3222 = vmatpush2.bf16.msra.mxu0 %v1006
    %3223 = vmatprep.subr.bf16.mxu0 %v999
    %3224 = vmatpush2.bf16.msra.mxu0 %v998
    %3225 = vmatprep.subr.bf16.mxu0 %v991
    %3226 = vmatpush2.bf16.msra.mxu0 %v990
    %3227 = vmatprep.subr.bf16.mxu0 %v983
    %3228 = vmatpush2.bf16.msra.mxu0 %v982
    %3229 = vmatprep.subr.bf16.mxu0 %v975
    %3230 = vmatpush2.bf16.msra.mxu0 %v974
    %3231 = vmatprep.subr.bf16.mxu0 %v967
    %3232 = vmatpush2.bf16.msra.mxu0 %v966
    %3233 = vmatprep.subr.bf16.mxu0 %v959
    %3234 = vmatpush2.bf16.msra.mxu0 %v958
    %3235 = vmatprep.subr.bf16.mxu0 %v951
    %3236 = vmatpush2.bf16.msra.mxu0 %v950
    %3237 = vmatprep.mubr.bf16.mxu0 %v3120
    %3238 = vmatmul.mubr.bf16.gmra.mxu0 %v3119
    %v3239 = vpop.f32.mrf.mxu0
    %v3240 = vadd.f32 0.0, %v3239
    %v3241 = vpop.f32.mrf.mxu0
    %v3242 = vadd.f32 0.0, %v3241
    %v3243 = vpop.f32.mrf.mxu0
    %v3244 = vpop.f32.mrf.mxu0
    %3245 = vdwg.mxu0
    %3246 = vmatprep.subr.bf16.mxu0 %v945
    %3247 = vmatpush1.bf16.msra.mxu0 %v944
    %3248 = vmatprep.subr.bf16.mxu0 %v937
    %3249 = vmatpush1.bf16.msra.mxu0 %v936
    %3250 = vmatprep.subr.bf16.mxu0 %v929
    %3251 = vmatpush1.bf16.msra.mxu0 %v928
    %3252 = vmatprep.subr.bf16.mxu0 %v921
    %3253 = vmatpush1.bf16.msra.mxu0 %v920
    %3254 = vmatprep.subr.bf16.mxu0 %v913
    %3255 = vmatpush1.bf16.msra.mxu0 %v912
    %3256 = vmatprep.subr.bf16.mxu0 %v905
    %3257 = vmatpush1.bf16.msra.mxu0 %v904
    %3258 = vmatprep.subr.bf16.mxu0 %v897
    %3259 = vmatpush1.bf16.msra.mxu0 %v896
    %3260 = vmatprep.subr.bf16.mxu0 %v889
    %3261 = vmatpush1.bf16.msra.mxu0 %v888
    %3262 = vmatprep.subr.bf16.mxu0 %v1009
    %3263 = vmatpush2.bf16.msra.mxu0 %v1008
    %3264 = vmatprep.subr.bf16.mxu0 %v1001
    %3265 = vmatpush2.bf16.msra.mxu0 %v1000
    %3266 = vmatprep.subr.bf16.mxu0 %v993
    %3267 = vmatpush2.bf16.msra.mxu0 %v992
    %3268 = vmatprep.subr.bf16.mxu0 %v985
    %3269 = vmatpush2.bf16.msra.mxu0 %v984
    %3270 = vmatprep.subr.bf16.mxu0 %v977
    %3271 = vmatpush2.bf16.msra.mxu0 %v976
    %3272 = vmatprep.subr.bf16.mxu0 %v969
    %3273 = vmatpush2.bf16.msra.mxu0 %v968
    %3274 = vmatprep.subr.bf16.mxu0 %v961
    %3275 = vmatpush2.bf16.msra.mxu0 %v960
    %3276 = vmatprep.subr.bf16.mxu0 %v953
    %3277 = vmatpush2.bf16.msra.mxu0 %v952
    %3278 = vmatprep.mubr.bf16.mxu0 %v3120
    %3279 = vmatmul.mubr.bf16.gmra.mxu0 %v3119
    %v3280 = vpop.f32.mrf.mxu0
    %v3281 = vadd.f32 0.0, %v3280
    %v3282 = vpop.f32.mrf.mxu0
    %v3283 = vadd.f32 0.0, %v3282
    %v3284 = vpop.f32.mrf.mxu0
    %v3285 = vpop.f32.mrf.mxu0
    %3286 = vdwg.mxu0
    %v3295 = vrot.slane %v3158, 1
    %v3296 = vrot.slane %v3160, 1
    %v3297 = vrot.slane %v3199, 1
    %v3298 = vrot.slane %v3201, 1
    %v3299 = vrot.slane %v3240, 1
    %v3300 = vrot.slane %v3242, 1
    %v3301 = vrot.slane %v3281, 1
    %v3302 = vrot.slane %v3283, 1
    %v3311 = vadd.f32 %v226, %v3295
    %v3312 = vadd.f32 %v228, %v3296
    %v3313 = vadd.f32 %v267, %v3297
    %v3314 = vadd.f32 %v269, %v3298
    %v3315 = vadd.f32 %v308, %v3299
    %v3316 = vadd.f32 %v310, %v3300
    %v3317 = vadd.f32 %v349, %v3301
    %v3318 = vadd.f32 %v351, %v3302
    %v3319 = vxor.u32 %v3311, 2147483648
    %v3320 = vxor.u32 %v3312, 2147483648
    %v3321 = vmul.f32 %v3319, 1.442695
    %v3322 = vpow.pop %v3321
    %v3323 = vmul.f32 %v3320, 1.442695
    %v3324 = vpow.pop %v3323
    %v3325 = vadd.f32 %v3322, 1.0
    %v3326 = vadd.f32 %v3324, 1.0
    %v3327 = vrcp.pop %v3325
    %v3328 = vmul.f32 1.0, %v3327
    %v3329 = vrcp.pop %v3326
    %v3330 = vmul.f32 1.0, %v3329
    %v3331 = vxor.u32 %v3313, 2147483648
    %v3332 = vxor.u32 %v3314, 2147483648
    %v3333 = vmul.f32 %v3331, 1.442695
    %v3334 = vpow.pop %v3333
    %v3335 = vmul.f32 %v3332, 1.442695
    %v3336 = vpow.pop %v3335
    %v3337 = vadd.f32 %v3334, 1.0
    %v3338 = vadd.f32 %v3336, 1.0
    %v3339 = vrcp.pop %v3337
    %v3340 = vmul.f32 1.0, %v3339
    %v3341 = vrcp.pop %v3338
    %v3342 = vmul.f32 1.0, %v3341
    %v3343 = vtanh.pop %v3315
    %v3344 = vtanh.pop %v3316
    %v3345 = vxor.u32 %v3317, 2147483648
    %v3346 = vxor.u32 %v3318, 2147483648
    %v3347 = vmul.f32 %v3345, 1.442695
    %v3348 = vpow.pop %v3347
    %v3349 = vmul.f32 %v3346, 1.442695
    %v3350 = vpow.pop %v3349
    %v3351 = vadd.f32 %v3348, 1.0
    %v3352 = vadd.f32 %v3350, 1.0
    %v3353 = vrcp.pop %v3351
    %v3354 = vmul.f32 1.0, %v3353
    %v3355 = vrcp.pop %v3352
    %v3356 = vmul.f32 1.0, %v3355
    %v3359 = vrot.slane %v3081, 7
    %v3360 = vrot.slane %v3082, 7
    %v3363 = vmul.f32 %v3340, %v3359
    %v3364 = vmul.f32 %v3342, %v3360
    %v3365 = vmul.f32 %v3328, %v3343
    %v3366 = vmul.f32 %v3330, %v3344
    %v3367 = vadd.f32 %v3363, %v3365
    %v3368 = vadd.f32 %v3364, %v3366
    %v3369 = vtanh.pop %v3367
    %v3370 = vtanh.pop %v3368
    %v3371 = vmul.f32 %v3354, %v3369
    %v3372 = vmul.f32 %v3356, %v3370
    %v3375 = vrot.slane %v3371, 7
    %v3376 = vrot.slane %v3372, 7
    %v3379 = vadd.f32 %v3093, %v3375
    %v3380 = vadd.f32 %v3094, %v3376
    %v3381 = vcombine.high %v3371, %v3372
    %v3383 = vunpack.c.l.s4 1966171168
    %v3384 = vunpack.c.0.s8 %v3383
    %v3385 = vlaneseq
    %v3386 = vshrl.u32 %v3385, 7
    %v3387 = vsub.s32 %v3384, %v3386
    %v3388 = vrot.slane %v3381, %v3387
    %v3389 = vcombine.high %v3388, %v3388
    %v3391 = vunpack.c.l.s4 1966171168
    %v3392 = vunpack.c.0.s8 %v3391
    %v3393 = vlaneseq
    %v3394 = vshrl.u32 %v3393, 7
    %v3395 = vsub.s32 %v3392, %v3394
    %v3396 = vrot.slane %v3389, %v3395
    %v3397 = vcombine.high %v3396, %v3396
    %s3399 = scalar_lea.vmem %s8, 7
    %3400 = vst.msk [vmem:[%s3399] ss:$8 sm:$0x3] %vm1392, %v3397
    %3401 = vst.msk [vmem:[%s3399] ss:$8 sm:$0x0] %vm1392, %v3397
    %v3404 = vcombine.high %v3367, %v3368
    %v3406 = vunpack.c.l.s4 1966171168
    %v3407 = vunpack.c.0.s8 %v3406
    %v3408 = vlaneseq
    %v3409 = vshrl.u32 %v3408, 7
    %v3410 = vsub.s32 %v3407, %v3409
    %v3411 = vrot.slane %v3404, %v3410
    %v3412 = vcombine.high %v3411, %v3411
    %v3414 = vunpack.c.l.s4 1966171168
    %v3415 = vunpack.c.0.s8 %v3414
    %v3416 = vlaneseq
    %v3417 = vshrl.u32 %v3416, 7
    %v3418 = vsub.s32 %v3415, %v3417
    %v3419 = vrot.slane %v3412, %v3418
    %v3420 = vcombine.high %v3419, %v3419
    %3422 = vst.msk [vmem:[%s9] sm:$0x3] %vm1392, %v3420
    %v3423 = vmul.f32 %v3379, 0.125
    %v3424 = vmul.f32 %v3380, 0.125
    %v3425 = vld [vmem:[%s6] sm:$0xff]
    %v3426 = vld [vmem:[%s6 + $0x8] sm:$0xff]
    %v3427 = vld [vmem:[%s6 + $0x10] sm:$0xff]
    %v3428 = vld [vmem:[%s6 + $0x18] sm:$0xff]
    %v3429 = vld [vmem:[%s6 + $0x20] sm:$0xff]
    %v3430 = vld [vmem:[%s6 + $0x28] sm:$0xff]
    %v3431 = vld [vmem:[%s6 + $0x30] sm:$0xff]
    %v3432 = vld [vmem:[%s6 + $0x38] sm:$0xff]
    %v3433 = vld [vmem:[%s6 + $0x40] sm:$0xff]
    %v3434 = vld [vmem:[%s6 + $0x48] sm:$0xff]
    %v3435 = vld [vmem:[%s6 + $0x50] sm:$0xff]
    %v3436 = vld [vmem:[%s6 + $0x58] sm:$0xff]
    %v3437 = vld [vmem:[%s6 + $0x60] sm:$0xff]
    %v3438 = vld [vmem:[%s6 + $0x68] sm:$0xff]
    %v3439 = vld [vmem:[%s6 + $0x70] sm:$0xff]
    %v3440 = vld [vmem:[%s6 + $0x78] sm:$0xff]
    %v3441 = vld [vmem:[%s6 + $0x80] sm:$0xff]
    %v3442 = vld [vmem:[%s6 + $0x88] sm:$0xff]
    %v3443 = vld [vmem:[%s6 + $0x90] sm:$0xff]
    %v3444 = vld [vmem:[%s6 + $0x98] sm:$0xff]
    %v3445 = vld [vmem:[%s6 + $0xa0] sm:$0xff]
    %v3446 = vld [vmem:[%s6 + $0xa8] sm:$0xff]
    %v3447 = vld [vmem:[%s6 + $0xb0] sm:$0xff]
    %v3448 = vld [vmem:[%s6 + $0xb8] sm:$0xff]
    %v3449 = vld [vmem:[%s6 + $0xc0] sm:$0xff]
    %v3450 = vld [vmem:[%s6 + $0xc8] sm:$0xff]
    %v3451 = vld [vmem:[%s6 + $0xd0] sm:$0xff]
    %v3452 = vld [vmem:[%s6 + $0xd8] sm:$0xff]
    %v3453 = vld [vmem:[%s6 + $0xe0] sm:$0xff]
    %v3454 = vld [vmem:[%s6 + $0xe8] sm:$0xff]
    %v3455 = vld [vmem:[%s6 + $0xf0] sm:$0xff]
    %v3456 = vld [vmem:[%s6 + $0xf8] sm:$0xff]
    %v3457 = vld [vmem:[%s7] sm:$0x1]
    %3458 = vmatprep.subr.mxu0 0.0
    %3459 = vmatpush1.msra.mxu0 %v3440
    %3460 = vmatprep.subr.mxu0 0.0
    %3461 = vmatpush1.msra.mxu0 %v3439
    %3462 = vmatprep.subr.mxu0 0.0
    %3463 = vmatpush1.msra.mxu0 %v3438
    %3464 = vmatprep.subr.mxu0 0.0
    %3465 = vmatpush1.msra.mxu0 %v3437
    %3466 = vmatprep.subr.mxu0 0.0
    %3467 = vmatpush1.msra.mxu0 %v3436
    %3468 = vmatprep.subr.mxu0 0.0
    %3469 = vmatpush1.msra.mxu0 %v3435
    %3470 = vmatprep.subr.mxu0 0.0
    %3471 = vmatpush1.msra.mxu0 %v3434
    %3472 = vmatprep.subr.mxu0 0.0
    %3473 = vmatpush1.msra.mxu0 %v3433
    %3474 = vmatprep.subr.mxu0 0.0
    %3475 = vmatpush1.msra.mxu0 %v3432
    %3476 = vmatprep.subr.mxu0 0.0
    %3477 = vmatpush1.msra.mxu0 %v3431
    %3478 = vmatprep.subr.mxu0 0.0
    %3479 = vmatpush1.msra.mxu0 %v3430
    %3480 = vmatprep.subr.mxu0 0.0
    %3481 = vmatpush1.msra.mxu0 %v3429
    %3482 = vmatprep.subr.mxu0 0.0
    %3483 = vmatpush1.msra.mxu0 %v3428
    %3484 = vmatprep.subr.mxu0 0.0
    %3485 = vmatpush1.msra.mxu0 %v3427
    %3486 = vmatprep.subr.mxu0 0.0
    %3487 = vmatpush1.msra.mxu0 %v3426
    %3488 = vmatprep.subr.mxu0 0.0
    %3489 = vmatpush1.msra.mxu0 %v3425
    %3490 = vmatprep.subr.mxu0 0.0
    %3491 = vmatpush2.msra.mxu0 %v3456
    %3492 = vmatprep.subr.mxu0 0.0
    %3493 = vmatpush2.msra.mxu0 %v3455
    %3494 = vmatprep.subr.mxu0 0.0
    %3495 = vmatpush2.msra.mxu0 %v3454
    %3496 = vmatprep.subr.mxu0 0.0
    %3497 = vmatpush2.msra.mxu0 %v3453
    %3498 = vmatprep.subr.mxu0 0.0
    %3499 = vmatpush2.msra.mxu0 %v3452
    %3500 = vmatprep.subr.mxu0 0.0
    %3501 = vmatpush2.msra.mxu0 %v3451
    %3502 = vmatprep.subr.mxu0 0.0
    %3503 = vmatpush2.msra.mxu0 %v3450
    %3504 = vmatprep.subr.mxu0 0.0
    %3505 = vmatpush2.msra.mxu0 %v3449
    %3506 = vmatprep.subr.mxu0 0.0
    %3507 = vmatpush2.msra.mxu0 %v3448
    %3508 = vmatprep.subr.mxu0 0.0
    %3509 = vmatpush2.msra.mxu0 %v3447
    %3510 = vmatprep.subr.mxu0 0.0
    %3511 = vmatpush2.msra.mxu0 %v3446
    %3512 = vmatprep.subr.mxu0 0.0
    %3513 = vmatpush2.msra.mxu0 %v3445
    %3514 = vmatprep.subr.mxu0 0.0
    %3515 = vmatpush2.msra.mxu0 %v3444
    %3516 = vmatprep.subr.mxu0 0.0
    %3517 = vmatpush2.msra.mxu0 %v3443
    %3518 = vmatprep.subr.mxu0 0.0
    %3519 = vmatpush2.msra.mxu0 %v3442
    %3520 = vmatprep.subr.mxu0 0.0
    %3521 = vmatpush2.msra.mxu0 %v3441
    %3522 = vmatprep.mubr.f32.mxu0 %v3424
    %3523 = vmatmul.mubr.f32.gmra.mxu0 %v3423
    %v3524 = vpop.f32.mrf.mxu0
    %v3525 = vadd.f32 %v3457, %v3524
    %v3526 = vpop.f32.mrf.mxu0
    %3527 = vdwg.mxu0
    %vm3528 = vcmask 8192
    %v3529 = vsel %vm3528, %v3525, -inf
    %3530 = vmax.xlane.f32.xlu0 %v3529
    %v3531 = vpop.xlane.xlu0 %3530
    %v3532 = vsub.f32 %v3525, %v3531
    %v3533 = vmul.f32 %v3532, 1.442695
    %v3534 = vpow.pop %v3533
    %v3535 = vsel %vm3528, %v3534, 0.0
    %3536 = vadd.xlane.f32.xlu0 %v3535
    %v3537 = vpop.xlane.xlu0 %3536
    %v3538 = vrcp.pop %v3537
    %v3539 = vmul.f32 %v3534, %v3538
    %3540 = vst.msk [vmem:[#allocation5] sm:$0x1] %vm3528, %v3539
    // Predicated region
    $region38: #{lstm_domain_transfer_forward.1} parent=1 // pred_check
      _
    $region39: #{lstm_domain_transfer_forward.1} parent=1 // pred_check_branch
      %3542 = sbr.rel (0) target = $region41
    $region40: #{lstm_domain_transfer_forward.1} parent=1 // pred_region
      _
    $region41: #{lstm_domain_transfer_forward.1} parent=1 // pred_fallthru
      _
    // Predicated region
    $region42: #{lstm_domain_transfer_forward.1} parent=1 // pred_check
      _
    $region43: #{lstm_domain_transfer_forward.1} parent=1 // pred_check_branch
      %3544 = sbr.rel (0) target = $region45
    $region44: #{lstm_domain_transfer_forward.1} parent=1 // pred_region
      _
    $region45: #{lstm_domain_transfer_forward.1} parent=1 // pred_fallthru
      _
    // Predicated region
    $region46: #{lstm_domain_transfer_forward.1} parent=1 // pred_check
      _
    $region47: #{lstm_domain_transfer_forward.1} parent=1 // pred_check_branch
      %3546 = sbr.rel (0) target = $region49
    $region48: #{lstm_domain_transfer_forward.1} parent=1 // pred_region
      %s3548 = ssub.s32 16, 16
      %3549 = vsyncadd [#allocation4], %s3548
      %s3551 = sshll.u32 [#allocation5], 4
      %s3552 = int_to_ptr.vmem [resolvable:$true] %s3551
      %3554 = dma.vmem_to_hbm [thread:$0]  %s3552, 16, %s10, [#allocation4]
    $region49: #{lstm_domain_transfer_forward.1} parent=1 // pred_fallthru
      _
    // Predicated region
    $region50: #{lstm_domain_transfer_forward.1} parent=1 // pred_check
      _
    $region51: #{lstm_domain_transfer_forward.1} parent=1 // pred_check_branch
      %3556 = sbr.rel (0) target = $region53
    $region52: #{lstm_domain_transfer_forward.1} parent=1 // pred_region
      _
    $region53: #{lstm_domain_transfer_forward.1} parent=1 // pred_fallthru
      _
    // Predicated region
    $region54: #{lstm_domain_transfer_forward.1} parent=1 // pred_check
      _
    $region55: #{lstm_domain_transfer_forward.1} parent=1 // pred_check_branch
      %3558 = sbr.rel (0) target = $region57
    $region56: #{lstm_domain_transfer_forward.1} parent=1 // pred_region
      _
    $region57: #{lstm_domain_transfer_forward.1} parent=1 // pred_fallthru
      _
    // Predicated region
    $region58: #{lstm_domain_transfer_forward.1} parent=1 // pred_check
      _
    $region59: #{lstm_domain_transfer_forward.1} parent=1 // pred_check_branch
      %3560 = sbr.rel (0) target = $region61
    $region60: #{lstm_domain_transfer_forward.1} parent=1 // pred_region
      %3561 = dma.done [#allocation4], 16
    $region61: #{lstm_domain_transfer_forward.1} parent=1 // pred_fallthru
      _
    %3562 = vsyncpa [#allocation3], 1
    %3563 = vsyncpa [#allocation4], 1

</llo_original>
